<compile_context>
chip_gen: v6e
topology: v6e:2x2x1
jax: 0.10.0
libtpu: 0.0.40
codegen_flags: <defaults>
</compile_context>

<pallas_src>
import functools

import jax
import jax.numpy as jnp
from jax import lax
from jax.experimental import pallas as pl
from jax.experimental.pallas import tpu as pltpu


def _round_up(x, m):
    return ((x + m - 1) // m) * m


def _agg_kernel(idx_ref, ea_ref, fd_ref, featw_ref, b_ref, o_ref, *,
                mm_dtype, src_chunk):
    # idx_ref  : [TN, K]        i32   neighbor ids for this tile of dst nodes
    # ea_ref   : [TN, K+1]      f32   cols 0..K-1 = edge weights e, col K = alpha
    # fd_ref   : [TN, D]        f32   dst-node features (feat[:N_dst], padded)
    # featw_ref: [N_src_pad, D] mm_dtype  resident feat @ W^T (constant index_map)
    # b_ref    : [1, D]         f32   bias, grid-invariant
    # o_ref    : [TN, D]        f32
    tn, k = idx_ref.shape
    n_src, d = featw_ref.shape
    n_chunks = n_src // src_chunk          # wrapper guarantees divisibility

    e = ea_ref[:, :k]                      # [TN, K]
    alpha = ea_ref[:, k:k + 1]             # [TN, 1]
    idx = idx_ref[...]                     # [TN, K]

    # s_i = sum_k e[i,k] * feat_w[nbr(i,k)]  via chunked gather-as-matmul:
    #   A[i, j] = sum_k e[i,k] * (idx[i,k] == j), built one src-chunk of
    #   columns at a time and contracted immediately on the MXU.  Duplicate
    #   neighbors accumulate their e weights, matching sum_k e_k * z_k.
    s = jnp.zeros((tn, d), jnp.float32)
    for c in range(n_chunks):              # static unroll; n_chunks is small
        base = c * src_chunk
        col = base + lax.broadcasted_iota(jnp.int32, (tn, src_chunk), 1)
        a = jnp.zeros((tn, src_chunk), jnp.float32)
        for kk in range(k):                # static unroll; K is small
            a = a + jnp.where(col == idx[:, kk:kk + 1], e[:, kk:kk + 1], 0.0)
        s = s + jnp.dot(a.astype(mm_dtype),
                        featw_ref[pl.ds(base, src_chunk), :],
                        preferred_element_type=jnp.float32)   # [TN, D]  MXU

    # mean_k(e_k * (W z_k + b)) == (sum_k e_k * feat_w[nbr_k]) / K + mean(e) * b
    e_mean = jnp.mean(e, axis=1, keepdims=True)               # [TN, 1]
    f = jnp.maximum(s * (1.0 / k) + e_mean * b_ref[...], 0.0)
    # graph.dstdata['f'] + graph.dstdata['z']  (residual kept in f32)
    o_ref[...] = (f + alpha * fd_ref[...]).astype(o_ref.dtype)


def one_neighbor_aggregation(feat, node_alpha, nbr_idx, e_data, W, b, *,
                             tile_n=128, src_chunk=256, use_bf16_matmul=True):
    N_src, D = feat.shape
    N_dst, K = nbr_idx.shape
    mm_dtype = jnp.bfloat16 if use_bf16_matmul else jnp.float32
    mm_item = jnp.dtype(mm_dtype).itemsize

    # ---- glue (plain JAX): eval-mode dropout == identity ------------------
    e = e_data.reshape(N_dst, K, -1)[:, :, 0]            # edges.data['e'][:, 0]
    alpha = node_alpha[:, 0:1]                           # node_alpha[:, 0]
    ea = jnp.concatenate([e, alpha], axis=1).astype(jnp.float32)   # [N_dst, K+1]
    fd = feat[:N_dst].astype(jnp.float32)                # dst slice of feat_src
    b2 = b.reshape(1, D).astype(jnp.float32)

    # Fold the Linear into the resident operand: one f32 matmul at full XLA
    # efficiency, cast ONCE to the MXU dtype (no compounded rounding).
    feat_w = jnp.dot(feat.astype(jnp.float32), W.T.astype(jnp.float32),
                     precision=lax.Precision.HIGHEST)    # [N_src, D]

    # ---- dst tiling / padding (no divisibility requirement on N_dst) ------
    tile_n = _round_up(min(int(tile_n), _round_up(N_dst, 8)), 8)
    n_pad = _round_up(N_dst, tile_n)
    pad = n_pad - N_dst
    nbr_idx = nbr_idx.astype(jnp.int32)
    if pad:
        nbr_idx = jnp.pad(nbr_idx, ((0, pad), (0, 0)))
        ea = jnp.pad(ea, ((0, pad), (0, 0)))             # padded rows: e=0, alpha=0
        fd = jnp.pad(fd, ((0, pad), (0, 0)))

    # ---- src-chunk padding for the chunked gather-as-matmul ---------------
    src_chunk = _round_up(min(int(src_chunk), _round_up(N_src, 128)), 128)
    s_pad = _round_up(N_src, src_chunk)
    if s_pad > N_src:
        feat_w = jnp.pad(feat_w, ((0, s_pad - N_src), (0, 0)))   # zero rows
    feat_w = feat_w.astype(mm_dtype)

    grid = (n_pad // tile_n,)
    kernel = functools.partial(_agg_kernel, mm_dtype=mm_dtype,
                               src_chunk=src_chunk)

    # ---- scheduling / VMEM hints ------------------------------------------
    flops = 2 * n_pad * s_pad * D
    bytes_accessed = int(
        feat_w.size * mm_item
        + (ea.size + fd.size + b2.size + n_pad * D) * 4
        + nbr_idx.size * 4)
    resident = 2 * (s_pad * D * mm_item + D * 4)                 # feat_w + bias
    streamed = 2 * tile_n * (K * 4 + (K + 1) * 4 + 2 * D * 4)    # idx, ea, fd, out
    vmem_limit = min(max(2 * (resident + streamed) + (8 << 20), 32 << 20),
                     64 << 20)

    out = pl.pallas_call(
        kernel,
        out_shape=jax.ShapeDtypeStruct((n_pad, D), jnp.float32),
        grid_spec=pltpu.PrefetchScalarGridSpec(
            num_scalar_prefetch=0,
            grid=grid,
            in_specs=[
                pl.BlockSpec((tile_n, K), lambda i: (i, 0)),        # nbr_idx
                pl.BlockSpec((tile_n, K + 1), lambda i: (i, 0)),    # [e | alpha]
                pl.BlockSpec((tile_n, D), lambda i: (i, 0)),        # feat_dst (f32)
                # grid-invariant blocks (constant index_map -> fetched once):
                pl.BlockSpec((s_pad, D), lambda i: (0, 0)),         # feat @ W^T
                pl.BlockSpec((1, D), lambda i: (0, 0)),             # bias
            ],
            out_specs=pl.BlockSpec((tile_n, D), lambda i: (i, 0)),
        ),
        compiler_params=pltpu.CompilerParams(
            dimension_semantics=("parallel",),
            vmem_limit_bytes=int(vmem_limit)),
        cost_estimate=pl.CostEstimate(
            flops=flops, transcendentals=0, bytes_accessed=bytes_accessed),
    )(nbr_idx, ea, fd, feat_w, b2)
    return out[:N_dst].astype(feat.dtype)


if __name__ == "__main__":
    key = jax.random.PRNGKey(0)
    k1, k2, k3, k4, k5, k6 = jax.random.split(key, 6)

    # Small synthetic graph: dst nodes are the first N_dst src nodes,
    # fixed in-degree K stands in for the DGL mailbox.
    N_src, N_dst, K, D = 512, 256, 8, 128

    feat = jax.random.normal(k1, (N_src, D), jnp.float32)
    node_alpha = jax.random.normal(k2, (N_dst, 2), jnp.float32)
    nbr_idx = jax.random.randint(k3, (N_dst, K), 0, N_src, dtype=jnp.int32)
    e_data = jax.random.normal(k4, (N_dst * K, 2), jnp.float32)

    # deterministic parameter init matching nn.Linear(D, D) with
    # xavier_normal_(weight, gain=calculate_gain('relu')) and default bias.
    gain = 2.0 ** 0.5
    std = gain * (2.0 / (D + D)) ** 0.5
    W = std * jax.random.normal(k5, (D, D), jnp.float32)          # [out, in]
    bound = 1.0 / (D ** 0.5)
    b = jax.random.uniform(k6, (D,), jnp.float32, -bound, bound)

    # pure-JAX reference, computed the "original" way (Linear on every message)
    z_ref = feat[nbr_idx]                                         # [N_dst, K, D]
    e_ref = e_data.reshape(N_dst, K, 2)[:, :, 0]
    wz = jnp.einsum("nkd,od->nko", z_ref, W,
                    precision=lax.Precision.HIGHEST) + b
    f = jax.nn.relu(jnp.mean(e_ref[:, :, None] * wz, axis=1))
    ref = f + node_alpha[:, 0:1] * feat[:N_dst]

    # f32 MXU path (exact up to summation-order reassociation)
    out = one_neighbor_aggregation(feat, node_alpha, nbr_idx, e_data, W, b,
                                   tile_n=128, src_chunk=256,
                                   use_bf16_matmul=False)
    out = jax.block_until_ready(out)
    assert out.shape == (N_dst, D)
    assert jnp.allclose(out, ref, atol=3e-3, rtol=3e-3), "f32 mismatch vs ref"

    # default bf16 MXU operands (v6e/v7x fast path); VPU math stays f32
    out_bf = one_neighbor_aggregation(feat, node_alpha, nbr_idx, e_data, W, b)
    out_bf = jax.block_until_ready(out_bf)
    assert jnp.allclose(out_bf, ref, atol=5e-2, rtol=5e-2), "bf16 mismatch vs ref"

    print("KERNEL_OK")
</pallas_src>

<mosaic_0001>
module attributes {stable_mosaic.version = 11 : i64} {
  func.func @_agg_kernel(%arg0: i32, %arg1: memref<128x8xi32, #tpu.memory_space<vmem>>, %arg2: memref<128x9xf32, #tpu.memory_space<vmem>>, %arg3: memref<128x128xf32, #tpu.memory_space<vmem>>, %arg4: memref<512x128xf32, #tpu.memory_space<vmem>>, %arg5: memref<1x128xf32, #tpu.memory_space<vmem>>, %arg6: memref<128x128xf32, #tpu.memory_space<vmem>>) attributes {dimension_semantics = [#tpu.dimension_semantics<parallel>], iteration_bounds = array<i64: 2>, scalar_prefetch = 0 : i64, scratch_operands = 0 : i64, tpu.core_type = #tpu.core_type<tc>, window_params = [{transform_indices = @transform_0, window_bounds = array<i64: 128, 8>}, {transform_indices = @transform_1, window_bounds = array<i64: 128, 9>}, {transform_indices = @transform_2, window_bounds = array<i64: 128, 128>}, {pipeline_mode = #tpu.pipeline_mode<synchronous>, transform_indices = @transform_3, window_bounds = array<i64: 512, 128>}, {pipeline_mode = #tpu.pipeline_mode<synchronous>, transform_indices = @transform_4, window_bounds = array<i64: 1, 128>}, {transform_indices = @transform_5, window_bounds = array<i64: 128, 128>}]} {
    %c0 = arith.constant 0 : index
    %c0_0 = arith.constant 0 : index
    %0 = vector.load %arg2[%c0, %c0_0] : memref<128x9xf32, #tpu.memory_space<vmem>>, vector<128x8xf32>
    %c0_1 = arith.constant 0 : index
    %c8 = arith.constant 8 : index
    %1 = vector.load %arg2[%c0_1, %c8] : memref<128x9xf32, #tpu.memory_space<vmem>>, vector<128x1xf32>
    %c0_2 = arith.constant 0 : index
    %c0_3 = arith.constant 0 : index
    %2 = vector.load %arg1[%c0_2, %c0_3] : memref<128x8xi32, #tpu.memory_space<vmem>>, vector<128x8xi32>
    %cst = arith.constant 0.000000e+00 : f32
    %3 = vector.broadcast %cst : f32 to vector<128x128xf32>
    %4 = tpu.iota {dimensions = array<i32: 1>} : vector<128x256xi32>
    %c0_i32 = arith.constant 0 : i32
    %5 = vector.broadcast %c0_i32 : i32 to vector<128x256xi32>
    %6 = arith.addi %5, %4 : vector<128x256xi32>
    %cst_4 = arith.constant 0.000000e+00 : f32
    %7 = vector.broadcast %cst_4 : f32 to vector<128x256xf32>
    %8 = vector.extract_strided_slice %2 {offsets = [0, 0], sizes = [128, 1], strides = [1, 1]} : vector<128x8xi32> to vector<128x1xi32>
    %9 = vector.broadcast %8 : vector<128x1xi32> to vector<128x256xi32>
    %10 = arith.cmpi eq, %6, %9 : vector<128x256xi32>
    %11 = vector.extract_strided_slice %0 {offsets = [0, 0], sizes = [128, 1], strides = [1, 1]} : vector<128x8xf32> to vector<128x1xf32>
    %cst_5 = arith.constant 0.000000e+00 : f32
    %12 = vector.shape_cast %11 : vector<128x1xf32> to vector<128x1xf32>
    %13 = vector.broadcast %12 : vector<128x1xf32> to vector<128x256xf32>
    %14 = vector.broadcast %cst_5 : f32 to vector<128x256xf32>
    %15 = arith.select %10, %13, %14 : vector<128x256xi1>, vector<128x256xf32>
    %16 = arith.addf %7, %15 : vector<128x256xf32>
    %17 = vector.extract_strided_slice %2 {offsets = [0, 1], sizes = [128, 1], strides = [1, 1]} : vector<128x8xi32> to vector<128x1xi32>
    %18 = vector.broadcast %17 : vector<128x1xi32> to vector<128x256xi32>
    %19 = arith.cmpi eq, %6, %18 : vector<128x256xi32>
    %20 = vector.extract_strided_slice %0 {offsets = [0, 1], sizes = [128, 1], strides = [1, 1]} : vector<128x8xf32> to vector<128x1xf32>
    %cst_6 = arith.constant 0.000000e+00 : f32
    %21 = vector.shape_cast %20 : vector<128x1xf32> to vector<128x1xf32>
    %22 = vector.broadcast %21 : vector<128x1xf32> to vector<128x256xf32>
    %23 = vector.broadcast %cst_6 : f32 to vector<128x256xf32>
    %24 = arith.select %19, %22, %23 : vector<128x256xi1>, vector<128x256xf32>
    %25 = arith.addf %16, %24 : vector<128x256xf32>
    %26 = vector.extract_strided_slice %2 {offsets = [0, 2], sizes = [128, 1], strides = [1, 1]} : vector<128x8xi32> to vector<128x1xi32>
    %27 = vector.broadcast %26 : vector<128x1xi32> to vector<128x256xi32>
    %28 = arith.cmpi eq, %6, %27 : vector<128x256xi32>
    %29 = vector.extract_strided_slice %0 {offsets = [0, 2], sizes = [128, 1], strides = [1, 1]} : vector<128x8xf32> to vector<128x1xf32>
    %cst_7 = arith.constant 0.000000e+00 : f32
    %30 = vector.shape_cast %29 : vector<128x1xf32> to vector<128x1xf32>
    %31 = vector.broadcast %30 : vector<128x1xf32> to vector<128x256xf32>
    %32 = vector.broadcast %cst_7 : f32 to vector<128x256xf32>
    %33 = arith.select %28, %31, %32 : vector<128x256xi1>, vector<128x256xf32>
    %34 = arith.addf %25, %33 : vector<128x256xf32>
    %35 = vector.extract_strided_slice %2 {offsets = [0, 3], sizes = [128, 1], strides = [1, 1]} : vector<128x8xi32> to vector<128x1xi32>
    %36 = vector.broadcast %35 : vector<128x1xi32> to vector<128x256xi32>
    %37 = arith.cmpi eq, %6, %36 : vector<128x256xi32>
    %38 = vector.extract_strided_slice %0 {offsets = [0, 3], sizes = [128, 1], strides = [1, 1]} : vector<128x8xf32> to vector<128x1xf32>
    %cst_8 = arith.constant 0.000000e+00 : f32
    %39 = vector.shape_cast %38 : vector<128x1xf32> to vector<128x1xf32>
    %40 = vector.broadcast %39 : vector<128x1xf32> to vector<128x256xf32>
    %41 = vector.broadcast %cst_8 : f32 to vector<128x256xf32>
    %42 = arith.select %37, %40, %41 : vector<128x256xi1>, vector<128x256xf32>
    %43 = arith.addf %34, %42 : vector<128x256xf32>
    %44 = vector.extract_strided_slice %2 {offsets = [0, 4], sizes = [128, 1], strides = [1, 1]} : vector<128x8xi32> to vector<128x1xi32>
    %45 = vector.broadcast %44 : vector<128x1xi32> to vector<128x256xi32>
    %46 = arith.cmpi eq, %6, %45 : vector<128x256xi32>
    %47 = vector.extract_strided_slice %0 {offsets = [0, 4], sizes = [128, 1], strides = [1, 1]} : vector<128x8xf32> to vector<128x1xf32>
    %cst_9 = arith.constant 0.000000e+00 : f32
    %48 = vector.shape_cast %47 : vector<128x1xf32> to vector<128x1xf32>
    %49 = vector.broadcast %48 : vector<128x1xf32> to vector<128x256xf32>
    %50 = vector.broadcast %cst_9 : f32 to vector<128x256xf32>
    %51 = arith.select %46, %49, %50 : vector<128x256xi1>, vector<128x256xf32>
    %52 = arith.addf %43, %51 : vector<128x256xf32>
    %53 = vector.extract_strided_slice %2 {offsets = [0, 5], sizes = [128, 1], strides = [1, 1]} : vector<128x8xi32> to vector<128x1xi32>
    %54 = vector.broadcast %53 : vector<128x1xi32> to vector<128x256xi32>
    %55 = arith.cmpi eq, %6, %54 : vector<128x256xi32>
    %56 = vector.extract_strided_slice %0 {offsets = [0, 5], sizes = [128, 1], strides = [1, 1]} : vector<128x8xf32> to vector<128x1xf32>
    %cst_10 = arith.constant 0.000000e+00 : f32
    %57 = vector.shape_cast %56 : vector<128x1xf32> to vector<128x1xf32>
    %58 = vector.broadcast %57 : vector<128x1xf32> to vector<128x256xf32>
    %59 = vector.broadcast %cst_10 : f32 to vector<128x256xf32>
    %60 = arith.select %55, %58, %59 : vector<128x256xi1>, vector<128x256xf32>
    %61 = arith.addf %52, %60 : vector<128x256xf32>
    %62 = vector.extract_strided_slice %2 {offsets = [0, 6], sizes = [128, 1], strides = [1, 1]} : vector<128x8xi32> to vector<128x1xi32>
    %63 = vector.broadcast %62 : vector<128x1xi32> to vector<128x256xi32>
    %64 = arith.cmpi eq, %6, %63 : vector<128x256xi32>
    %65 = vector.extract_strided_slice %0 {offsets = [0, 6], sizes = [128, 1], strides = [1, 1]} : vector<128x8xf32> to vector<128x1xf32>
    %cst_11 = arith.constant 0.000000e+00 : f32
    %66 = vector.shape_cast %65 : vector<128x1xf32> to vector<128x1xf32>
    %67 = vector.broadcast %66 : vector<128x1xf32> to vector<128x256xf32>
    %68 = vector.broadcast %cst_11 : f32 to vector<128x256xf32>
    %69 = arith.select %64, %67, %68 : vector<128x256xi1>, vector<128x256xf32>
    %70 = arith.addf %61, %69 : vector<128x256xf32>
    %71 = vector.extract_strided_slice %2 {offsets = [0, 7], sizes = [128, 1], strides = [1, 1]} : vector<128x8xi32> to vector<128x1xi32>
    %72 = vector.broadcast %71 : vector<128x1xi32> to vector<128x256xi32>
    %73 = arith.cmpi eq, %6, %72 : vector<128x256xi32>
    %74 = vector.extract_strided_slice %0 {offsets = [0, 7], sizes = [128, 1], strides = [1, 1]} : vector<128x8xf32> to vector<128x1xf32>
    %cst_12 = arith.constant 0.000000e+00 : f32
    %75 = vector.shape_cast %74 : vector<128x1xf32> to vector<128x1xf32>
    %76 = vector.broadcast %75 : vector<128x1xf32> to vector<128x256xf32>
    %77 = vector.broadcast %cst_12 : f32 to vector<128x256xf32>
    %78 = arith.select %73, %76, %77 : vector<128x256xi1>, vector<128x256xf32>
    %79 = arith.addf %70, %78 : vector<128x256xf32>
    %c0_13 = arith.constant 0 : index
    %c0_14 = arith.constant 0 : index
    %80 = vector.load %arg4[%c0_13, %c0_14] : memref<512x128xf32, #tpu.memory_space<vmem>>, vector<256x128xf32>
    %cst_15 = arith.constant dense<0.000000e+00> : vector<128x128xf32>
    %81 = tpu.matmul %79, %80, %cst_15 {dimension_numbers = #tpu.dot_dimension_numbers<[1], [0], [0], [1], [0, 0, 1, 1], [], []>} : vector<128x256xf32>, vector<256x128xf32>, vector<128x128xf32> -> vector<128x128xf32>
    %82 = arith.addf %3, %81 : vector<128x128xf32>
    %83 = tpu.iota {dimensions = array<i32: 1>} : vector<128x256xi32>
    %c256_i32 = arith.constant 256 : i32
    %84 = vector.broadcast %c256_i32 : i32 to vector<128x256xi32>
    %85 = arith.addi %84, %83 : vector<128x256xi32>
    %cst_16 = arith.constant 0.000000e+00 : f32
    %86 = vector.broadcast %cst_16 : f32 to vector<128x256xf32>
    %87 = vector.extract_strided_slice %2 {offsets = [0, 0], sizes = [128, 1], strides = [1, 1]} : vector<128x8xi32> to vector<128x1xi32>
    %88 = vector.broadcast %87 : vector<128x1xi32> to vector<128x256xi32>
    %89 = arith.cmpi eq, %85, %88 : vector<128x256xi32>
    %90 = vector.extract_strided_slice %0 {offsets = [0, 0], sizes = [128, 1], strides = [1, 1]} : vector<128x8xf32> to vector<128x1xf32>
    %cst_17 = arith.constant 0.000000e+00 : f32
    %91 = vector.shape_cast %90 : vector<128x1xf32> to vector<128x1xf32>
    %92 = vector.broadcast %91 : vector<128x1xf32> to vector<128x256xf32>
    %93 = vector.broadcast %cst_17 : f32 to vector<128x256xf32>
    %94 = arith.select %89, %92, %93 : vector<128x256xi1>, vector<128x256xf32>
    %95 = arith.addf %86, %94 : vector<128x256xf32>
    %96 = vector.extract_strided_slice %2 {offsets = [0, 1], sizes = [128, 1], strides = [1, 1]} : vector<128x8xi32> to vector<128x1xi32>
    %97 = vector.broadcast %96 : vector<128x1xi32> to vector<128x256xi32>
    %98 = arith.cmpi eq, %85, %97 : vector<128x256xi32>
    %99 = vector.extract_strided_slice %0 {offsets = [0, 1], sizes = [128, 1], strides = [1, 1]} : vector<128x8xf32> to vector<128x1xf32>
    %cst_18 = arith.constant 0.000000e+00 : f32
    %100 = vector.shape_cast %99 : vector<128x1xf32> to vector<128x1xf32>
    %101 = vector.broadcast %100 : vector<128x1xf32> to vector<128x256xf32>
    %102 = vector.broadcast %cst_18 : f32 to vector<128x256xf32>
    %103 = arith.select %98, %101, %102 : vector<128x256xi1>, vector<128x256xf32>
    %104 = arith.addf %95, %103 : vector<128x256xf32>
    %105 = vector.extract_strided_slice %2 {offsets = [0, 2], sizes = [128, 1], strides = [1, 1]} : vector<128x8xi32> to vector<128x1xi32>
    %106 = vector.broadcast %105 : vector<128x1xi32> to vector<128x256xi32>
    %107 = arith.cmpi eq, %85, %106 : vector<128x256xi32>
    %108 = vector.extract_strided_slice %0 {offsets = [0, 2], sizes = [128, 1], strides = [1, 1]} : vector<128x8xf32> to vector<128x1xf32>
    %cst_19 = arith.constant 0.000000e+00 : f32
    %109 = vector.shape_cast %108 : vector<128x1xf32> to vector<128x1xf32>
    %110 = vector.broadcast %109 : vector<128x1xf32> to vector<128x256xf32>
    %111 = vector.broadcast %cst_19 : f32 to vector<128x256xf32>
    %112 = arith.select %107, %110, %111 : vector<128x256xi1>, vector<128x256xf32>
    %113 = arith.addf %104, %112 : vector<128x256xf32>
    %114 = vector.extract_strided_slice %2 {offsets = [0, 3], sizes = [128, 1], strides = [1, 1]} : vector<128x8xi32> to vector<128x1xi32>
    %115 = vector.broadcast %114 : vector<128x1xi32> to vector<128x256xi32>
    %116 = arith.cmpi eq, %85, %115 : vector<128x256xi32>
    %117 = vector.extract_strided_slice %0 {offsets = [0, 3], sizes = [128, 1], strides = [1, 1]} : vector<128x8xf32> to vector<128x1xf32>
    %cst_20 = arith.constant 0.000000e+00 : f32
    %118 = vector.shape_cast %117 : vector<128x1xf32> to vector<128x1xf32>
    %119 = vector.broadcast %118 : vector<128x1xf32> to vector<128x256xf32>
    %120 = vector.broadcast %cst_20 : f32 to vector<128x256xf32>
    %121 = arith.select %116, %119, %120 : vector<128x256xi1>, vector<128x256xf32>
    %122 = arith.addf %113, %121 : vector<128x256xf32>
    %123 = vector.extract_strided_slice %2 {offsets = [0, 4], sizes = [128, 1], strides = [1, 1]} : vector<128x8xi32> to vector<128x1xi32>
    %124 = vector.broadcast %123 : vector<128x1xi32> to vector<128x256xi32>
    %125 = arith.cmpi eq, %85, %124 : vector<128x256xi32>
    %126 = vector.extract_strided_slice %0 {offsets = [0, 4], sizes = [128, 1], strides = [1, 1]} : vector<128x8xf32> to vector<128x1xf32>
    %cst_21 = arith.constant 0.000000e+00 : f32
    %127 = vector.shape_cast %126 : vector<128x1xf32> to vector<128x1xf32>
    %128 = vector.broadcast %127 : vector<128x1xf32> to vector<128x256xf32>
    %129 = vector.broadcast %cst_21 : f32 to vector<128x256xf32>
    %130 = arith.select %125, %128, %129 : vector<128x256xi1>, vector<128x256xf32>
    %131 = arith.addf %122, %130 : vector<128x256xf32>
    %132 = vector.extract_strided_slice %2 {offsets = [0, 5], sizes = [128, 1], strides = [1, 1]} : vector<128x8xi32> to vector<128x1xi32>
    %133 = vector.broadcast %132 : vector<128x1xi32> to vector<128x256xi32>
    %134 = arith.cmpi eq, %85, %133 : vector<128x256xi32>
    %135 = vector.extract_strided_slice %0 {offsets = [0, 5], sizes = [128, 1], strides = [1, 1]} : vector<128x8xf32> to vector<128x1xf32>
    %cst_22 = arith.constant 0.000000e+00 : f32
    %136 = vector.shape_cast %135 : vector<128x1xf32> to vector<128x1xf32>
    %137 = vector.broadcast %136 : vector<128x1xf32> to vector<128x256xf32>
    %138 = vector.broadcast %cst_22 : f32 to vector<128x256xf32>
    %139 = arith.select %134, %137, %138 : vector<128x256xi1>, vector<128x256xf32>
    %140 = arith.addf %131, %139 : vector<128x256xf32>
    %141 = vector.extract_strided_slice %2 {offsets = [0, 6], sizes = [128, 1], strides = [1, 1]} : vector<128x8xi32> to vector<128x1xi32>
    %142 = vector.broadcast %141 : vector<128x1xi32> to vector<128x256xi32>
    %143 = arith.cmpi eq, %85, %142 : vector<128x256xi32>
    %144 = vector.extract_strided_slice %0 {offsets = [0, 6], sizes = [128, 1], strides = [1, 1]} : vector<128x8xf32> to vector<128x1xf32>
    %cst_23 = arith.constant 0.000000e+00 : f32
    %145 = vector.shape_cast %144 : vector<128x1xf32> to vector<128x1xf32>
    %146 = vector.broadcast %145 : vector<128x1xf32> to vector<128x256xf32>
    %147 = vector.broadcast %cst_23 : f32 to vector<128x256xf32>
    %148 = arith.select %143, %146, %147 : vector<128x256xi1>, vector<128x256xf32>
    %149 = arith.addf %140, %148 : vector<128x256xf32>
    %150 = vector.extract_strided_slice %2 {offsets = [0, 7], sizes = [128, 1], strides = [1, 1]} : vector<128x8xi32> to vector<128x1xi32>
    %151 = vector.broadcast %150 : vector<128x1xi32> to vector<128x256xi32>
    %152 = arith.cmpi eq, %85, %151 : vector<128x256xi32>
    %153 = vector.extract_strided_slice %0 {offsets = [0, 7], sizes = [128, 1], strides = [1, 1]} : vector<128x8xf32> to vector<128x1xf32>
    %cst_24 = arith.constant 0.000000e+00 : f32
    %154 = vector.shape_cast %153 : vector<128x1xf32> to vector<128x1xf32>
    %155 = vector.broadcast %154 : vector<128x1xf32> to vector<128x256xf32>
    %156 = vector.broadcast %cst_24 : f32 to vector<128x256xf32>
    %157 = arith.select %152, %155, %156 : vector<128x256xi1>, vector<128x256xf32>
    %158 = arith.addf %149, %157 : vector<128x256xf32>
    %c256 = arith.constant 256 : index
    %c0_25 = arith.constant 0 : index
    %159 = vector.load %arg4[%c256, %c0_25] : memref<512x128xf32, #tpu.memory_space<vmem>>, vector<256x128xf32>
    %cst_26 = arith.constant dense<0.000000e+00> : vector<128x128xf32>
    %160 = tpu.matmul %158, %159, %cst_26 {dimension_numbers = #tpu.dot_dimension_numbers<[1], [0], [0], [1], [0, 0, 1, 1], [], []>} : vector<128x256xf32>, vector<256x128xf32>, vector<128x128xf32> -> vector<128x128xf32>
    %161 = arith.addf %82, %160 : vector<128x128xf32>
    %cst_27 = arith.constant dense<0.000000e+00> : vector<128xf32>
    %162 = vector.multi_reduction <add>, %0, %cst_27 [1] : vector<128x8xf32> to vector<128xf32>
    %163 = vector.shape_cast %162 : vector<128xf32> to vector<128x1xf32>
    %cst_28 = arith.constant 8.000000e+00 : f32
    %164 = vector.broadcast %cst_28 : f32 to vector<128x1xf32>
    %165 = arith.divf %163, %164 : vector<128x1xf32>
    %cst_29 = arith.constant 1.250000e-01 : f32
    %166 = vector.broadcast %cst_29 : f32 to vector<128x128xf32>
    %167 = arith.mulf %161, %166 : vector<128x128xf32>
    %c0_30 = arith.constant 0 : index
    %c0_31 = arith.constant 0 : index
    %168 = vector.load %arg5[%c0_30, %c0_31] : memref<1x128xf32, #tpu.memory_space<vmem>>, vector<1x128xf32>
    %169 = vector.broadcast %165 : vector<128x1xf32> to vector<128x128xf32>
    %170 = vector.broadcast %168 : vector<1x128xf32> to vector<128x128xf32>
    %171 = arith.mulf %169, %170 : vector<128x128xf32>
    %172 = arith.addf %167, %171 : vector<128x128xf32>
    %cst_32 = arith.constant 0.000000e+00 : f32
    %173 = vector.broadcast %cst_32 : f32 to vector<128x128xf32>
    %174 = arith.maximumf %172, %173 : vector<128x128xf32>
    %c0_33 = arith.constant 0 : index
    %c0_34 = arith.constant 0 : index
    %175 = vector.load %arg3[%c0_33, %c0_34] : memref<128x128xf32, #tpu.memory_space<vmem>>, vector<128x128xf32>
    %176 = vector.broadcast %1 : vector<128x1xf32> to vector<128x128xf32>
    %177 = arith.mulf %176, %175 : vector<128x128xf32>
    %178 = arith.addf %174, %177 : vector<128x128xf32>
    %c0_35 = arith.constant 0 : index
    %c0_36 = arith.constant 0 : index
    %179 = vector.load %arg6[%c0_35, %c0_36] : memref<128x128xf32, #tpu.memory_space<vmem>>, vector<128x128xf32>
    tpu.vector_store %arg6[%c0_35, %c0_36], %178 {strides = array<i32>} : memref<128x128xf32, #tpu.memory_space<vmem>>, vector<128x128xf32>,
    return
  }
  func.func @transform_0(%arg0: i32) -> (i32, i32) {
    %c0_i32 = arith.constant 0 : i32
    %c0_i32_0 = arith.constant 0 : i32
    return %arg0, %c0_i32 : i32, i32
  }
  func.func @transform_1(%arg0: i32) -> (i32, i32) {
    %c0_i32 = arith.constant 0 : i32
    %c0_i32_0 = arith.constant 0 : i32
    return %arg0, %c0_i32 : i32, i32
  }
  func.func @transform_2(%arg0: i32) -> (i32, i32) {
    %c0_i32 = arith.constant 0 : i32
    %c0_i32_0 = arith.constant 0 : i32
    return %arg0, %c0_i32 : i32, i32
  }
  func.func @transform_3(%arg0: i32) -> (i32, i32) {
    %c0_i32 = arith.constant 0 : i32
    %c0_i32_0 = arith.constant 0 : i32
    %c0_i32_1 = arith.constant 0 : i32
    return %c0_i32, %c0_i32_0 : i32, i32
  }
  func.func @transform_4(%arg0: i32) -> (i32, i32) {
    %c0_i32 = arith.constant 0 : i32
    %c0_i32_0 = arith.constant 0 : i32
    %c0_i32_1 = arith.constant 0 : i32
    return %c0_i32, %c0_i32_0 : i32, i32
  }
  func.func @transform_5(%arg0: i32) -> (i32, i32) {
    %c0_i32 = arith.constant 0 : i32
    %c0_i32_0 = arith.constant 0 : i32
    return %arg0, %c0_i32 : i32, i32
  }
}

</mosaic_0001>

<llo_original>
// kernel: tpu_custom_call.1
$region0: #{tpu_custom_call.1}
  #allocation0 [shape = 'u32[]', space=smem, size = 0x4, offset = 0x4, fixed_abs, tag = 'smem constant byte address 0x4 - core index']
  #allocation1 [shape = 'u32[144,128]{1,0:T(1,128)}', space=vmem, size = 0x12000, scoped, tag = 'internal scratch']
  %s0 = inlined_call_operand.vmem [shape: s32[256,8], index: 0, kind: input, shape index: {}]
  %s1 = inlined_call_operand.vmem [shape: f32[256,9], index: 1, kind: input, shape index: {}]
  %s2 = inlined_call_operand.hbm [shape: f32[256,128], index: 2, kind: input, shape index: {}]
  %s3 = inlined_call_operand.vmem [shape: f32[512,128], index: 3, kind: input, shape index: {}]
  %s4 = inlined_call_operand.vmem [shape: f32[1,128], index: 4, kind: input, shape index: {}]
  %s5 = inlined_call_operand.hbm [shape: f32[256,128], index: 5, kind: output, shape index: {}]
  %s6 = sld [smem:[#allocation0]]
  $region57: #{tpu_custom_call.1} parent=0
    _
  %s8 = ssub.s32 1, %s6
  %s9 = scalar_select 0, %s8, %s6
  $region1: #{tpu_custom_call.1} parent=0
    #allocation2 [shape = 'u8[131072]{0}', space=vmem, size = 0x20000, scoped, tag = 'input window, operand 2']
    #allocation3 [shape = 's32[2]{0}', space=sflag, size = 0x8, scoped, tag = 'scoped memory for tpu_custom_call.1']
    #allocation4 [shape = 's32[2]{0}', space=sflag, size = 0x8, scoped, tag = 'scoped memory for tpu_custom_call.1']
    #allocation5 [shape = 'u8[131072]{0}', space=vmem, size = 0x20000, scoped, tag = 'output window, operand 0']
    %10 = vsyncpa [#allocation3], 0
    %s11 = scalar_lea.sflag [#allocation3], 1
    %12 = vsyncpa %s11, 0
    %13 = vsyncpa [#allocation4], 0
    %s14 = scalar_lea.sflag [#allocation4], 1
    %15 = vsyncpa %s14, 0
    loop: start=0, step=1, limit=4
    $region2: #{tpu_custom_call.1} parent=1 // loop_pre_header
      _
    $region3: #{tpu_custom_call.1} parent=1 // loop_header
      %s17 = sphi 0, %s21
      %p18 = scmp.ge.s32.totalorder %s17, 4
      %s27 = sphi 0, %s29
      %s30 = sphi 0, %s27
      %s31 = sphi 0, %s30
      %s47 = sphi 0, %s31
      %s53 = sphi 0, %s55
      %s56 = sphi 0, %s53
      %s57 = sphi 0, %s56
      %s73 = sphi 0, %s57
      %s79 = sphi 0, %s81
      %s82 = sphi 0, %s79
      %s83 = sphi 0, %s82
      %s99 = sphi 0, %s83
      %s103 = sphi 0, %s103
      %s105 = sphi 0, %s103
      %s106 = sphi 0, %s105
      %s120 = sphi 0, %s106
      %s124 = sphi 0, %s124
      %s126 = sphi 0, %s124
      %s127 = sphi 0, %s126
      %s141 = sphi 0, %s127
      %s147 = sphi 0, %s149
      %s150 = sphi 0, %s147
      %s151 = sphi 0, %s150
      %s167 = sphi 0, %s151
    $region4: #{tpu_custom_call.1} parent=1 // loop_header_branch
      %20 = sbr.rel (%p18) target = $region8
    $region5: #{tpu_custom_call.1} parent=1 // loop_body
      %s22 = ssub.s32 %s17, 1
      %s23 = ssub.s32 %s17, 2
      %s24 = sadd.s32 %s17, 1
      %s25 = ssub.s32 %s17, %s24
      %p26 = scmp.eq.s32.totalorder %s25, 0
      %s28 = sadd.s32 %s27, 1
      %s29 = scalar_select %p26, %s27, %s28
      %p32 = pneg %p26
      %p33 = scmp.eq.s32.totalorder %s17, 1
      %p34 = por %p32, %p33
      %p35 = scmp.ne.s32.totalorder %s27, %s30
      %p36 = scmp.eq.s32.totalorder %s17, 0
      %p37 = por %p35, %p36
      %p38 = scmp.ne.s32.totalorder %s27, %s30
      %p39 = scmp.eq.s32.totalorder %s22, 1
      %p40 = por %p38, %p39
      %p41 = scmp.ne.s32.totalorder %s30, %s31
      %p42 = scmp.eq.s32.totalorder %s22, 0
      %p43 = por %p41, %p42
      %p44 = scmp.ne.s32.totalorder %s30, %s31
      %p45 = scmp.eq.s32.totalorder %s23, 1
      %p46 = por %p44, %p45
      %p48 = scmp.ne.s32.totalorder %s31, %s47
      %p49 = scmp.eq.s32.totalorder %s23, 0
      %p50 = por %p48, %p49
      %s51 = ssub.s32 %s17, %s24
      %p52 = scmp.eq.s32.totalorder %s51, 0
      %s54 = sadd.s32 %s53, 1
      %s55 = scalar_select %p52, %s53, %s54
      %p58 = pneg %p52
      %p59 = scmp.eq.s32.totalorder %s17, 1
      %p60 = por %p58, %p59
      %p61 = scmp.ne.s32.totalorder %s53, %s56
      %p62 = scmp.eq.s32.totalorder %s17, 0
      %p63 = por %p61, %p62
      %p64 = scmp.ne.s32.totalorder %s53, %s56
      %p65 = scmp.eq.s32.totalorder %s22, 1
      %p66 = por %p64, %p65
      %p67 = scmp.ne.s32.totalorder %s56, %s57
      %p68 = scmp.eq.s32.totalorder %s22, 0
      %p69 = por %p67, %p68
      %p70 = scmp.ne.s32.totalorder %s56, %s57
      %p71 = scmp.eq.s32.totalorder %s23, 1
      %p72 = por %p70, %p71
      %p74 = scmp.ne.s32.totalorder %s57, %s73
      %p75 = scmp.eq.s32.totalorder %s23, 0
      %p76 = por %p74, %p75
      %s77 = ssub.s32 %s17, %s24
      %p78 = scmp.eq.s32.totalorder %s77, 0
      %s80 = sadd.s32 %s79, 1
      %s81 = scalar_select %p78, %s79, %s80
      %p84 = pneg %p78
      %p85 = scmp.eq.s32.totalorder %s17, 1
      %p86 = por %p84, %p85
      %p87 = scmp.ne.s32.totalorder %s79, %s82
      %p88 = scmp.eq.s32.totalorder %s17, 0
      %p89 = por %p87, %p88
      %p90 = scmp.ne.s32.totalorder %s79, %s82
      %p91 = scmp.eq.s32.totalorder %s22, 1
      %p92 = por %p90, %p91
      %p93 = scmp.ne.s32.totalorder %s82, %s83
      %p94 = scmp.eq.s32.totalorder %s22, 0
      %p95 = por %p93, %p94
      %p96 = scmp.ne.s32.totalorder %s82, %s83
      %p97 = scmp.eq.s32.totalorder %s23, 1
      %p98 = por %p96, %p97
      %p100 = scmp.ne.s32.totalorder %s83, %s99
      %p101 = scmp.eq.s32.totalorder %s23, 0
      %p102 = por %p100, %p101
      %s104 = sadd.s32 %s103, 1
      %p107 = scmp.eq.s32.totalorder %s17, 1
      %p108 = scmp.ne.s32.totalorder %s103, %s105
      %p109 = scmp.eq.s32.totalorder %s17, 0
      %p110 = por %p108, %p109
      %p111 = scmp.ne.s32.totalorder %s103, %s105
      %p112 = scmp.eq.s32.totalorder %s22, 1
      %p113 = por %p111, %p112
      %p114 = scmp.ne.s32.totalorder %s105, %s106
      %p115 = scmp.eq.s32.totalorder %s22, 0
      %p116 = por %p114, %p115
      %p117 = scmp.ne.s32.totalorder %s105, %s106
      %p118 = scmp.eq.s32.totalorder %s23, 1
      %p119 = por %p117, %p118
      %p121 = scmp.ne.s32.totalorder %s106, %s120
      %p122 = scmp.eq.s32.totalorder %s23, 0
      %p123 = por %p121, %p122
      %s125 = sadd.s32 %s124, 1
      %p128 = scmp.eq.s32.totalorder %s17, 1
      %p129 = scmp.ne.s32.totalorder %s124, %s126
      %p130 = scmp.eq.s32.totalorder %s17, 0
      %p131 = por %p129, %p130
      %p132 = scmp.ne.s32.totalorder %s124, %s126
      %p133 = scmp.eq.s32.totalorder %s22, 1
      %p134 = por %p132, %p133
      %p135 = scmp.ne.s32.totalorder %s126, %s127
      %p136 = scmp.eq.s32.totalorder %s22, 0
      %p137 = por %p135, %p136
      %p138 = scmp.ne.s32.totalorder %s126, %s127
      %p139 = scmp.eq.s32.totalorder %s23, 1
      %p140 = por %p138, %p139
      %p142 = scmp.ne.s32.totalorder %s127, %s141
      %p143 = scmp.eq.s32.totalorder %s23, 0
      %p144 = por %p142, %p143
      %s145 = ssub.s32 %s17, %s24
      %p146 = scmp.eq.s32.totalorder %s145, 0
      %s148 = sadd.s32 %s147, 1
      %s149 = scalar_select %p146, %s147, %s148
      %p152 = pneg %p146
      %p153 = scmp.eq.s32.totalorder %s17, 1
      %p154 = por %p152, %p153
      %p155 = scmp.ne.s32.totalorder %s147, %s150
      %p156 = scmp.eq.s32.totalorder %s17, 0
      %p157 = por %p155, %p156
      %p158 = scmp.ne.s32.totalorder %s147, %s150
      %p159 = scmp.eq.s32.totalorder %s22, 1
      %p160 = por %p158, %p159
      %p161 = scmp.ne.s32.totalorder %s150, %s151
      %p162 = scmp.eq.s32.totalorder %s22, 0
      %p163 = por %p161, %p162
      %p164 = scmp.ne.s32.totalorder %s150, %s151
      %p165 = scmp.eq.s32.totalorder %s23, 1
      %p166 = por %p164, %p165
      %p168 = scmp.ne.s32.totalorder %s151, %s167
      %p169 = scmp.eq.s32.totalorder %s23, 0
      %p170 = por %p168, %p169
      %p171 = scmp.le.s32.totalorder 1, %s17
      %p172 = scmp.lt.s32.totalorder %s17, 3
      %p173 = pnand %p171, %p172
      %p174 = pneg %p173
      // Predicated region
      $region9: #{tpu_custom_call.1} parent=5 // pred_check
        _
      $region10: #{tpu_custom_call.1} parent=5 // pred_check_branch
        %176 = sbr.rel (%p173) target = $region12
      $region11: #{tpu_custom_call.1} parent=5 // pred_region
        %s177 = ssub.s32 %s17, 1
        // Predicated region
        $region13: #{tpu_custom_call.1} parent=11 // pred_check
          %p178 = pneg %p116
        $region14: #{tpu_custom_call.1} parent=11 // pred_check_branch
          %180 = sbr.rel (%p178) target = $region16
        $region15: #{tpu_custom_call.1} parent=11 // pred_region
          _
        $region16: #{tpu_custom_call.1} parent=11 // pred_fallthru
          _
        // Predicated region
        $region17: #{tpu_custom_call.1} parent=11 // pred_check
          %p181 = pneg %p137
        $region18: #{tpu_custom_call.1} parent=11 // pred_check_branch
          %183 = sbr.rel (%p181) target = $region20
        $region19: #{tpu_custom_call.1} parent=11 // pred_region
          _
        $region20: #{tpu_custom_call.1} parent=11 // pred_fallthru
          _
      $region12: #{tpu_custom_call.1} parent=5 // pred_fallthru
        _
      %p184 = scmp.lt.s32.totalorder %s17, 2
      // Predicated region
      $region21: #{tpu_custom_call.1} parent=5 // pred_check
        %p185 = pneg %p184
      $region22: #{tpu_custom_call.1} parent=5 // pred_check_branch
        %187 = sbr.rel (%p185) target = $region24
      $region23: #{tpu_custom_call.1} parent=5 // pred_region
        // Predicated region
        $region25: #{tpu_custom_call.1} parent=23 // pred_check
          %p188 = pneg %p37
        $region26: #{tpu_custom_call.1} parent=23 // pred_check_branch
          %190 = sbr.rel (%p188) target = $region28
        $region27: #{tpu_custom_call.1} parent=23 // pred_region
          %s191 = smul.u32 16, %s17
          %p192 = scmp.lt.s32.totalorder %s191, 31
          %s193 = scalar_select %p192, %s191, 31
          %s194 = smul.addr %s193, 8
          %s195 = scalar_lea.vmem %s0, %s194
          %s196 = smul.u32 16, %s17
        $region28: #{tpu_custom_call.1} parent=23 // pred_fallthru
          _
        // Predicated region
        $region29: #{tpu_custom_call.1} parent=23 // pred_check
          %p197 = pneg %p63
        $region30: #{tpu_custom_call.1} parent=23 // pred_check_branch
          %199 = sbr.rel (%p197) target = $region32
        $region31: #{tpu_custom_call.1} parent=23 // pred_region
          %s200 = smul.u32 16, %s17
          %p201 = scmp.lt.s32.totalorder %s200, 31
          %s202 = scalar_select %p201, %s200, 31
          %s203 = smul.addr %s202, 8
          %s204 = scalar_lea.vmem %s1, %s203
          %s205 = smul.u32 16, %s17
        $region32: #{tpu_custom_call.1} parent=23 // pred_fallthru
          _
        // Predicated region
        $region33: #{tpu_custom_call.1} parent=23 // pred_check
          %p206 = pneg %p89
        $region34: #{tpu_custom_call.1} parent=23 // pred_check_branch
          %208 = sbr.rel (%p206) target = $region36
        $region35: #{tpu_custom_call.1} parent=23 // pred_region
          %s209 = sand.u32 %s79, 1
          %s210 = scalar_lea.sflag [#allocation3], %s209
          %s211 = sand.u32 %s79, 1
          %s212 = smul.addr %s211, 128
          %s213 = scalar_lea.vmem [#allocation2], %s212
          %s214 = smul.u32 16, %s17
          %s216 = ssub.s32 2048, 2048
          %217 = vsyncadd %s210, %s216
          %s218 = smul.addr %s214, 128
          %s219 = scalar_lea.hbm %s2, %s218
          %s220 = sshll.u32 %s213, 4
          %s221 = int_to_ptr.vmem [resolvable:$true] %s220
          %226 = dma.hbm_to_vmem [thread:$0]  %s219, 2048, %s221, %s210, 128, 128, 8
        $region36: #{tpu_custom_call.1} parent=23 // pred_fallthru
          _
      $region24: #{tpu_custom_call.1} parent=5 // pred_fallthru
        _
      %p227 = scmp.le.s32.totalorder 1, %s17
      %p228 = scmp.lt.s32.totalorder %s17, 3
      %p229 = pnand %p227, %p228
      %p230 = pneg %p229
      // Predicated region
      $region37: #{tpu_custom_call.1} parent=5 // pred_check
        _
      $region38: #{tpu_custom_call.1} parent=5 // pred_check_branch
        %232 = sbr.rel (%p229) target = $region40
      $region39: #{tpu_custom_call.1} parent=5 // pred_region
        %s233 = ssub.s32 %s17, 1
        %s234 = sand.u32 %s82, 1
        %s235 = scalar_lea.sflag [#allocation3], %s234
        %s236 = sand.u32 %s82, 1
        %s237 = smul.addr %s236, 128
        %s238 = scalar_lea.vmem [#allocation2], %s237
        // Predicated region
        $region41: #{tpu_custom_call.1} parent=39 // pred_check
          %p239 = pneg %p95
        $region42: #{tpu_custom_call.1} parent=39 // pred_check_branch
          %241 = sbr.rel (%p239) target = $region44
        $region43: #{tpu_custom_call.1} parent=39 // pred_region
          %242 = dma.done %s235, 2048
        $region44: #{tpu_custom_call.1} parent=39 // pred_fallthru
          _
        %s243 = smul.u32 16, %s22
        %p244 = scmp.lt.s32.totalorder %s243, 31
        %s245 = scalar_select %p244, %s243, 31
        %s246 = smul.addr %s245, 8
        %s247 = scalar_lea.vmem %s0, %s246
        %p248 = pneg %p43
        %p249 = pneg %p40
        %s250 = smul.u32 16, %s22
        %p251 = scmp.lt.s32.totalorder %s250, 31
        %s252 = scalar_select %p251, %s250, 31
        %s253 = smul.addr %s252, 8
        %s254 = scalar_lea.vmem %s1, %s253
        %p255 = pneg %p69
        %p256 = pneg %p66
        %s257 = sand.u32 %s82, 1
        %s258 = scalar_lea.sflag [#allocation3], %s257
        %s259 = sand.u32 %s82, 1
        %s260 = smul.addr %s259, 128
        %s261 = scalar_lea.vmem [#allocation2], %s260
        %p262 = pneg %p95
        %p263 = pneg %p92
        %p264 = pneg %p116
        %p265 = pneg %p113
        %p266 = pneg %p137
        %p267 = pneg %p134
        %p268 = pneg %p163
        %p269 = pneg %p160
        %s270 = sand.u32 %s150, 1
        %s271 = scalar_lea.sflag [#allocation4], %s270
        %s272 = sand.u32 %s150, 1
        %s273 = smul.addr %s272, 128
        %s274 = scalar_lea.vmem [#allocation5], %s273
        %s275 = smul.u32 16, %s22
        %p276 = scmp.lt.s32.totalorder %s275, 31
        %s277 = scalar_select %p276, %s275, 31
        %s278 = smul.addr %s277, 8
        %s279 = scalar_lea.vmem %s0, %s278
        %s280 = smul.u32 16, %s22
        %s281 = smul.u32 16, %s22
        %p282 = scmp.lt.s32.totalorder %s281, 31
        %s283 = scalar_select %p282, %s281, 31
        %s284 = smul.addr %s283, 8
        %s285 = scalar_lea.vmem %s1, %s284
        %s286 = smul.u32 16, %s22
        %s287 = smul.u32 16, %s22
        %s288 = smul.u32 16, %s22
        %v289 = vld [vmem:[%s285] sm:$0xff]
        %v290 = vld [vmem:[%s285 + $0x8] sm:$0xff]
        %v291 = vld [vmem:[%s285 + $0x10] sm:$0xff]
        %v292 = vld [vmem:[%s285 + $0x18] sm:$0xff]
        %v293 = vld [vmem:[%s285 + $0x20] sm:$0xff]
        %v294 = vld [vmem:[%s285 + $0x28] sm:$0xff]
        %v295 = vld [vmem:[%s285 + $0x30] sm:$0xff]
        %v296 = vld [vmem:[%s285 + $0x38] sm:$0xff]
        %v297 = vld [vmem:[%s285 + $0x40] sm:$0xff]
        %v298 = vld [vmem:[%s285 + $0x48] sm:$0xff]
        %v299 = vld [vmem:[%s285 + $0x50] sm:$0xff]
        %v300 = vld [vmem:[%s285 + $0x58] sm:$0xff]
        %v301 = vld [vmem:[%s285 + $0x60] sm:$0xff]
        %v302 = vld [vmem:[%s285 + $0x68] sm:$0xff]
        %v303 = vld [vmem:[%s285 + $0x70] sm:$0xff]
        %v304 = vld [vmem:[%s285 + $0x78] sm:$0xff]
        %v305 = vld [vmem:[%s279] sm:$0xff]
        %v306 = vld [vmem:[%s279 + $0x8] sm:$0xff]
        %v307 = vld [vmem:[%s279 + $0x10] sm:$0xff]
        %v308 = vld [vmem:[%s279 + $0x18] sm:$0xff]
        %v309 = vld [vmem:[%s279 + $0x20] sm:$0xff]
        %v310 = vld [vmem:[%s279 + $0x28] sm:$0xff]
        %v311 = vld [vmem:[%s279 + $0x30] sm:$0xff]
        %v312 = vld [vmem:[%s279 + $0x38] sm:$0xff]
        %v313 = vld [vmem:[%s279 + $0x40] sm:$0xff]
        %v314 = vld [vmem:[%s279 + $0x48] sm:$0xff]
        %v315 = vld [vmem:[%s279 + $0x50] sm:$0xff]
        %v316 = vld [vmem:[%s279 + $0x58] sm:$0xff]
        %v317 = vld [vmem:[%s279 + $0x60] sm:$0xff]
        %v318 = vld [vmem:[%s279 + $0x68] sm:$0xff]
        %v319 = vld [vmem:[%s279 + $0x70] sm:$0xff]
        %v320 = vld [vmem:[%s279 + $0x78] sm:$0xff]
        %v321 = vlaneseq
        %v322 = vand.u32 %v321, 127
        %v323 = vadd.s32 %v322, 128
        %324 = vset.pattern.permute.xlu0 0
        %325 = vperm.xlu0 %324, %v305
        %v326 = vpop.permute.xlu0 %325
        %327 = vset.pattern.permute.xlu0 0
        %328 = vperm.xlu0 %327, %v306
        %v329 = vpop.permute.xlu0 %328
        %330 = vset.pattern.permute.xlu0 0
        %331 = vperm.xlu0 %330, %v307
        %v332 = vpop.permute.xlu0 %331
        %333 = vset.pattern.permute.xlu0 0
        %334 = vperm.xlu0 %333, %v308
        %v335 = vpop.permute.xlu0 %334
        %336 = vset.pattern.permute.xlu0 0
        %337 = vperm.xlu0 %336, %v309
        %v338 = vpop.permute.xlu0 %337
        %339 = vset.pattern.permute.xlu0 0
        %340 = vperm.xlu0 %339, %v310
        %v341 = vpop.permute.xlu0 %340
        %342 = vset.pattern.permute.xlu0 0
        %343 = vperm.xlu0 %342, %v311
        %v344 = vpop.permute.xlu0 %343
        %345 = vset.pattern.permute.xlu0 0
        %346 = vperm.xlu0 %345, %v312
        %v347 = vpop.permute.xlu0 %346
        %348 = vset.pattern.permute.xlu0 0
        %349 = vperm.xlu0 %348, %v313
        %v350 = vpop.permute.xlu0 %349
        %351 = vset.pattern.permute.xlu0 0
        %352 = vperm.xlu0 %351, %v314
        %v353 = vpop.permute.xlu0 %352
        %354 = vset.pattern.permute.xlu0 0
        %355 = vperm.xlu0 %354, %v315
        %v356 = vpop.permute.xlu0 %355
        %357 = vset.pattern.permute.xlu0 0
        %358 = vperm.xlu0 %357, %v316
        %v359 = vpop.permute.xlu0 %358
        %360 = vset.pattern.permute.xlu0 0
        %361 = vperm.xlu0 %360, %v317
        %v362 = vpop.permute.xlu0 %361
        %363 = vset.pattern.permute.xlu0 0
        %364 = vperm.xlu0 %363, %v318
        %v365 = vpop.permute.xlu0 %364
        %366 = vset.pattern.permute.xlu0 0
        %367 = vperm.xlu0 %366, %v319
        %v368 = vpop.permute.xlu0 %367
        %369 = vset.pattern.permute.xlu0 0
        %370 = vperm.xlu0 %369, %v320
        %v371 = vpop.permute.xlu0 %370
        %vm372 = vcmp.eq.s32.totalorder %v322, %v326
        %vm373 = vcmp.eq.s32.totalorder %v323, %v326
        %vm374 = vcmp.eq.s32.totalorder %v322, %v329
        %vm375 = vcmp.eq.s32.totalorder %v323, %v329
        %vm376 = vcmp.eq.s32.totalorder %v322, %v332
        %vm377 = vcmp.eq.s32.totalorder %v323, %v332
        %vm378 = vcmp.eq.s32.totalorder %v322, %v335
        %vm379 = vcmp.eq.s32.totalorder %v323, %v335
        %vm380 = vcmp.eq.s32.totalorder %v322, %v338
        %vm381 = vcmp.eq.s32.totalorder %v323, %v338
        %vm382 = vcmp.eq.s32.totalorder %v322, %v341
        %vm383 = vcmp.eq.s32.totalorder %v323, %v341
        %vm384 = vcmp.eq.s32.totalorder %v322, %v344
        %vm385 = vcmp.eq.s32.totalorder %v323, %v344
        %vm386 = vcmp.eq.s32.totalorder %v322, %v347
        %vm387 = vcmp.eq.s32.totalorder %v323, %v347
        %vm388 = vcmp.eq.s32.totalorder %v322, %v350
        %vm389 = vcmp.eq.s32.totalorder %v323, %v350
        %vm390 = vcmp.eq.s32.totalorder %v322, %v353
        %vm391 = vcmp.eq.s32.totalorder %v323, %v353
        %vm392 = vcmp.eq.s32.totalorder %v322, %v356
        %vm393 = vcmp.eq.s32.totalorder %v323, %v356
        %vm394 = vcmp.eq.s32.totalorder %v322, %v359
        %vm395 = vcmp.eq.s32.totalorder %v323, %v359
        %vm396 = vcmp.eq.s32.totalorder %v322, %v362
        %vm397 = vcmp.eq.s32.totalorder %v323, %v362
        %vm398 = vcmp.eq.s32.totalorder %v322, %v365
        %vm399 = vcmp.eq.s32.totalorder %v323, %v365
        %vm400 = vcmp.eq.s32.totalorder %v322, %v368
        %vm401 = vcmp.eq.s32.totalorder %v323, %v368
        %vm402 = vcmp.eq.s32.totalorder %v322, %v371
        %vm403 = vcmp.eq.s32.totalorder %v323, %v371
        %405 = vset.pattern.permute.xlu0 0
        %406 = vperm.xlu0 %405, %v289
        %v407 = vpop.permute.xlu0 %406
        %410 = vset.pattern.permute.xlu0 0
        %411 = vperm.xlu0 %410, %v290
        %v412 = vpop.permute.xlu0 %411
        %415 = vset.pattern.permute.xlu0 0
        %416 = vperm.xlu0 %415, %v291
        %v417 = vpop.permute.xlu0 %416
        %420 = vset.pattern.permute.xlu0 0
        %421 = vperm.xlu0 %420, %v292
        %v422 = vpop.permute.xlu0 %421
        %425 = vset.pattern.permute.xlu0 0
        %426 = vperm.xlu0 %425, %v293
        %v427 = vpop.permute.xlu0 %426
        %430 = vset.pattern.permute.xlu0 0
        %431 = vperm.xlu0 %430, %v294
        %v432 = vpop.permute.xlu0 %431
        %435 = vset.pattern.permute.xlu0 0
        %436 = vperm.xlu0 %435, %v295
        %v437 = vpop.permute.xlu0 %436
        %440 = vset.pattern.permute.xlu0 0
        %441 = vperm.xlu0 %440, %v296
        %v442 = vpop.permute.xlu0 %441
        %445 = vset.pattern.permute.xlu0 0
        %446 = vperm.xlu0 %445, %v297
        %v447 = vpop.permute.xlu0 %446
        %450 = vset.pattern.permute.xlu0 0
        %451 = vperm.xlu0 %450, %v298
        %v452 = vpop.permute.xlu0 %451
        %455 = vset.pattern.permute.xlu0 0
        %456 = vperm.xlu0 %455, %v299
        %v457 = vpop.permute.xlu0 %456
        %460 = vset.pattern.permute.xlu0 0
        %461 = vperm.xlu0 %460, %v300
        %v462 = vpop.permute.xlu0 %461
        %465 = vset.pattern.permute.xlu0 0
        %466 = vperm.xlu0 %465, %v301
        %v467 = vpop.permute.xlu0 %466
        %470 = vset.pattern.permute.xlu0 0
        %471 = vperm.xlu0 %470, %v302
        %v472 = vpop.permute.xlu0 %471
        %475 = vset.pattern.permute.xlu0 0
        %476 = vperm.xlu0 %475, %v303
        %v477 = vpop.permute.xlu0 %476
        %480 = vset.pattern.permute.xlu0 0
        %481 = vperm.xlu0 %480, %v304
        %v482 = vpop.permute.xlu0 %481
        %v484 = vsel %vm372, %v407, 0.0
        %v485 = vsel %vm373, %v407, 0.0
        %v486 = vsel %vm374, %v412, 0.0
        %v487 = vsel %vm375, %v412, 0.0
        %v488 = vsel %vm376, %v417, 0.0
        %v489 = vsel %vm377, %v417, 0.0
        %v490 = vsel %vm378, %v422, 0.0
        %v491 = vsel %vm379, %v422, 0.0
        %v492 = vsel %vm380, %v427, 0.0
        %v493 = vsel %vm381, %v427, 0.0
        %v494 = vsel %vm382, %v432, 0.0
        %v495 = vsel %vm383, %v432, 0.0
        %v496 = vsel %vm384, %v437, 0.0
        %v497 = vsel %vm385, %v437, 0.0
        %v498 = vsel %vm386, %v442, 0.0
        %v499 = vsel %vm387, %v442, 0.0
        %v500 = vsel %vm388, %v447, 0.0
        %v501 = vsel %vm389, %v447, 0.0
        %v502 = vsel %vm390, %v452, 0.0
        %v503 = vsel %vm391, %v452, 0.0
        %v504 = vsel %vm392, %v457, 0.0
        %v505 = vsel %vm393, %v457, 0.0
        %v506 = vsel %vm394, %v462, 0.0
        %v507 = vsel %vm395, %v462, 0.0
        %v508 = vsel %vm396, %v467, 0.0
        %v509 = vsel %vm397, %v467, 0.0
        %v510 = vsel %vm398, %v472, 0.0
        %v511 = vsel %vm399, %v472, 0.0
        %v512 = vsel %vm400, %v477, 0.0
        %v513 = vsel %vm401, %v477, 0.0
        %v514 = vsel %vm402, %v482, 0.0
        %v515 = vsel %vm403, %v482, 0.0
        %v516 = vadd.f32 %v484, 0.0
        %v517 = vadd.f32 %v485, 0.0
        %v518 = vadd.f32 %v486, 0.0
        %v519 = vadd.f32 %v487, 0.0
        %v520 = vadd.f32 %v488, 0.0
        %v521 = vadd.f32 %v489, 0.0
        %v522 = vadd.f32 %v490, 0.0
        %v523 = vadd.f32 %v491, 0.0
        %v524 = vadd.f32 %v492, 0.0
        %v525 = vadd.f32 %v493, 0.0
        %v526 = vadd.f32 %v494, 0.0
        %v527 = vadd.f32 %v495, 0.0
        %v528 = vadd.f32 %v496, 0.0
        %v529 = vadd.f32 %v497, 0.0
        %v530 = vadd.f32 %v498, 0.0
        %v531 = vadd.f32 %v499, 0.0
        %v532 = vadd.f32 %v500, 0.0
        %v533 = vadd.f32 %v501, 0.0
        %v534 = vadd.f32 %v502, 0.0
        %v535 = vadd.f32 %v503, 0.0
        %v536 = vadd.f32 %v504, 0.0
        %v537 = vadd.f32 %v505, 0.0
        %v538 = vadd.f32 %v506, 0.0
        %v539 = vadd.f32 %v507, 0.0
        %v540 = vadd.f32 %v508, 0.0
        %v541 = vadd.f32 %v509, 0.0
        %v542 = vadd.f32 %v510, 0.0
        %v543 = vadd.f32 %v511, 0.0
        %v544 = vadd.f32 %v512, 0.0
        %v545 = vadd.f32 %v513, 0.0
        %v546 = vadd.f32 %v514, 0.0
        %v547 = vadd.f32 %v515, 0.0
        %548 = vset.pattern.permute.xlu0 1
        %549 = vperm.xlu0 %548, %v305
        %v550 = vpop.permute.xlu0 %549
        %551 = vset.pattern.permute.xlu0 1
        %552 = vperm.xlu0 %551, %v306
        %v553 = vpop.permute.xlu0 %552
        %554 = vset.pattern.permute.xlu0 1
        %555 = vperm.xlu0 %554, %v307
        %v556 = vpop.permute.xlu0 %555
        %557 = vset.pattern.permute.xlu0 1
        %558 = vperm.xlu0 %557, %v308
        %v559 = vpop.permute.xlu0 %558
        %560 = vset.pattern.permute.xlu0 1
        %561 = vperm.xlu0 %560, %v309
        %v562 = vpop.permute.xlu0 %561
        %563 = vset.pattern.permute.xlu0 1
        %564 = vperm.xlu0 %563, %v310
        %v565 = vpop.permute.xlu0 %564
        %566 = vset.pattern.permute.xlu0 1
        %567 = vperm.xlu0 %566, %v311
        %v568 = vpop.permute.xlu0 %567
        %569 = vset.pattern.permute.xlu0 1
        %570 = vperm.xlu0 %569, %v312
        %v571 = vpop.permute.xlu0 %570
        %572 = vset.pattern.permute.xlu0 1
        %573 = vperm.xlu0 %572, %v313
        %v574 = vpop.permute.xlu0 %573
        %575 = vset.pattern.permute.xlu0 1
        %576 = vperm.xlu0 %575, %v314
        %v577 = vpop.permute.xlu0 %576
        %578 = vset.pattern.permute.xlu0 1
        %579 = vperm.xlu0 %578, %v315
        %v580 = vpop.permute.xlu0 %579
        %581 = vset.pattern.permute.xlu0 1
        %582 = vperm.xlu0 %581, %v316
        %v583 = vpop.permute.xlu0 %582
        %584 = vset.pattern.permute.xlu0 1
        %585 = vperm.xlu0 %584, %v317
        %v586 = vpop.permute.xlu0 %585
        %587 = vset.pattern.permute.xlu0 1
        %588 = vperm.xlu0 %587, %v318
        %v589 = vpop.permute.xlu0 %588
        %590 = vset.pattern.permute.xlu0 1
        %591 = vperm.xlu0 %590, %v319
        %v592 = vpop.permute.xlu0 %591
        %593 = vset.pattern.permute.xlu0 1
        %594 = vperm.xlu0 %593, %v320
        %v595 = vpop.permute.xlu0 %594
        %vm596 = vcmp.eq.s32.totalorder %v322, %v550
        %vm597 = vcmp.eq.s32.totalorder %v323, %v550
        %vm598 = vcmp.eq.s32.totalorder %v322, %v553
        %vm599 = vcmp.eq.s32.totalorder %v323, %v553
        %vm600 = vcmp.eq.s32.totalorder %v322, %v556
        %vm601 = vcmp.eq.s32.totalorder %v323, %v556
        %vm602 = vcmp.eq.s32.totalorder %v322, %v559
        %vm603 = vcmp.eq.s32.totalorder %v323, %v559
        %vm604 = vcmp.eq.s32.totalorder %v322, %v562
        %vm605 = vcmp.eq.s32.totalorder %v323, %v562
        %vm606 = vcmp.eq.s32.totalorder %v322, %v565
        %vm607 = vcmp.eq.s32.totalorder %v323, %v565
        %vm608 = vcmp.eq.s32.totalorder %v322, %v568
        %vm609 = vcmp.eq.s32.totalorder %v323, %v568
        %vm610 = vcmp.eq.s32.totalorder %v322, %v571
        %vm611 = vcmp.eq.s32.totalorder %v323, %v571
        %vm612 = vcmp.eq.s32.totalorder %v322, %v574
        %vm613 = vcmp.eq.s32.totalorder %v323, %v574
        %vm614 = vcmp.eq.s32.totalorder %v322, %v577
        %vm615 = vcmp.eq.s32.totalorder %v323, %v577
        %vm616 = vcmp.eq.s32.totalorder %v322, %v580
        %vm617 = vcmp.eq.s32.totalorder %v323, %v580
        %vm618 = vcmp.eq.s32.totalorder %v322, %v583
        %vm619 = vcmp.eq.s32.totalorder %v323, %v583
        %vm620 = vcmp.eq.s32.totalorder %v322, %v586
        %vm621 = vcmp.eq.s32.totalorder %v323, %v586
        %vm622 = vcmp.eq.s32.totalorder %v322, %v589
        %vm623 = vcmp.eq.s32.totalorder %v323, %v589
        %vm624 = vcmp.eq.s32.totalorder %v322, %v592
        %vm625 = vcmp.eq.s32.totalorder %v323, %v592
        %vm626 = vcmp.eq.s32.totalorder %v322, %v595
        %vm627 = vcmp.eq.s32.totalorder %v323, %v595
        %628 = vset.pattern.permute.xlu0 1
        %629 = vperm.xlu0 %628, %v289
        %v630 = vpop.permute.xlu0 %629
        %632 = vset.pattern.permute.xlu0 1
        %633 = vperm.xlu0 %632, %v290
        %v634 = vpop.permute.xlu0 %633
        %636 = vset.pattern.permute.xlu0 1
        %637 = vperm.xlu0 %636, %v291
        %v638 = vpop.permute.xlu0 %637
        %640 = vset.pattern.permute.xlu0 1
        %641 = vperm.xlu0 %640, %v292
        %v642 = vpop.permute.xlu0 %641
        %644 = vset.pattern.permute.xlu0 1
        %645 = vperm.xlu0 %644, %v293
        %v646 = vpop.permute.xlu0 %645
        %648 = vset.pattern.permute.xlu0 1
        %649 = vperm.xlu0 %648, %v294
        %v650 = vpop.permute.xlu0 %649
        %652 = vset.pattern.permute.xlu0 1
        %653 = vperm.xlu0 %652, %v295
        %v654 = vpop.permute.xlu0 %653
        %656 = vset.pattern.permute.xlu0 1
        %657 = vperm.xlu0 %656, %v296
        %v658 = vpop.permute.xlu0 %657
        %660 = vset.pattern.permute.xlu0 1
        %661 = vperm.xlu0 %660, %v297
        %v662 = vpop.permute.xlu0 %661
        %664 = vset.pattern.permute.xlu0 1
        %665 = vperm.xlu0 %664, %v298
        %v666 = vpop.permute.xlu0 %665
        %668 = vset.pattern.permute.xlu0 1
        %669 = vperm.xlu0 %668, %v299
        %v670 = vpop.permute.xlu0 %669
        %672 = vset.pattern.permute.xlu0 1
        %673 = vperm.xlu0 %672, %v300
        %v674 = vpop.permute.xlu0 %673
        %676 = vset.pattern.permute.xlu0 1
        %677 = vperm.xlu0 %676, %v301
        %v678 = vpop.permute.xlu0 %677
        %680 = vset.pattern.permute.xlu0 1
        %681 = vperm.xlu0 %680, %v302
        %v682 = vpop.permute.xlu0 %681
        %684 = vset.pattern.permute.xlu0 1
        %685 = vperm.xlu0 %684, %v303
        %v686 = vpop.permute.xlu0 %685
        %688 = vset.pattern.permute.xlu0 1
        %689 = vperm.xlu0 %688, %v304
        %v690 = vpop.permute.xlu0 %689
        %v692 = vsel %vm596, %v630, 0.0
        %v693 = vsel %vm597, %v630, 0.0
        %v694 = vsel %vm598, %v634, 0.0
        %v695 = vsel %vm599, %v634, 0.0
        %v696 = vsel %vm600, %v638, 0.0
        %v697 = vsel %vm601, %v638, 0.0
        %v698 = vsel %vm602, %v642, 0.0
        %v699 = vsel %vm603, %v642, 0.0
        %v700 = vsel %vm604, %v646, 0.0
        %v701 = vsel %vm605, %v646, 0.0
        %v702 = vsel %vm606, %v650, 0.0
        %v703 = vsel %vm607, %v650, 0.0
        %v704 = vsel %vm608, %v654, 0.0
        %v705 = vsel %vm609, %v654, 0.0
        %v706 = vsel %vm610, %v658, 0.0
        %v707 = vsel %vm611, %v658, 0.0
        %v708 = vsel %vm612, %v662, 0.0
        %v709 = vsel %vm613, %v662, 0.0
        %v710 = vsel %vm614, %v666, 0.0
        %v711 = vsel %vm615, %v666, 0.0
        %v712 = vsel %vm616, %v670, 0.0
        %v713 = vsel %vm617, %v670, 0.0
        %v714 = vsel %vm618, %v674, 0.0
        %v715 = vsel %vm619, %v674, 0.0
        %v716 = vsel %vm620, %v678, 0.0
        %v717 = vsel %vm621, %v678, 0.0
        %v718 = vsel %vm622, %v682, 0.0
        %v719 = vsel %vm623, %v682, 0.0
        %v720 = vsel %vm624, %v686, 0.0
        %v721 = vsel %vm625, %v686, 0.0
        %v722 = vsel %vm626, %v690, 0.0
        %v723 = vsel %vm627, %v690, 0.0
        %v724 = vadd.f32 %v516, %v692
        %v725 = vadd.f32 %v517, %v693
        %v726 = vadd.f32 %v518, %v694
        %v727 = vadd.f32 %v519, %v695
        %v728 = vadd.f32 %v520, %v696
        %v729 = vadd.f32 %v521, %v697
        %v730 = vadd.f32 %v522, %v698
        %v731 = vadd.f32 %v523, %v699
        %v732 = vadd.f32 %v524, %v700
        %v733 = vadd.f32 %v525, %v701
        %v734 = vadd.f32 %v526, %v702
        %v735 = vadd.f32 %v527, %v703
        %v736 = vadd.f32 %v528, %v704
        %v737 = vadd.f32 %v529, %v705
        %v738 = vadd.f32 %v530, %v706
        %v739 = vadd.f32 %v531, %v707
        %v740 = vadd.f32 %v532, %v708
        %v741 = vadd.f32 %v533, %v709
        %v742 = vadd.f32 %v534, %v710
        %v743 = vadd.f32 %v535, %v711
        %v744 = vadd.f32 %v536, %v712
        %v745 = vadd.f32 %v537, %v713
        %v746 = vadd.f32 %v538, %v714
        %v747 = vadd.f32 %v539, %v715
        %v748 = vadd.f32 %v540, %v716
        %v749 = vadd.f32 %v541, %v717
        %v750 = vadd.f32 %v542, %v718
        %v751 = vadd.f32 %v543, %v719
        %v752 = vadd.f32 %v544, %v720
        %v753 = vadd.f32 %v545, %v721
        %v754 = vadd.f32 %v546, %v722
        %v755 = vadd.f32 %v547, %v723
        %756 = vset.pattern.permute.xlu0 2
        %757 = vperm.xlu0 %756, %v305
        %v758 = vpop.permute.xlu0 %757
        %759 = vset.pattern.permute.xlu0 2
        %760 = vperm.xlu0 %759, %v306
        %v761 = vpop.permute.xlu0 %760
        %762 = vset.pattern.permute.xlu0 2
        %763 = vperm.xlu0 %762, %v307
        %v764 = vpop.permute.xlu0 %763
        %765 = vset.pattern.permute.xlu0 2
        %766 = vperm.xlu0 %765, %v308
        %v767 = vpop.permute.xlu0 %766
        %768 = vset.pattern.permute.xlu0 2
        %769 = vperm.xlu0 %768, %v309
        %v770 = vpop.permute.xlu0 %769
        %771 = vset.pattern.permute.xlu0 2
        %772 = vperm.xlu0 %771, %v310
        %v773 = vpop.permute.xlu0 %772
        %774 = vset.pattern.permute.xlu0 2
        %775 = vperm.xlu0 %774, %v311
        %v776 = vpop.permute.xlu0 %775
        %777 = vset.pattern.permute.xlu0 2
        %778 = vperm.xlu0 %777, %v312
        %v779 = vpop.permute.xlu0 %778
        %780 = vset.pattern.permute.xlu0 2
        %781 = vperm.xlu0 %780, %v313
        %v782 = vpop.permute.xlu0 %781
        %783 = vset.pattern.permute.xlu0 2
        %784 = vperm.xlu0 %783, %v314
        %v785 = vpop.permute.xlu0 %784
        %786 = vset.pattern.permute.xlu0 2
        %787 = vperm.xlu0 %786, %v315
        %v788 = vpop.permute.xlu0 %787
        %789 = vset.pattern.permute.xlu0 2
        %790 = vperm.xlu0 %789, %v316
        %v791 = vpop.permute.xlu0 %790
        %792 = vset.pattern.permute.xlu0 2
        %793 = vperm.xlu0 %792, %v317
        %v794 = vpop.permute.xlu0 %793
        %795 = vset.pattern.permute.xlu0 2
        %796 = vperm.xlu0 %795, %v318
        %v797 = vpop.permute.xlu0 %796
        %798 = vset.pattern.permute.xlu0 2
        %799 = vperm.xlu0 %798, %v319
        %v800 = vpop.permute.xlu0 %799
        %801 = vset.pattern.permute.xlu0 2
        %802 = vperm.xlu0 %801, %v320
        %v803 = vpop.permute.xlu0 %802
        %vm804 = vcmp.eq.s32.totalorder %v322, %v758
        %vm805 = vcmp.eq.s32.totalorder %v323, %v758
        %vm806 = vcmp.eq.s32.totalorder %v322, %v761
        %vm807 = vcmp.eq.s32.totalorder %v323, %v761
        %vm808 = vcmp.eq.s32.totalorder %v322, %v764
        %vm809 = vcmp.eq.s32.totalorder %v323, %v764
        %vm810 = vcmp.eq.s32.totalorder %v322, %v767
        %vm811 = vcmp.eq.s32.totalorder %v323, %v767
        %vm812 = vcmp.eq.s32.totalorder %v322, %v770
        %vm813 = vcmp.eq.s32.totalorder %v323, %v770
        %vm814 = vcmp.eq.s32.totalorder %v322, %v773
        %vm815 = vcmp.eq.s32.totalorder %v323, %v773
        %vm816 = vcmp.eq.s32.totalorder %v322, %v776
        %vm817 = vcmp.eq.s32.totalorder %v323, %v776
        %vm818 = vcmp.eq.s32.totalorder %v322, %v779
        %vm819 = vcmp.eq.s32.totalorder %v323, %v779
        %vm820 = vcmp.eq.s32.totalorder %v322, %v782
        %vm821 = vcmp.eq.s32.totalorder %v323, %v782
        %vm822 = vcmp.eq.s32.totalorder %v322, %v785
        %vm823 = vcmp.eq.s32.totalorder %v323, %v785
        %vm824 = vcmp.eq.s32.totalorder %v322, %v788
        %vm825 = vcmp.eq.s32.totalorder %v323, %v788
        %vm826 = vcmp.eq.s32.totalorder %v322, %v791
        %vm827 = vcmp.eq.s32.totalorder %v323, %v791
        %vm828 = vcmp.eq.s32.totalorder %v322, %v794
        %vm829 = vcmp.eq.s32.totalorder %v323, %v794
        %vm830 = vcmp.eq.s32.totalorder %v322, %v797
        %vm831 = vcmp.eq.s32.totalorder %v323, %v797
        %vm832 = vcmp.eq.s32.totalorder %v322, %v800
        %vm833 = vcmp.eq.s32.totalorder %v323, %v800
        %vm834 = vcmp.eq.s32.totalorder %v322, %v803
        %vm835 = vcmp.eq.s32.totalorder %v323, %v803
        %836 = vset.pattern.permute.xlu0 2
        %837 = vperm.xlu0 %836, %v289
        %v838 = vpop.permute.xlu0 %837
        %840 = vset.pattern.permute.xlu0 2
        %841 = vperm.xlu0 %840, %v290
        %v842 = vpop.permute.xlu0 %841
        %844 = vset.pattern.permute.xlu0 2
        %845 = vperm.xlu0 %844, %v291
        %v846 = vpop.permute.xlu0 %845
        %848 = vset.pattern.permute.xlu0 2
        %849 = vperm.xlu0 %848, %v292
        %v850 = vpop.permute.xlu0 %849
        %852 = vset.pattern.permute.xlu0 2
        %853 = vperm.xlu0 %852, %v293
        %v854 = vpop.permute.xlu0 %853
        %856 = vset.pattern.permute.xlu0 2
        %857 = vperm.xlu0 %856, %v294
        %v858 = vpop.permute.xlu0 %857
        %860 = vset.pattern.permute.xlu0 2
        %861 = vperm.xlu0 %860, %v295
        %v862 = vpop.permute.xlu0 %861
        %864 = vset.pattern.permute.xlu0 2
        %865 = vperm.xlu0 %864, %v296
        %v866 = vpop.permute.xlu0 %865
        %868 = vset.pattern.permute.xlu0 2
        %869 = vperm.xlu0 %868, %v297
        %v870 = vpop.permute.xlu0 %869
        %872 = vset.pattern.permute.xlu0 2
        %873 = vperm.xlu0 %872, %v298
        %v874 = vpop.permute.xlu0 %873
        %876 = vset.pattern.permute.xlu0 2
        %877 = vperm.xlu0 %876, %v299
        %v878 = vpop.permute.xlu0 %877
        %880 = vset.pattern.permute.xlu0 2
        %881 = vperm.xlu0 %880, %v300
        %v882 = vpop.permute.xlu0 %881
        %884 = vset.pattern.permute.xlu0 2
        %885 = vperm.xlu0 %884, %v301
        %v886 = vpop.permute.xlu0 %885
        %888 = vset.pattern.permute.xlu0 2
        %889 = vperm.xlu0 %888, %v302
        %v890 = vpop.permute.xlu0 %889
        %892 = vset.pattern.permute.xlu0 2
        %893 = vperm.xlu0 %892, %v303
        %v894 = vpop.permute.xlu0 %893
        %896 = vset.pattern.permute.xlu0 2
        %897 = vperm.xlu0 %896, %v304
        %v898 = vpop.permute.xlu0 %897
        %v900 = vsel %vm804, %v838, 0.0
        %v901 = vsel %vm805, %v838, 0.0
        %v902 = vsel %vm806, %v842, 0.0
        %v903 = vsel %vm807, %v842, 0.0
        %v904 = vsel %vm808, %v846, 0.0
        %v905 = vsel %vm809, %v846, 0.0
        %v906 = vsel %vm810, %v850, 0.0
        %v907 = vsel %vm811, %v850, 0.0
        %v908 = vsel %vm812, %v854, 0.0
        %v909 = vsel %vm813, %v854, 0.0
        %v910 = vsel %vm814, %v858, 0.0
        %v911 = vsel %vm815, %v858, 0.0
        %v912 = vsel %vm816, %v862, 0.0
        %v913 = vsel %vm817, %v862, 0.0
        %v914 = vsel %vm818, %v866, 0.0
        %v915 = vsel %vm819, %v866, 0.0
        %v916 = vsel %vm820, %v870, 0.0
        %v917 = vsel %vm821, %v870, 0.0
        %v918 = vsel %vm822, %v874, 0.0
        %v919 = vsel %vm823, %v874, 0.0
        %v920 = vsel %vm824, %v878, 0.0
        %v921 = vsel %vm825, %v878, 0.0
        %v922 = vsel %vm826, %v882, 0.0
        %v923 = vsel %vm827, %v882, 0.0
        %v924 = vsel %vm828, %v886, 0.0
        %v925 = vsel %vm829, %v886, 0.0
        %v926 = vsel %vm830, %v890, 0.0
        %v927 = vsel %vm831, %v890, 0.0
        %v928 = vsel %vm832, %v894, 0.0
        %v929 = vsel %vm833, %v894, 0.0
        %v930 = vsel %vm834, %v898, 0.0
        %v931 = vsel %vm835, %v898, 0.0
        %v932 = vadd.f32 %v724, %v900
        %v933 = vadd.f32 %v725, %v901
        %v934 = vadd.f32 %v726, %v902
        %v935 = vadd.f32 %v727, %v903
        %v936 = vadd.f32 %v728, %v904
        %v937 = vadd.f32 %v729, %v905
        %v938 = vadd.f32 %v730, %v906
        %v939 = vadd.f32 %v731, %v907
        %v940 = vadd.f32 %v732, %v908
        %v941 = vadd.f32 %v733, %v909
        %v942 = vadd.f32 %v734, %v910
        %v943 = vadd.f32 %v735, %v911
        %v944 = vadd.f32 %v736, %v912
        %v945 = vadd.f32 %v737, %v913
        %v946 = vadd.f32 %v738, %v914
        %v947 = vadd.f32 %v739, %v915
        %v948 = vadd.f32 %v740, %v916
        %v949 = vadd.f32 %v741, %v917
        %v950 = vadd.f32 %v742, %v918
        %v951 = vadd.f32 %v743, %v919
        %v952 = vadd.f32 %v744, %v920
        %v953 = vadd.f32 %v745, %v921
        %v954 = vadd.f32 %v746, %v922
        %v955 = vadd.f32 %v747, %v923
        %v956 = vadd.f32 %v748, %v924
        %v957 = vadd.f32 %v749, %v925
        %v958 = vadd.f32 %v750, %v926
        %v959 = vadd.f32 %v751, %v927
        %v960 = vadd.f32 %v752, %v928
        %v961 = vadd.f32 %v753, %v929
        %v962 = vadd.f32 %v754, %v930
        %v963 = vadd.f32 %v755, %v931
        %964 = vset.pattern.permute.xlu0 3
        %965 = vperm.xlu0 %964, %v305
        %v966 = vpop.permute.xlu0 %965
        %967 = vset.pattern.permute.xlu0 3
        %968 = vperm.xlu0 %967, %v306
        %v969 = vpop.permute.xlu0 %968
        %970 = vset.pattern.permute.xlu0 3
        %971 = vperm.xlu0 %970, %v307
        %v972 = vpop.permute.xlu0 %971
        %973 = vset.pattern.permute.xlu0 3
        %974 = vperm.xlu0 %973, %v308
        %v975 = vpop.permute.xlu0 %974
        %976 = vset.pattern.permute.xlu0 3
        %977 = vperm.xlu0 %976, %v309
        %v978 = vpop.permute.xlu0 %977
        %979 = vset.pattern.permute.xlu0 3
        %980 = vperm.xlu0 %979, %v310
        %v981 = vpop.permute.xlu0 %980
        %982 = vset.pattern.permute.xlu0 3
        %983 = vperm.xlu0 %982, %v311
        %v984 = vpop.permute.xlu0 %983
        %985 = vset.pattern.permute.xlu0 3
        %986 = vperm.xlu0 %985, %v312
        %v987 = vpop.permute.xlu0 %986
        %988 = vset.pattern.permute.xlu0 3
        %989 = vperm.xlu0 %988, %v313
        %v990 = vpop.permute.xlu0 %989
        %991 = vset.pattern.permute.xlu0 3
        %992 = vperm.xlu0 %991, %v314
        %v993 = vpop.permute.xlu0 %992
        %994 = vset.pattern.permute.xlu0 3
        %995 = vperm.xlu0 %994, %v315
        %v996 = vpop.permute.xlu0 %995
        %997 = vset.pattern.permute.xlu0 3
        %998 = vperm.xlu0 %997, %v316
        %v999 = vpop.permute.xlu0 %998
        %1000 = vset.pattern.permute.xlu0 3
        %1001 = vperm.xlu0 %1000, %v317
        %v1002 = vpop.permute.xlu0 %1001
        %1003 = vset.pattern.permute.xlu0 3
        %1004 = vperm.xlu0 %1003, %v318
        %v1005 = vpop.permute.xlu0 %1004
        %1006 = vset.pattern.permute.xlu0 3
        %1007 = vperm.xlu0 %1006, %v319
        %v1008 = vpop.permute.xlu0 %1007
        %1009 = vset.pattern.permute.xlu0 3
        %1010 = vperm.xlu0 %1009, %v320
        %v1011 = vpop.permute.xlu0 %1010
        %vm1012 = vcmp.eq.s32.totalorder %v322, %v966
        %vm1013 = vcmp.eq.s32.totalorder %v323, %v966
        %vm1014 = vcmp.eq.s32.totalorder %v322, %v969
        %vm1015 = vcmp.eq.s32.totalorder %v323, %v969
        %vm1016 = vcmp.eq.s32.totalorder %v322, %v972
        %vm1017 = vcmp.eq.s32.totalorder %v323, %v972
        %vm1018 = vcmp.eq.s32.totalorder %v322, %v975
        %vm1019 = vcmp.eq.s32.totalorder %v323, %v975
        %vm1020 = vcmp.eq.s32.totalorder %v322, %v978
        %vm1021 = vcmp.eq.s32.totalorder %v323, %v978
        %vm1022 = vcmp.eq.s32.totalorder %v322, %v981
        %vm1023 = vcmp.eq.s32.totalorder %v323, %v981
        %vm1024 = vcmp.eq.s32.totalorder %v322, %v984
        %vm1025 = vcmp.eq.s32.totalorder %v323, %v984
        %vm1026 = vcmp.eq.s32.totalorder %v322, %v987
        %vm1027 = vcmp.eq.s32.totalorder %v323, %v987
        %vm1028 = vcmp.eq.s32.totalorder %v322, %v990
        %vm1029 = vcmp.eq.s32.totalorder %v323, %v990
        %vm1030 = vcmp.eq.s32.totalorder %v322, %v993
        %vm1031 = vcmp.eq.s32.totalorder %v323, %v993
        %vm1032 = vcmp.eq.s32.totalorder %v322, %v996
        %vm1033 = vcmp.eq.s32.totalorder %v323, %v996
        %vm1034 = vcmp.eq.s32.totalorder %v322, %v999
        %vm1035 = vcmp.eq.s32.totalorder %v323, %v999
        %vm1036 = vcmp.eq.s32.totalorder %v322, %v1002
        %vm1037 = vcmp.eq.s32.totalorder %v323, %v1002
        %vm1038 = vcmp.eq.s32.totalorder %v322, %v1005
        %vm1039 = vcmp.eq.s32.totalorder %v323, %v1005
        %vm1040 = vcmp.eq.s32.totalorder %v322, %v1008
        %vm1041 = vcmp.eq.s32.totalorder %v323, %v1008
        %vm1042 = vcmp.eq.s32.totalorder %v322, %v1011
        %vm1043 = vcmp.eq.s32.totalorder %v323, %v1011
        %1044 = vset.pattern.permute.xlu0 3
        %1045 = vperm.xlu0 %1044, %v289
        %v1046 = vpop.permute.xlu0 %1045
        %1048 = vset.pattern.permute.xlu0 3
        %1049 = vperm.xlu0 %1048, %v290
        %v1050 = vpop.permute.xlu0 %1049
        %1052 = vset.pattern.permute.xlu0 3
        %1053 = vperm.xlu0 %1052, %v291
        %v1054 = vpop.permute.xlu0 %1053
        %1056 = vset.pattern.permute.xlu0 3
        %1057 = vperm.xlu0 %1056, %v292
        %v1058 = vpop.permute.xlu0 %1057
        %1060 = vset.pattern.permute.xlu0 3
        %1061 = vperm.xlu0 %1060, %v293
        %v1062 = vpop.permute.xlu0 %1061
        %1064 = vset.pattern.permute.xlu0 3
        %1065 = vperm.xlu0 %1064, %v294
        %v1066 = vpop.permute.xlu0 %1065
        %1068 = vset.pattern.permute.xlu0 3
        %1069 = vperm.xlu0 %1068, %v295
        %v1070 = vpop.permute.xlu0 %1069
        %1072 = vset.pattern.permute.xlu0 3
        %1073 = vperm.xlu0 %1072, %v296
        %v1074 = vpop.permute.xlu0 %1073
        %1076 = vset.pattern.permute.xlu0 3
        %1077 = vperm.xlu0 %1076, %v297
        %v1078 = vpop.permute.xlu0 %1077
        %1080 = vset.pattern.permute.xlu0 3
        %1081 = vperm.xlu0 %1080, %v298
        %v1082 = vpop.permute.xlu0 %1081
        %1084 = vset.pattern.permute.xlu0 3
        %1085 = vperm.xlu0 %1084, %v299
        %v1086 = vpop.permute.xlu0 %1085
        %1088 = vset.pattern.permute.xlu0 3
        %1089 = vperm.xlu0 %1088, %v300
        %v1090 = vpop.permute.xlu0 %1089
        %1092 = vset.pattern.permute.xlu0 3
        %1093 = vperm.xlu0 %1092, %v301
        %v1094 = vpop.permute.xlu0 %1093
        %1096 = vset.pattern.permute.xlu0 3
        %1097 = vperm.xlu0 %1096, %v302
        %v1098 = vpop.permute.xlu0 %1097
        %1100 = vset.pattern.permute.xlu0 3
        %1101 = vperm.xlu0 %1100, %v303
        %v1102 = vpop.permute.xlu0 %1101
        %1104 = vset.pattern.permute.xlu0 3
        %1105 = vperm.xlu0 %1104, %v304
        %v1106 = vpop.permute.xlu0 %1105
        %v1108 = vsel %vm1012, %v1046, 0.0
        %v1109 = vsel %vm1013, %v1046, 0.0
        %v1110 = vsel %vm1014, %v1050, 0.0
        %v1111 = vsel %vm1015, %v1050, 0.0
        %v1112 = vsel %vm1016, %v1054, 0.0
        %v1113 = vsel %vm1017, %v1054, 0.0
        %v1114 = vsel %vm1018, %v1058, 0.0
        %v1115 = vsel %vm1019, %v1058, 0.0
        %v1116 = vsel %vm1020, %v1062, 0.0
        %v1117 = vsel %vm1021, %v1062, 0.0
        %v1118 = vsel %vm1022, %v1066, 0.0
        %v1119 = vsel %vm1023, %v1066, 0.0
        %v1120 = vsel %vm1024, %v1070, 0.0
        %v1121 = vsel %vm1025, %v1070, 0.0
        %v1122 = vsel %vm1026, %v1074, 0.0
        %v1123 = vsel %vm1027, %v1074, 0.0
        %v1124 = vsel %vm1028, %v1078, 0.0
        %v1125 = vsel %vm1029, %v1078, 0.0
        %v1126 = vsel %vm1030, %v1082, 0.0
        %v1127 = vsel %vm1031, %v1082, 0.0
        %v1128 = vsel %vm1032, %v1086, 0.0
        %v1129 = vsel %vm1033, %v1086, 0.0
        %v1130 = vsel %vm1034, %v1090, 0.0
        %v1131 = vsel %vm1035, %v1090, 0.0
        %v1132 = vsel %vm1036, %v1094, 0.0
        %v1133 = vsel %vm1037, %v1094, 0.0
        %v1134 = vsel %vm1038, %v1098, 0.0
        %v1135 = vsel %vm1039, %v1098, 0.0
        %v1136 = vsel %vm1040, %v1102, 0.0
        %v1137 = vsel %vm1041, %v1102, 0.0
        %v1138 = vsel %vm1042, %v1106, 0.0
        %v1139 = vsel %vm1043, %v1106, 0.0
        %v1140 = vadd.f32 %v932, %v1108
        %v1141 = vadd.f32 %v933, %v1109
        %v1142 = vadd.f32 %v934, %v1110
        %v1143 = vadd.f32 %v935, %v1111
        %v1144 = vadd.f32 %v936, %v1112
        %v1145 = vadd.f32 %v937, %v1113
        %v1146 = vadd.f32 %v938, %v1114
        %v1147 = vadd.f32 %v939, %v1115
        %v1148 = vadd.f32 %v940, %v1116
        %v1149 = vadd.f32 %v941, %v1117
        %v1150 = vadd.f32 %v942, %v1118
        %v1151 = vadd.f32 %v943, %v1119
        %v1152 = vadd.f32 %v944, %v1120
        %v1153 = vadd.f32 %v945, %v1121
        %v1154 = vadd.f32 %v946, %v1122
        %v1155 = vadd.f32 %v947, %v1123
        %v1156 = vadd.f32 %v948, %v1124
        %v1157 = vadd.f32 %v949, %v1125
        %v1158 = vadd.f32 %v950, %v1126
        %v1159 = vadd.f32 %v951, %v1127
        %v1160 = vadd.f32 %v952, %v1128
        %v1161 = vadd.f32 %v953, %v1129
        %v1162 = vadd.f32 %v954, %v1130
        %v1163 = vadd.f32 %v955, %v1131
        %v1164 = vadd.f32 %v956, %v1132
        %v1165 = vadd.f32 %v957, %v1133
        %v1166 = vadd.f32 %v958, %v1134
        %v1167 = vadd.f32 %v959, %v1135
        %v1168 = vadd.f32 %v960, %v1136
        %v1169 = vadd.f32 %v961, %v1137
        %v1170 = vadd.f32 %v962, %v1138
        %v1171 = vadd.f32 %v963, %v1139
        %1172 = vset.pattern.permute.xlu0 4
        %1173 = vperm.xlu0 %1172, %v305
        %v1174 = vpop.permute.xlu0 %1173
        %1175 = vset.pattern.permute.xlu0 4
        %1176 = vperm.xlu0 %1175, %v306
        %v1177 = vpop.permute.xlu0 %1176
        %1178 = vset.pattern.permute.xlu0 4
        %1179 = vperm.xlu0 %1178, %v307
        %v1180 = vpop.permute.xlu0 %1179
        %1181 = vset.pattern.permute.xlu0 4
        %1182 = vperm.xlu0 %1181, %v308
        %v1183 = vpop.permute.xlu0 %1182
        %1184 = vset.pattern.permute.xlu0 4
        %1185 = vperm.xlu0 %1184, %v309
        %v1186 = vpop.permute.xlu0 %1185
        %1187 = vset.pattern.permute.xlu0 4
        %1188 = vperm.xlu0 %1187, %v310
        %v1189 = vpop.permute.xlu0 %1188
        %1190 = vset.pattern.permute.xlu0 4
        %1191 = vperm.xlu0 %1190, %v311
        %v1192 = vpop.permute.xlu0 %1191
        %1193 = vset.pattern.permute.xlu0 4
        %1194 = vperm.xlu0 %1193, %v312
        %v1195 = vpop.permute.xlu0 %1194
        %1196 = vset.pattern.permute.xlu0 4
        %1197 = vperm.xlu0 %1196, %v313
        %v1198 = vpop.permute.xlu0 %1197
        %1199 = vset.pattern.permute.xlu0 4
        %1200 = vperm.xlu0 %1199, %v314
        %v1201 = vpop.permute.xlu0 %1200
        %1202 = vset.pattern.permute.xlu0 4
        %1203 = vperm.xlu0 %1202, %v315
        %v1204 = vpop.permute.xlu0 %1203
        %1205 = vset.pattern.permute.xlu0 4
        %1206 = vperm.xlu0 %1205, %v316
        %v1207 = vpop.permute.xlu0 %1206
        %1208 = vset.pattern.permute.xlu0 4
        %1209 = vperm.xlu0 %1208, %v317
        %v1210 = vpop.permute.xlu0 %1209
        %1211 = vset.pattern.permute.xlu0 4
        %1212 = vperm.xlu0 %1211, %v318
        %v1213 = vpop.permute.xlu0 %1212
        %1214 = vset.pattern.permute.xlu0 4
        %1215 = vperm.xlu0 %1214, %v319
        %v1216 = vpop.permute.xlu0 %1215
        %1217 = vset.pattern.permute.xlu0 4
        %1218 = vperm.xlu0 %1217, %v320
        %v1219 = vpop.permute.xlu0 %1218
        %vm1220 = vcmp.eq.s32.totalorder %v322, %v1174
        %vm1221 = vcmp.eq.s32.totalorder %v323, %v1174
        %vm1222 = vcmp.eq.s32.totalorder %v322, %v1177
        %vm1223 = vcmp.eq.s32.totalorder %v323, %v1177
        %vm1224 = vcmp.eq.s32.totalorder %v322, %v1180
        %vm1225 = vcmp.eq.s32.totalorder %v323, %v1180
        %vm1226 = vcmp.eq.s32.totalorder %v322, %v1183
        %vm1227 = vcmp.eq.s32.totalorder %v323, %v1183
        %vm1228 = vcmp.eq.s32.totalorder %v322, %v1186
        %vm1229 = vcmp.eq.s32.totalorder %v323, %v1186
        %vm1230 = vcmp.eq.s32.totalorder %v322, %v1189
        %vm1231 = vcmp.eq.s32.totalorder %v323, %v1189
        %vm1232 = vcmp.eq.s32.totalorder %v322, %v1192
        %vm1233 = vcmp.eq.s32.totalorder %v323, %v1192
        %vm1234 = vcmp.eq.s32.totalorder %v322, %v1195
        %vm1235 = vcmp.eq.s32.totalorder %v323, %v1195
        %vm1236 = vcmp.eq.s32.totalorder %v322, %v1198
        %vm1237 = vcmp.eq.s32.totalorder %v323, %v1198
        %vm1238 = vcmp.eq.s32.totalorder %v322, %v1201
        %vm1239 = vcmp.eq.s32.totalorder %v323, %v1201
        %vm1240 = vcmp.eq.s32.totalorder %v322, %v1204
        %vm1241 = vcmp.eq.s32.totalorder %v323, %v1204
        %vm1242 = vcmp.eq.s32.totalorder %v322, %v1207
        %vm1243 = vcmp.eq.s32.totalorder %v323, %v1207
        %vm1244 = vcmp.eq.s32.totalorder %v322, %v1210
        %vm1245 = vcmp.eq.s32.totalorder %v323, %v1210
        %vm1246 = vcmp.eq.s32.totalorder %v322, %v1213
        %vm1247 = vcmp.eq.s32.totalorder %v323, %v1213
        %vm1248 = vcmp.eq.s32.totalorder %v322, %v1216
        %vm1249 = vcmp.eq.s32.totalorder %v323, %v1216
        %vm1250 = vcmp.eq.s32.totalorder %v322, %v1219
        %vm1251 = vcmp.eq.s32.totalorder %v323, %v1219
        %1252 = vset.pattern.permute.xlu0 4
        %1253 = vperm.xlu0 %1252, %v289
        %v1254 = vpop.permute.xlu0 %1253
        %1256 = vset.pattern.permute.xlu0 4
        %1257 = vperm.xlu0 %1256, %v290
        %v1258 = vpop.permute.xlu0 %1257
        %1260 = vset.pattern.permute.xlu0 4
        %1261 = vperm.xlu0 %1260, %v291
        %v1262 = vpop.permute.xlu0 %1261
        %1264 = vset.pattern.permute.xlu0 4
        %1265 = vperm.xlu0 %1264, %v292
        %v1266 = vpop.permute.xlu0 %1265
        %1268 = vset.pattern.permute.xlu0 4
        %1269 = vperm.xlu0 %1268, %v293
        %v1270 = vpop.permute.xlu0 %1269
        %1272 = vset.pattern.permute.xlu0 4
        %1273 = vperm.xlu0 %1272, %v294
        %v1274 = vpop.permute.xlu0 %1273
        %1276 = vset.pattern.permute.xlu0 4
        %1277 = vperm.xlu0 %1276, %v295
        %v1278 = vpop.permute.xlu0 %1277
        %1280 = vset.pattern.permute.xlu0 4
        %1281 = vperm.xlu0 %1280, %v296
        %v1282 = vpop.permute.xlu0 %1281
        %1284 = vset.pattern.permute.xlu0 4
        %1285 = vperm.xlu0 %1284, %v297
        %v1286 = vpop.permute.xlu0 %1285
        %1288 = vset.pattern.permute.xlu0 4
        %1289 = vperm.xlu0 %1288, %v298
        %v1290 = vpop.permute.xlu0 %1289
        %1292 = vset.pattern.permute.xlu0 4
        %1293 = vperm.xlu0 %1292, %v299
        %v1294 = vpop.permute.xlu0 %1293
        %1296 = vset.pattern.permute.xlu0 4
        %1297 = vperm.xlu0 %1296, %v300
        %v1298 = vpop.permute.xlu0 %1297
        %1300 = vset.pattern.permute.xlu0 4
        %1301 = vperm.xlu0 %1300, %v301
        %v1302 = vpop.permute.xlu0 %1301
        %1304 = vset.pattern.permute.xlu0 4
        %1305 = vperm.xlu0 %1304, %v302
        %v1306 = vpop.permute.xlu0 %1305
        %1308 = vset.pattern.permute.xlu0 4
        %1309 = vperm.xlu0 %1308, %v303
        %v1310 = vpop.permute.xlu0 %1309
        %1312 = vset.pattern.permute.xlu0 4
        %1313 = vperm.xlu0 %1312, %v304
        %v1314 = vpop.permute.xlu0 %1313
        %v1316 = vsel %vm1220, %v1254, 0.0
        %v1317 = vsel %vm1221, %v1254, 0.0
        %v1318 = vsel %vm1222, %v1258, 0.0
        %v1319 = vsel %vm1223, %v1258, 0.0
        %v1320 = vsel %vm1224, %v1262, 0.0
        %v1321 = vsel %vm1225, %v1262, 0.0
        %v1322 = vsel %vm1226, %v1266, 0.0
        %v1323 = vsel %vm1227, %v1266, 0.0
        %v1324 = vsel %vm1228, %v1270, 0.0
        %v1325 = vsel %vm1229, %v1270, 0.0
        %v1326 = vsel %vm1230, %v1274, 0.0
        %v1327 = vsel %vm1231, %v1274, 0.0
        %v1328 = vsel %vm1232, %v1278, 0.0
        %v1329 = vsel %vm1233, %v1278, 0.0
        %v1330 = vsel %vm1234, %v1282, 0.0
        %v1331 = vsel %vm1235, %v1282, 0.0
        %v1332 = vsel %vm1236, %v1286, 0.0
        %v1333 = vsel %vm1237, %v1286, 0.0
        %v1334 = vsel %vm1238, %v1290, 0.0
        %v1335 = vsel %vm1239, %v1290, 0.0
        %v1336 = vsel %vm1240, %v1294, 0.0
        %v1337 = vsel %vm1241, %v1294, 0.0
        %v1338 = vsel %vm1242, %v1298, 0.0
        %v1339 = vsel %vm1243, %v1298, 0.0
        %v1340 = vsel %vm1244, %v1302, 0.0
        %v1341 = vsel %vm1245, %v1302, 0.0
        %v1342 = vsel %vm1246, %v1306, 0.0
        %v1343 = vsel %vm1247, %v1306, 0.0
        %v1344 = vsel %vm1248, %v1310, 0.0
        %v1345 = vsel %vm1249, %v1310, 0.0
        %v1346 = vsel %vm1250, %v1314, 0.0
        %v1347 = vsel %vm1251, %v1314, 0.0
        %v1348 = vadd.f32 %v1140, %v1316
        %v1349 = vadd.f32 %v1141, %v1317
        %v1350 = vadd.f32 %v1142, %v1318
        %v1351 = vadd.f32 %v1143, %v1319
        %v1352 = vadd.f32 %v1144, %v1320
        %v1353 = vadd.f32 %v1145, %v1321
        %v1354 = vadd.f32 %v1146, %v1322
        %v1355 = vadd.f32 %v1147, %v1323
        %v1356 = vadd.f32 %v1148, %v1324
        %v1357 = vadd.f32 %v1149, %v1325
        %v1358 = vadd.f32 %v1150, %v1326
        %v1359 = vadd.f32 %v1151, %v1327
        %v1360 = vadd.f32 %v1152, %v1328
        %v1361 = vadd.f32 %v1153, %v1329
        %v1362 = vadd.f32 %v1154, %v1330
        %v1363 = vadd.f32 %v1155, %v1331
        %v1364 = vadd.f32 %v1156, %v1332
        %v1365 = vadd.f32 %v1157, %v1333
        %v1366 = vadd.f32 %v1158, %v1334
        %v1367 = vadd.f32 %v1159, %v1335
        %v1368 = vadd.f32 %v1160, %v1336
        %v1369 = vadd.f32 %v1161, %v1337
        %v1370 = vadd.f32 %v1162, %v1338
        %v1371 = vadd.f32 %v1163, %v1339
        %v1372 = vadd.f32 %v1164, %v1340
        %v1373 = vadd.f32 %v1165, %v1341
        %v1374 = vadd.f32 %v1166, %v1342
        %v1375 = vadd.f32 %v1167, %v1343
        %v1376 = vadd.f32 %v1168, %v1344
        %v1377 = vadd.f32 %v1169, %v1345
        %v1378 = vadd.f32 %v1170, %v1346
        %v1379 = vadd.f32 %v1171, %v1347
        %1380 = vset.pattern.permute.xlu0 5
        %1381 = vperm.xlu0 %1380, %v305
        %v1382 = vpop.permute.xlu0 %1381
        %1383 = vset.pattern.permute.xlu0 5
        %1384 = vperm.xlu0 %1383, %v306
        %v1385 = vpop.permute.xlu0 %1384
        %1386 = vset.pattern.permute.xlu0 5
        %1387 = vperm.xlu0 %1386, %v307
        %v1388 = vpop.permute.xlu0 %1387
        %1389 = vset.pattern.permute.xlu0 5
        %1390 = vperm.xlu0 %1389, %v308
        %v1391 = vpop.permute.xlu0 %1390
        %1392 = vset.pattern.permute.xlu0 5
        %1393 = vperm.xlu0 %1392, %v309
        %v1394 = vpop.permute.xlu0 %1393
        %1395 = vset.pattern.permute.xlu0 5
        %1396 = vperm.xlu0 %1395, %v310
        %v1397 = vpop.permute.xlu0 %1396
        %1398 = vset.pattern.permute.xlu0 5
        %1399 = vperm.xlu0 %1398, %v311
        %v1400 = vpop.permute.xlu0 %1399
        %1401 = vset.pattern.permute.xlu0 5
        %1402 = vperm.xlu0 %1401, %v312
        %v1403 = vpop.permute.xlu0 %1402
        %1404 = vset.pattern.permute.xlu0 5
        %1405 = vperm.xlu0 %1404, %v313
        %v1406 = vpop.permute.xlu0 %1405
        %1407 = vset.pattern.permute.xlu0 5
        %1408 = vperm.xlu0 %1407, %v314
        %v1409 = vpop.permute.xlu0 %1408
        %1410 = vset.pattern.permute.xlu0 5
        %1411 = vperm.xlu0 %1410, %v315
        %v1412 = vpop.permute.xlu0 %1411
        %1413 = vset.pattern.permute.xlu0 5
        %1414 = vperm.xlu0 %1413, %v316
        %v1415 = vpop.permute.xlu0 %1414
        %1416 = vset.pattern.permute.xlu0 5
        %1417 = vperm.xlu0 %1416, %v317
        %v1418 = vpop.permute.xlu0 %1417
        %1419 = vset.pattern.permute.xlu0 5
        %1420 = vperm.xlu0 %1419, %v318
        %v1421 = vpop.permute.xlu0 %1420
        %1422 = vset.pattern.permute.xlu0 5
        %1423 = vperm.xlu0 %1422, %v319
        %v1424 = vpop.permute.xlu0 %1423
        %1425 = vset.pattern.permute.xlu0 5
        %1426 = vperm.xlu0 %1425, %v320
        %v1427 = vpop.permute.xlu0 %1426
        %vm1428 = vcmp.eq.s32.totalorder %v322, %v1382
        %vm1429 = vcmp.eq.s32.totalorder %v323, %v1382
        %vm1430 = vcmp.eq.s32.totalorder %v322, %v1385
        %vm1431 = vcmp.eq.s32.totalorder %v323, %v1385
        %vm1432 = vcmp.eq.s32.totalorder %v322, %v1388
        %vm1433 = vcmp.eq.s32.totalorder %v323, %v1388
        %vm1434 = vcmp.eq.s32.totalorder %v322, %v1391
        %vm1435 = vcmp.eq.s32.totalorder %v323, %v1391
        %vm1436 = vcmp.eq.s32.totalorder %v322, %v1394
        %vm1437 = vcmp.eq.s32.totalorder %v323, %v1394
        %vm1438 = vcmp.eq.s32.totalorder %v322, %v1397
        %vm1439 = vcmp.eq.s32.totalorder %v323, %v1397
        %vm1440 = vcmp.eq.s32.totalorder %v322, %v1400
        %vm1441 = vcmp.eq.s32.totalorder %v323, %v1400
        %vm1442 = vcmp.eq.s32.totalorder %v322, %v1403
        %vm1443 = vcmp.eq.s32.totalorder %v323, %v1403
        %vm1444 = vcmp.eq.s32.totalorder %v322, %v1406
        %vm1445 = vcmp.eq.s32.totalorder %v323, %v1406
        %vm1446 = vcmp.eq.s32.totalorder %v322, %v1409
        %vm1447 = vcmp.eq.s32.totalorder %v323, %v1409
        %vm1448 = vcmp.eq.s32.totalorder %v322, %v1412
        %vm1449 = vcmp.eq.s32.totalorder %v323, %v1412
        %vm1450 = vcmp.eq.s32.totalorder %v322, %v1415
        %vm1451 = vcmp.eq.s32.totalorder %v323, %v1415
        %vm1452 = vcmp.eq.s32.totalorder %v322, %v1418
        %vm1453 = vcmp.eq.s32.totalorder %v323, %v1418
        %vm1454 = vcmp.eq.s32.totalorder %v322, %v1421
        %vm1455 = vcmp.eq.s32.totalorder %v323, %v1421
        %vm1456 = vcmp.eq.s32.totalorder %v322, %v1424
        %vm1457 = vcmp.eq.s32.totalorder %v323, %v1424
        %vm1458 = vcmp.eq.s32.totalorder %v322, %v1427
        %vm1459 = vcmp.eq.s32.totalorder %v323, %v1427
        %1460 = vset.pattern.permute.xlu0 5
        %1461 = vperm.xlu0 %1460, %v289
        %v1462 = vpop.permute.xlu0 %1461
        %1464 = vset.pattern.permute.xlu0 5
        %1465 = vperm.xlu0 %1464, %v290
        %v1466 = vpop.permute.xlu0 %1465
        %1468 = vset.pattern.permute.xlu0 5
        %1469 = vperm.xlu0 %1468, %v291
        %v1470 = vpop.permute.xlu0 %1469
        %1472 = vset.pattern.permute.xlu0 5
        %1473 = vperm.xlu0 %1472, %v292
        %v1474 = vpop.permute.xlu0 %1473
        %1476 = vset.pattern.permute.xlu0 5
        %1477 = vperm.xlu0 %1476, %v293
        %v1478 = vpop.permute.xlu0 %1477
        %1480 = vset.pattern.permute.xlu0 5
        %1481 = vperm.xlu0 %1480, %v294
        %v1482 = vpop.permute.xlu0 %1481
        %1484 = vset.pattern.permute.xlu0 5
        %1485 = vperm.xlu0 %1484, %v295
        %v1486 = vpop.permute.xlu0 %1485
        %1488 = vset.pattern.permute.xlu0 5
        %1489 = vperm.xlu0 %1488, %v296
        %v1490 = vpop.permute.xlu0 %1489
        %1492 = vset.pattern.permute.xlu0 5
        %1493 = vperm.xlu0 %1492, %v297
        %v1494 = vpop.permute.xlu0 %1493
        %1496 = vset.pattern.permute.xlu0 5
        %1497 = vperm.xlu0 %1496, %v298
        %v1498 = vpop.permute.xlu0 %1497
        %1500 = vset.pattern.permute.xlu0 5
        %1501 = vperm.xlu0 %1500, %v299
        %v1502 = vpop.permute.xlu0 %1501
        %1504 = vset.pattern.permute.xlu0 5
        %1505 = vperm.xlu0 %1504, %v300
        %v1506 = vpop.permute.xlu0 %1505
        %1508 = vset.pattern.permute.xlu0 5
        %1509 = vperm.xlu0 %1508, %v301
        %v1510 = vpop.permute.xlu0 %1509
        %1512 = vset.pattern.permute.xlu0 5
        %1513 = vperm.xlu0 %1512, %v302
        %v1514 = vpop.permute.xlu0 %1513
        %1516 = vset.pattern.permute.xlu0 5
        %1517 = vperm.xlu0 %1516, %v303
        %v1518 = vpop.permute.xlu0 %1517
        %1520 = vset.pattern.permute.xlu0 5
        %1521 = vperm.xlu0 %1520, %v304
        %v1522 = vpop.permute.xlu0 %1521
        %v1524 = vsel %vm1428, %v1462, 0.0
        %v1525 = vsel %vm1429, %v1462, 0.0
        %v1526 = vsel %vm1430, %v1466, 0.0
        %v1527 = vsel %vm1431, %v1466, 0.0
        %v1528 = vsel %vm1432, %v1470, 0.0
        %v1529 = vsel %vm1433, %v1470, 0.0
        %v1530 = vsel %vm1434, %v1474, 0.0
        %v1531 = vsel %vm1435, %v1474, 0.0
        %v1532 = vsel %vm1436, %v1478, 0.0
        %v1533 = vsel %vm1437, %v1478, 0.0
        %v1534 = vsel %vm1438, %v1482, 0.0
        %v1535 = vsel %vm1439, %v1482, 0.0
        %v1536 = vsel %vm1440, %v1486, 0.0
        %v1537 = vsel %vm1441, %v1486, 0.0
        %v1538 = vsel %vm1442, %v1490, 0.0
        %v1539 = vsel %vm1443, %v1490, 0.0
        %v1540 = vsel %vm1444, %v1494, 0.0
        %v1541 = vsel %vm1445, %v1494, 0.0
        %v1542 = vsel %vm1446, %v1498, 0.0
        %v1543 = vsel %vm1447, %v1498, 0.0
        %v1544 = vsel %vm1448, %v1502, 0.0
        %v1545 = vsel %vm1449, %v1502, 0.0
        %v1546 = vsel %vm1450, %v1506, 0.0
        %v1547 = vsel %vm1451, %v1506, 0.0
        %v1548 = vsel %vm1452, %v1510, 0.0
        %v1549 = vsel %vm1453, %v1510, 0.0
        %v1550 = vsel %vm1454, %v1514, 0.0
        %v1551 = vsel %vm1455, %v1514, 0.0
        %v1552 = vsel %vm1456, %v1518, 0.0
        %v1553 = vsel %vm1457, %v1518, 0.0
        %v1554 = vsel %vm1458, %v1522, 0.0
        %v1555 = vsel %vm1459, %v1522, 0.0
        %v1556 = vadd.f32 %v1348, %v1524
        %v1557 = vadd.f32 %v1349, %v1525
        %v1558 = vadd.f32 %v1350, %v1526
        %v1559 = vadd.f32 %v1351, %v1527
        %v1560 = vadd.f32 %v1352, %v1528
        %v1561 = vadd.f32 %v1353, %v1529
        %v1562 = vadd.f32 %v1354, %v1530
        %v1563 = vadd.f32 %v1355, %v1531
        %v1564 = vadd.f32 %v1356, %v1532
        %v1565 = vadd.f32 %v1357, %v1533
        %v1566 = vadd.f32 %v1358, %v1534
        %v1567 = vadd.f32 %v1359, %v1535
        %v1568 = vadd.f32 %v1360, %v1536
        %v1569 = vadd.f32 %v1361, %v1537
        %v1570 = vadd.f32 %v1362, %v1538
        %v1571 = vadd.f32 %v1363, %v1539
        %v1572 = vadd.f32 %v1364, %v1540
        %v1573 = vadd.f32 %v1365, %v1541
        %v1574 = vadd.f32 %v1366, %v1542
        %v1575 = vadd.f32 %v1367, %v1543
        %v1576 = vadd.f32 %v1368, %v1544
        %v1577 = vadd.f32 %v1369, %v1545
        %v1578 = vadd.f32 %v1370, %v1546
        %v1579 = vadd.f32 %v1371, %v1547
        %v1580 = vadd.f32 %v1372, %v1548
        %v1581 = vadd.f32 %v1373, %v1549
        %v1582 = vadd.f32 %v1374, %v1550
        %v1583 = vadd.f32 %v1375, %v1551
        %v1584 = vadd.f32 %v1376, %v1552
        %v1585 = vadd.f32 %v1377, %v1553
        %v1586 = vadd.f32 %v1378, %v1554
        %v1587 = vadd.f32 %v1379, %v1555
        %1588 = vset.pattern.permute.xlu0 6
        %1589 = vperm.xlu0 %1588, %v305
        %v1590 = vpop.permute.xlu0 %1589
        %1591 = vset.pattern.permute.xlu0 6
        %1592 = vperm.xlu0 %1591, %v306
        %v1593 = vpop.permute.xlu0 %1592
        %1594 = vset.pattern.permute.xlu0 6
        %1595 = vperm.xlu0 %1594, %v307
        %v1596 = vpop.permute.xlu0 %1595
        %1597 = vset.pattern.permute.xlu0 6
        %1598 = vperm.xlu0 %1597, %v308
        %v1599 = vpop.permute.xlu0 %1598
        %1600 = vset.pattern.permute.xlu0 6
        %1601 = vperm.xlu0 %1600, %v309
        %v1602 = vpop.permute.xlu0 %1601
        %1603 = vset.pattern.permute.xlu0 6
        %1604 = vperm.xlu0 %1603, %v310
        %v1605 = vpop.permute.xlu0 %1604
        %1606 = vset.pattern.permute.xlu0 6
        %1607 = vperm.xlu0 %1606, %v311
        %v1608 = vpop.permute.xlu0 %1607
        %1609 = vset.pattern.permute.xlu0 6
        %1610 = vperm.xlu0 %1609, %v312
        %v1611 = vpop.permute.xlu0 %1610
        %1612 = vset.pattern.permute.xlu0 6
        %1613 = vperm.xlu0 %1612, %v313
        %v1614 = vpop.permute.xlu0 %1613
        %1615 = vset.pattern.permute.xlu0 6
        %1616 = vperm.xlu0 %1615, %v314
        %v1617 = vpop.permute.xlu0 %1616
        %1618 = vset.pattern.permute.xlu0 6
        %1619 = vperm.xlu0 %1618, %v315
        %v1620 = vpop.permute.xlu0 %1619
        %1621 = vset.pattern.permute.xlu0 6
        %1622 = vperm.xlu0 %1621, %v316
        %v1623 = vpop.permute.xlu0 %1622
        %1624 = vset.pattern.permute.xlu0 6
        %1625 = vperm.xlu0 %1624, %v317
        %v1626 = vpop.permute.xlu0 %1625
        %1627 = vset.pattern.permute.xlu0 6
        %1628 = vperm.xlu0 %1627, %v318
        %v1629 = vpop.permute.xlu0 %1628
        %1630 = vset.pattern.permute.xlu0 6
        %1631 = vperm.xlu0 %1630, %v319
        %v1632 = vpop.permute.xlu0 %1631
        %1633 = vset.pattern.permute.xlu0 6
        %1634 = vperm.xlu0 %1633, %v320
        %v1635 = vpop.permute.xlu0 %1634
        %vm1636 = vcmp.eq.s32.totalorder %v322, %v1590
        %vm1637 = vcmp.eq.s32.totalorder %v323, %v1590
        %vm1638 = vcmp.eq.s32.totalorder %v322, %v1593
        %vm1639 = vcmp.eq.s32.totalorder %v323, %v1593
        %vm1640 = vcmp.eq.s32.totalorder %v322, %v1596
        %vm1641 = vcmp.eq.s32.totalorder %v323, %v1596
        %vm1642 = vcmp.eq.s32.totalorder %v322, %v1599
        %vm1643 = vcmp.eq.s32.totalorder %v323, %v1599
        %vm1644 = vcmp.eq.s32.totalorder %v322, %v1602
        %vm1645 = vcmp.eq.s32.totalorder %v323, %v1602
        %vm1646 = vcmp.eq.s32.totalorder %v322, %v1605
        %vm1647 = vcmp.eq.s32.totalorder %v323, %v1605
        %vm1648 = vcmp.eq.s32.totalorder %v322, %v1608
        %vm1649 = vcmp.eq.s32.totalorder %v323, %v1608
        %vm1650 = vcmp.eq.s32.totalorder %v322, %v1611
        %vm1651 = vcmp.eq.s32.totalorder %v323, %v1611
        %vm1652 = vcmp.eq.s32.totalorder %v322, %v1614
        %vm1653 = vcmp.eq.s32.totalorder %v323, %v1614
        %vm1654 = vcmp.eq.s32.totalorder %v322, %v1617
        %vm1655 = vcmp.eq.s32.totalorder %v323, %v1617
        %vm1656 = vcmp.eq.s32.totalorder %v322, %v1620
        %vm1657 = vcmp.eq.s32.totalorder %v323, %v1620
        %vm1658 = vcmp.eq.s32.totalorder %v322, %v1623
        %vm1659 = vcmp.eq.s32.totalorder %v323, %v1623
        %vm1660 = vcmp.eq.s32.totalorder %v322, %v1626
        %vm1661 = vcmp.eq.s32.totalorder %v323, %v1626
        %vm1662 = vcmp.eq.s32.totalorder %v322, %v1629
        %vm1663 = vcmp.eq.s32.totalorder %v323, %v1629
        %vm1664 = vcmp.eq.s32.totalorder %v322, %v1632
        %vm1665 = vcmp.eq.s32.totalorder %v323, %v1632
        %vm1666 = vcmp.eq.s32.totalorder %v322, %v1635
        %vm1667 = vcmp.eq.s32.totalorder %v323, %v1635
        %1668 = vset.pattern.permute.xlu0 6
        %1669 = vperm.xlu0 %1668, %v289
        %v1670 = vpop.permute.xlu0 %1669
        %1672 = vset.pattern.permute.xlu0 6
        %1673 = vperm.xlu0 %1672, %v290
        %v1674 = vpop.permute.xlu0 %1673
        %1676 = vset.pattern.permute.xlu0 6
        %1677 = vperm.xlu0 %1676, %v291
        %v1678 = vpop.permute.xlu0 %1677
        %1680 = vset.pattern.permute.xlu0 6
        %1681 = vperm.xlu0 %1680, %v292
        %v1682 = vpop.permute.xlu0 %1681
        %1684 = vset.pattern.permute.xlu0 6
        %1685 = vperm.xlu0 %1684, %v293
        %v1686 = vpop.permute.xlu0 %1685
        %1688 = vset.pattern.permute.xlu0 6
        %1689 = vperm.xlu0 %1688, %v294
        %v1690 = vpop.permute.xlu0 %1689
        %1692 = vset.pattern.permute.xlu0 6
        %1693 = vperm.xlu0 %1692, %v295
        %v1694 = vpop.permute.xlu0 %1693
        %1696 = vset.pattern.permute.xlu0 6
        %1697 = vperm.xlu0 %1696, %v296
        %v1698 = vpop.permute.xlu0 %1697
        %1700 = vset.pattern.permute.xlu0 6
        %1701 = vperm.xlu0 %1700, %v297
        %v1702 = vpop.permute.xlu0 %1701
        %1704 = vset.pattern.permute.xlu0 6
        %1705 = vperm.xlu0 %1704, %v298
        %v1706 = vpop.permute.xlu0 %1705
        %1708 = vset.pattern.permute.xlu0 6
        %1709 = vperm.xlu0 %1708, %v299
        %v1710 = vpop.permute.xlu0 %1709
        %1712 = vset.pattern.permute.xlu0 6
        %1713 = vperm.xlu0 %1712, %v300
        %v1714 = vpop.permute.xlu0 %1713
        %1716 = vset.pattern.permute.xlu0 6
        %1717 = vperm.xlu0 %1716, %v301
        %v1718 = vpop.permute.xlu0 %1717
        %1720 = vset.pattern.permute.xlu0 6
        %1721 = vperm.xlu0 %1720, %v302
        %v1722 = vpop.permute.xlu0 %1721
        %1724 = vset.pattern.permute.xlu0 6
        %1725 = vperm.xlu0 %1724, %v303
        %v1726 = vpop.permute.xlu0 %1725
        %1728 = vset.pattern.permute.xlu0 6
        %1729 = vperm.xlu0 %1728, %v304
        %v1730 = vpop.permute.xlu0 %1729
        %v1732 = vsel %vm1636, %v1670, 0.0
        %v1733 = vsel %vm1637, %v1670, 0.0
        %v1734 = vsel %vm1638, %v1674, 0.0
        %v1735 = vsel %vm1639, %v1674, 0.0
        %v1736 = vsel %vm1640, %v1678, 0.0
        %v1737 = vsel %vm1641, %v1678, 0.0
        %v1738 = vsel %vm1642, %v1682, 0.0
        %v1739 = vsel %vm1643, %v1682, 0.0
        %v1740 = vsel %vm1644, %v1686, 0.0
        %v1741 = vsel %vm1645, %v1686, 0.0
        %v1742 = vsel %vm1646, %v1690, 0.0
        %v1743 = vsel %vm1647, %v1690, 0.0
        %v1744 = vsel %vm1648, %v1694, 0.0
        %v1745 = vsel %vm1649, %v1694, 0.0
        %v1746 = vsel %vm1650, %v1698, 0.0
        %v1747 = vsel %vm1651, %v1698, 0.0
        %v1748 = vsel %vm1652, %v1702, 0.0
        %v1749 = vsel %vm1653, %v1702, 0.0
        %v1750 = vsel %vm1654, %v1706, 0.0
        %v1751 = vsel %vm1655, %v1706, 0.0
        %v1752 = vsel %vm1656, %v1710, 0.0
        %v1753 = vsel %vm1657, %v1710, 0.0
        %v1754 = vsel %vm1658, %v1714, 0.0
        %v1755 = vsel %vm1659, %v1714, 0.0
        %v1756 = vsel %vm1660, %v1718, 0.0
        %v1757 = vsel %vm1661, %v1718, 0.0
        %v1758 = vsel %vm1662, %v1722, 0.0
        %v1759 = vsel %vm1663, %v1722, 0.0
        %v1760 = vsel %vm1664, %v1726, 0.0
        %v1761 = vsel %vm1665, %v1726, 0.0
        %v1762 = vsel %vm1666, %v1730, 0.0
        %v1763 = vsel %vm1667, %v1730, 0.0
        %v1764 = vadd.f32 %v1556, %v1732
        %v1765 = vadd.f32 %v1557, %v1733
        %v1766 = vadd.f32 %v1558, %v1734
        %v1767 = vadd.f32 %v1559, %v1735
        %v1768 = vadd.f32 %v1560, %v1736
        %v1769 = vadd.f32 %v1561, %v1737
        %v1770 = vadd.f32 %v1562, %v1738
        %v1771 = vadd.f32 %v1563, %v1739
        %v1772 = vadd.f32 %v1564, %v1740
        %v1773 = vadd.f32 %v1565, %v1741
        %v1774 = vadd.f32 %v1566, %v1742
        %v1775 = vadd.f32 %v1567, %v1743
        %v1776 = vadd.f32 %v1568, %v1744
        %v1777 = vadd.f32 %v1569, %v1745
        %v1778 = vadd.f32 %v1570, %v1746
        %v1779 = vadd.f32 %v1571, %v1747
        %v1780 = vadd.f32 %v1572, %v1748
        %v1781 = vadd.f32 %v1573, %v1749
        %v1782 = vadd.f32 %v1574, %v1750
        %v1783 = vadd.f32 %v1575, %v1751
        %v1784 = vadd.f32 %v1576, %v1752
        %v1785 = vadd.f32 %v1577, %v1753
        %v1786 = vadd.f32 %v1578, %v1754
        %v1787 = vadd.f32 %v1579, %v1755
        %v1788 = vadd.f32 %v1580, %v1756
        %v1789 = vadd.f32 %v1581, %v1757
        %v1790 = vadd.f32 %v1582, %v1758
        %v1791 = vadd.f32 %v1583, %v1759
        %v1792 = vadd.f32 %v1584, %v1760
        %v1793 = vadd.f32 %v1585, %v1761
        %v1794 = vadd.f32 %v1586, %v1762
        %v1795 = vadd.f32 %v1587, %v1763
        %1796 = vset.pattern.permute.xlu0 7
        %1797 = vperm.xlu0 %1796, %v305
        %v1798 = vpop.permute.xlu0 %1797
        %1799 = vset.pattern.permute.xlu0 7
        %1800 = vperm.xlu0 %1799, %v306
        %v1801 = vpop.permute.xlu0 %1800
        %1802 = vset.pattern.permute.xlu0 7
        %1803 = vperm.xlu0 %1802, %v307
        %v1804 = vpop.permute.xlu0 %1803
        %1805 = vset.pattern.permute.xlu0 7
        %1806 = vperm.xlu0 %1805, %v308
        %v1807 = vpop.permute.xlu0 %1806
        %1808 = vset.pattern.permute.xlu0 7
        %1809 = vperm.xlu0 %1808, %v309
        %v1810 = vpop.permute.xlu0 %1809
        %1811 = vset.pattern.permute.xlu0 7
        %1812 = vperm.xlu0 %1811, %v310
        %v1813 = vpop.permute.xlu0 %1812
        %1814 = vset.pattern.permute.xlu0 7
        %1815 = vperm.xlu0 %1814, %v311
        %v1816 = vpop.permute.xlu0 %1815
        %1817 = vset.pattern.permute.xlu0 7
        %1818 = vperm.xlu0 %1817, %v312
        %v1819 = vpop.permute.xlu0 %1818
        %1820 = vset.pattern.permute.xlu0 7
        %1821 = vperm.xlu0 %1820, %v313
        %v1822 = vpop.permute.xlu0 %1821
        %1823 = vset.pattern.permute.xlu0 7
        %1824 = vperm.xlu0 %1823, %v314
        %v1825 = vpop.permute.xlu0 %1824
        %1826 = vset.pattern.permute.xlu0 7
        %1827 = vperm.xlu0 %1826, %v315
        %v1828 = vpop.permute.xlu0 %1827
        %1829 = vset.pattern.permute.xlu0 7
        %1830 = vperm.xlu0 %1829, %v316
        %v1831 = vpop.permute.xlu0 %1830
        %1832 = vset.pattern.permute.xlu0 7
        %1833 = vperm.xlu0 %1832, %v317
        %v1834 = vpop.permute.xlu0 %1833
        %1835 = vset.pattern.permute.xlu0 7
        %1836 = vperm.xlu0 %1835, %v318
        %v1837 = vpop.permute.xlu0 %1836
        %1838 = vset.pattern.permute.xlu0 7
        %1839 = vperm.xlu0 %1838, %v319
        %v1840 = vpop.permute.xlu0 %1839
        %1841 = vset.pattern.permute.xlu0 7
        %1842 = vperm.xlu0 %1841, %v320
        %v1843 = vpop.permute.xlu0 %1842
        %vm1844 = vcmp.eq.s32.totalorder %v322, %v1798
        %vm1845 = vcmp.eq.s32.totalorder %v323, %v1798
        %vm1846 = vcmp.eq.s32.totalorder %v322, %v1801
        %vm1847 = vcmp.eq.s32.totalorder %v323, %v1801
        %vm1848 = vcmp.eq.s32.totalorder %v322, %v1804
        %vm1849 = vcmp.eq.s32.totalorder %v323, %v1804
        %vm1850 = vcmp.eq.s32.totalorder %v322, %v1807
        %vm1851 = vcmp.eq.s32.totalorder %v323, %v1807
        %vm1852 = vcmp.eq.s32.totalorder %v322, %v1810
        %vm1853 = vcmp.eq.s32.totalorder %v323, %v1810
        %vm1854 = vcmp.eq.s32.totalorder %v322, %v1813
        %vm1855 = vcmp.eq.s32.totalorder %v323, %v1813
        %vm1856 = vcmp.eq.s32.totalorder %v322, %v1816
        %vm1857 = vcmp.eq.s32.totalorder %v323, %v1816
        %vm1858 = vcmp.eq.s32.totalorder %v322, %v1819
        %vm1859 = vcmp.eq.s32.totalorder %v323, %v1819
        %vm1860 = vcmp.eq.s32.totalorder %v322, %v1822
        %vm1861 = vcmp.eq.s32.totalorder %v323, %v1822
        %vm1862 = vcmp.eq.s32.totalorder %v322, %v1825
        %vm1863 = vcmp.eq.s32.totalorder %v323, %v1825
        %vm1864 = vcmp.eq.s32.totalorder %v322, %v1828
        %vm1865 = vcmp.eq.s32.totalorder %v323, %v1828
        %vm1866 = vcmp.eq.s32.totalorder %v322, %v1831
        %vm1867 = vcmp.eq.s32.totalorder %v323, %v1831
        %vm1868 = vcmp.eq.s32.totalorder %v322, %v1834
        %vm1869 = vcmp.eq.s32.totalorder %v323, %v1834
        %vm1870 = vcmp.eq.s32.totalorder %v322, %v1837
        %vm1871 = vcmp.eq.s32.totalorder %v323, %v1837
        %vm1872 = vcmp.eq.s32.totalorder %v322, %v1840
        %vm1873 = vcmp.eq.s32.totalorder %v323, %v1840
        %vm1874 = vcmp.eq.s32.totalorder %v322, %v1843
        %vm1875 = vcmp.eq.s32.totalorder %v323, %v1843
        %1876 = vset.pattern.permute.xlu0 7
        %1877 = vperm.xlu0 %1876, %v289
        %v1878 = vpop.permute.xlu0 %1877
        %1880 = vset.pattern.permute.xlu0 7
        %1881 = vperm.xlu0 %1880, %v290
        %v1882 = vpop.permute.xlu0 %1881
        %1884 = vset.pattern.permute.xlu0 7
        %1885 = vperm.xlu0 %1884, %v291
        %v1886 = vpop.permute.xlu0 %1885
        %1888 = vset.pattern.permute.xlu0 7
        %1889 = vperm.xlu0 %1888, %v292
        %v1890 = vpop.permute.xlu0 %1889
        %1892 = vset.pattern.permute.xlu0 7
        %1893 = vperm.xlu0 %1892, %v293
        %v1894 = vpop.permute.xlu0 %1893
        %1896 = vset.pattern.permute.xlu0 7
        %1897 = vperm.xlu0 %1896, %v294
        %v1898 = vpop.permute.xlu0 %1897
        %1900 = vset.pattern.permute.xlu0 7
        %1901 = vperm.xlu0 %1900, %v295
        %v1902 = vpop.permute.xlu0 %1901
        %1904 = vset.pattern.permute.xlu0 7
        %1905 = vperm.xlu0 %1904, %v296
        %v1906 = vpop.permute.xlu0 %1905
        %1908 = vset.pattern.permute.xlu0 7
        %1909 = vperm.xlu0 %1908, %v297
        %v1910 = vpop.permute.xlu0 %1909
        %1912 = vset.pattern.permute.xlu0 7
        %1913 = vperm.xlu0 %1912, %v298
        %v1914 = vpop.permute.xlu0 %1913
        %1916 = vset.pattern.permute.xlu0 7
        %1917 = vperm.xlu0 %1916, %v299
        %v1918 = vpop.permute.xlu0 %1917
        %1920 = vset.pattern.permute.xlu0 7
        %1921 = vperm.xlu0 %1920, %v300
        %v1922 = vpop.permute.xlu0 %1921
        %1924 = vset.pattern.permute.xlu0 7
        %1925 = vperm.xlu0 %1924, %v301
        %v1926 = vpop.permute.xlu0 %1925
        %1928 = vset.pattern.permute.xlu0 7
        %1929 = vperm.xlu0 %1928, %v302
        %v1930 = vpop.permute.xlu0 %1929
        %1932 = vset.pattern.permute.xlu0 7
        %1933 = vperm.xlu0 %1932, %v303
        %v1934 = vpop.permute.xlu0 %1933
        %1936 = vset.pattern.permute.xlu0 7
        %1937 = vperm.xlu0 %1936, %v304
        %v1938 = vpop.permute.xlu0 %1937
        %v1940 = vsel %vm1844, %v1878, 0.0
        %v1941 = vsel %vm1845, %v1878, 0.0
        %v1942 = vsel %vm1846, %v1882, 0.0
        %v1943 = vsel %vm1847, %v1882, 0.0
        %v1944 = vsel %vm1848, %v1886, 0.0
        %v1945 = vsel %vm1849, %v1886, 0.0
        %v1946 = vsel %vm1850, %v1890, 0.0
        %v1947 = vsel %vm1851, %v1890, 0.0
        %v1948 = vsel %vm1852, %v1894, 0.0
        %v1949 = vsel %vm1853, %v1894, 0.0
        %v1950 = vsel %vm1854, %v1898, 0.0
        %v1951 = vsel %vm1855, %v1898, 0.0
        %v1952 = vsel %vm1856, %v1902, 0.0
        %v1953 = vsel %vm1857, %v1902, 0.0
        %v1954 = vsel %vm1858, %v1906, 0.0
        %v1955 = vsel %vm1859, %v1906, 0.0
        %v1956 = vsel %vm1860, %v1910, 0.0
        %v1957 = vsel %vm1861, %v1910, 0.0
        %v1958 = vsel %vm1862, %v1914, 0.0
        %v1959 = vsel %vm1863, %v1914, 0.0
        %v1960 = vsel %vm1864, %v1918, 0.0
        %v1961 = vsel %vm1865, %v1918, 0.0
        %v1962 = vsel %vm1866, %v1922, 0.0
        %v1963 = vsel %vm1867, %v1922, 0.0
        %v1964 = vsel %vm1868, %v1926, 0.0
        %v1965 = vsel %vm1869, %v1926, 0.0
        %v1966 = vsel %vm1870, %v1930, 0.0
        %v1967 = vsel %vm1871, %v1930, 0.0
        %v1968 = vsel %vm1872, %v1934, 0.0
        %v1969 = vsel %vm1873, %v1934, 0.0
        %v1970 = vsel %vm1874, %v1938, 0.0
        %v1971 = vsel %vm1875, %v1938, 0.0
        %v1972 = vadd.f32 %v1764, %v1940
        %v1973 = vadd.f32 %v1765, %v1941
        %v1974 = vadd.f32 %v1766, %v1942
        %v1975 = vadd.f32 %v1767, %v1943
        %v1976 = vadd.f32 %v1768, %v1944
        %v1977 = vadd.f32 %v1769, %v1945
        %v1978 = vadd.f32 %v1770, %v1946
        %v1979 = vadd.f32 %v1771, %v1947
        %v1980 = vadd.f32 %v1772, %v1948
        %v1981 = vadd.f32 %v1773, %v1949
        %v1982 = vadd.f32 %v1774, %v1950
        %v1983 = vadd.f32 %v1775, %v1951
        %v1984 = vadd.f32 %v1776, %v1952
        %v1985 = vadd.f32 %v1777, %v1953
        %v1986 = vadd.f32 %v1778, %v1954
        %v1987 = vadd.f32 %v1779, %v1955
        %v1988 = vadd.f32 %v1780, %v1956
        %v1989 = vadd.f32 %v1781, %v1957
        %v1990 = vadd.f32 %v1782, %v1958
        %v1991 = vadd.f32 %v1783, %v1959
        %v1992 = vadd.f32 %v1784, %v1960
        %v1993 = vadd.f32 %v1785, %v1961
        %v1994 = vadd.f32 %v1786, %v1962
        %v1995 = vadd.f32 %v1787, %v1963
        %v1996 = vadd.f32 %v1788, %v1964
        %v1997 = vadd.f32 %v1789, %v1965
        %v1998 = vadd.f32 %v1790, %v1966
        %v1999 = vadd.f32 %v1791, %v1967
        %v2000 = vadd.f32 %v1792, %v1968
        %v2001 = vadd.f32 %v1793, %v1969
        %v2002 = vadd.f32 %v1794, %v1970
        %v2003 = vadd.f32 %v1795, %v1971
        %v2004 = vld [vmem:[%s3] sm:$0xff]
        %v2005 = vld [vmem:[%s3 + $0x8] sm:$0xff]
        %v2006 = vld [vmem:[%s3 + $0x10] sm:$0xff]
        %v2007 = vld [vmem:[%s3 + $0x18] sm:$0xff]
        %v2008 = vld [vmem:[%s3 + $0x20] sm:$0xff]
        %v2009 = vld [vmem:[%s3 + $0x28] sm:$0xff]
        %v2010 = vld [vmem:[%s3 + $0x30] sm:$0xff]
        %v2011 = vld [vmem:[%s3 + $0x38] sm:$0xff]
        %v2012 = vld [vmem:[%s3 + $0x40] sm:$0xff]
        %v2013 = vld [vmem:[%s3 + $0x48] sm:$0xff]
        %v2014 = vld [vmem:[%s3 + $0x50] sm:$0xff]
        %v2015 = vld [vmem:[%s3 + $0x58] sm:$0xff]
        %v2016 = vld [vmem:[%s3 + $0x60] sm:$0xff]
        %v2017 = vld [vmem:[%s3 + $0x68] sm:$0xff]
        %v2018 = vld [vmem:[%s3 + $0x70] sm:$0xff]
        %v2019 = vld [vmem:[%s3 + $0x78] sm:$0xff]
        %v2020 = vld [vmem:[%s3 + $0x80] sm:$0xff]
        %v2021 = vld [vmem:[%s3 + $0x88] sm:$0xff]
        %v2022 = vld [vmem:[%s3 + $0x90] sm:$0xff]
        %v2023 = vld [vmem:[%s3 + $0x98] sm:$0xff]
        %v2024 = vld [vmem:[%s3 + $0xa0] sm:$0xff]
        %v2025 = vld [vmem:[%s3 + $0xa8] sm:$0xff]
        %v2026 = vld [vmem:[%s3 + $0xb0] sm:$0xff]
        %v2027 = vld [vmem:[%s3 + $0xb8] sm:$0xff]
        %v2028 = vld [vmem:[%s3 + $0xc0] sm:$0xff]
        %v2029 = vld [vmem:[%s3 + $0xc8] sm:$0xff]
        %v2030 = vld [vmem:[%s3 + $0xd0] sm:$0xff]
        %v2031 = vld [vmem:[%s3 + $0xd8] sm:$0xff]
        %v2032 = vld [vmem:[%s3 + $0xe0] sm:$0xff]
        %v2033 = vld [vmem:[%s3 + $0xe8] sm:$0xff]
        %v2034 = vld [vmem:[%s3 + $0xf0] sm:$0xff]
        %v2035 = vld [vmem:[%s3 + $0xf8] sm:$0xff]
        %v2036 = vadd.s32 %v322, 256
        %v2037 = vadd.s32 %v323, 256
        %vm2038 = vcmp.eq.s32.totalorder %v2036, %v326
        %vm2039 = vcmp.eq.s32.totalorder %v2037, %v326
        %vm2040 = vcmp.eq.s32.totalorder %v2036, %v329
        %vm2041 = vcmp.eq.s32.totalorder %v2037, %v329
        %vm2042 = vcmp.eq.s32.totalorder %v2036, %v332
        %vm2043 = vcmp.eq.s32.totalorder %v2037, %v332
        %vm2044 = vcmp.eq.s32.totalorder %v2036, %v335
        %vm2045 = vcmp.eq.s32.totalorder %v2037, %v335
        %vm2046 = vcmp.eq.s32.totalorder %v2036, %v338
        %vm2047 = vcmp.eq.s32.totalorder %v2037, %v338
        %vm2048 = vcmp.eq.s32.totalorder %v2036, %v341
        %vm2049 = vcmp.eq.s32.totalorder %v2037, %v341
        %vm2050 = vcmp.eq.s32.totalorder %v2036, %v344
        %vm2051 = vcmp.eq.s32.totalorder %v2037, %v344
        %vm2052 = vcmp.eq.s32.totalorder %v2036, %v347
        %vm2053 = vcmp.eq.s32.totalorder %v2037, %v347
        %vm2054 = vcmp.eq.s32.totalorder %v2036, %v350
        %vm2055 = vcmp.eq.s32.totalorder %v2037, %v350
        %vm2056 = vcmp.eq.s32.totalorder %v2036, %v353
        %vm2057 = vcmp.eq.s32.totalorder %v2037, %v353
        %vm2058 = vcmp.eq.s32.totalorder %v2036, %v356
        %vm2059 = vcmp.eq.s32.totalorder %v2037, %v356
        %vm2060 = vcmp.eq.s32.totalorder %v2036, %v359
        %vm2061 = vcmp.eq.s32.totalorder %v2037, %v359
        %vm2062 = vcmp.eq.s32.totalorder %v2036, %v362
        %vm2063 = vcmp.eq.s32.totalorder %v2037, %v362
        %vm2064 = vcmp.eq.s32.totalorder %v2036, %v365
        %vm2065 = vcmp.eq.s32.totalorder %v2037, %v365
        %vm2066 = vcmp.eq.s32.totalorder %v2036, %v368
        %vm2067 = vcmp.eq.s32.totalorder %v2037, %v368
        %vm2068 = vcmp.eq.s32.totalorder %v2036, %v371
        %vm2069 = vcmp.eq.s32.totalorder %v2037, %v371
        %v2070 = vsel %vm2038, %v407, 0.0
        %v2071 = vsel %vm2039, %v407, 0.0
        %v2072 = vsel %vm2040, %v412, 0.0
        %v2073 = vsel %vm2041, %v412, 0.0
        %v2074 = vsel %vm2042, %v417, 0.0
        %v2075 = vsel %vm2043, %v417, 0.0
        %v2076 = vsel %vm2044, %v422, 0.0
        %v2077 = vsel %vm2045, %v422, 0.0
        %v2078 = vsel %vm2046, %v427, 0.0
        %v2079 = vsel %vm2047, %v427, 0.0
        %v2080 = vsel %vm2048, %v432, 0.0
        %v2081 = vsel %vm2049, %v432, 0.0
        %v2082 = vsel %vm2050, %v437, 0.0
        %v2083 = vsel %vm2051, %v437, 0.0
        %v2084 = vsel %vm2052, %v442, 0.0
        %v2085 = vsel %vm2053, %v442, 0.0
        %v2086 = vsel %vm2054, %v447, 0.0
        %v2087 = vsel %vm2055, %v447, 0.0
        %v2088 = vsel %vm2056, %v452, 0.0
        %v2089 = vsel %vm2057, %v452, 0.0
        %v2090 = vsel %vm2058, %v457, 0.0
        %v2091 = vsel %vm2059, %v457, 0.0
        %v2092 = vsel %vm2060, %v462, 0.0
        %v2093 = vsel %vm2061, %v462, 0.0
        %v2094 = vsel %vm2062, %v467, 0.0
        %v2095 = vsel %vm2063, %v467, 0.0
        %v2096 = vsel %vm2064, %v472, 0.0
        %v2097 = vsel %vm2065, %v472, 0.0
        %v2098 = vsel %vm2066, %v477, 0.0
        %v2099 = vsel %vm2067, %v477, 0.0
        %v2100 = vsel %vm2068, %v482, 0.0
        %v2101 = vsel %vm2069, %v482, 0.0
        %v2102 = vadd.f32 %v2070, 0.0
        %v2103 = vadd.f32 %v2071, 0.0
        %v2104 = vadd.f32 %v2072, 0.0
        %v2105 = vadd.f32 %v2073, 0.0
        %v2106 = vadd.f32 %v2074, 0.0
        %v2107 = vadd.f32 %v2075, 0.0
        %v2108 = vadd.f32 %v2076, 0.0
        %v2109 = vadd.f32 %v2077, 0.0
        %v2110 = vadd.f32 %v2078, 0.0
        %v2111 = vadd.f32 %v2079, 0.0
        %v2112 = vadd.f32 %v2080, 0.0
        %v2113 = vadd.f32 %v2081, 0.0
        %v2114 = vadd.f32 %v2082, 0.0
        %v2115 = vadd.f32 %v2083, 0.0
        %v2116 = vadd.f32 %v2084, 0.0
        %v2117 = vadd.f32 %v2085, 0.0
        %v2118 = vadd.f32 %v2086, 0.0
        %v2119 = vadd.f32 %v2087, 0.0
        %v2120 = vadd.f32 %v2088, 0.0
        %v2121 = vadd.f32 %v2089, 0.0
        %v2122 = vadd.f32 %v2090, 0.0
        %v2123 = vadd.f32 %v2091, 0.0
        %v2124 = vadd.f32 %v2092, 0.0
        %v2125 = vadd.f32 %v2093, 0.0
        %v2126 = vadd.f32 %v2094, 0.0
        %v2127 = vadd.f32 %v2095, 0.0
        %v2128 = vadd.f32 %v2096, 0.0
        %v2129 = vadd.f32 %v2097, 0.0
        %v2130 = vadd.f32 %v2098, 0.0
        %v2131 = vadd.f32 %v2099, 0.0
        %v2132 = vadd.f32 %v2100, 0.0
        %v2133 = vadd.f32 %v2101, 0.0
        %vm2134 = vcmp.eq.s32.totalorder %v2036, %v550
        %vm2135 = vcmp.eq.s32.totalorder %v2037, %v550
        %vm2136 = vcmp.eq.s32.totalorder %v2036, %v553
        %vm2137 = vcmp.eq.s32.totalorder %v2037, %v553
        %vm2138 = vcmp.eq.s32.totalorder %v2036, %v556
        %vm2139 = vcmp.eq.s32.totalorder %v2037, %v556
        %vm2140 = vcmp.eq.s32.totalorder %v2036, %v559
        %vm2141 = vcmp.eq.s32.totalorder %v2037, %v559
        %vm2142 = vcmp.eq.s32.totalorder %v2036, %v562
        %vm2143 = vcmp.eq.s32.totalorder %v2037, %v562
        %vm2144 = vcmp.eq.s32.totalorder %v2036, %v565
        %vm2145 = vcmp.eq.s32.totalorder %v2037, %v565
        %vm2146 = vcmp.eq.s32.totalorder %v2036, %v568
        %vm2147 = vcmp.eq.s32.totalorder %v2037, %v568
        %vm2148 = vcmp.eq.s32.totalorder %v2036, %v571
        %vm2149 = vcmp.eq.s32.totalorder %v2037, %v571
        %vm2150 = vcmp.eq.s32.totalorder %v2036, %v574
        %vm2151 = vcmp.eq.s32.totalorder %v2037, %v574
        %vm2152 = vcmp.eq.s32.totalorder %v2036, %v577
        %vm2153 = vcmp.eq.s32.totalorder %v2037, %v577
        %vm2154 = vcmp.eq.s32.totalorder %v2036, %v580
        %vm2155 = vcmp.eq.s32.totalorder %v2037, %v580
        %vm2156 = vcmp.eq.s32.totalorder %v2036, %v583
        %vm2157 = vcmp.eq.s32.totalorder %v2037, %v583
        %vm2158 = vcmp.eq.s32.totalorder %v2036, %v586
        %vm2159 = vcmp.eq.s32.totalorder %v2037, %v586
        %vm2160 = vcmp.eq.s32.totalorder %v2036, %v589
        %vm2161 = vcmp.eq.s32.totalorder %v2037, %v589
        %vm2162 = vcmp.eq.s32.totalorder %v2036, %v592
        %vm2163 = vcmp.eq.s32.totalorder %v2037, %v592
        %vm2164 = vcmp.eq.s32.totalorder %v2036, %v595
        %vm2165 = vcmp.eq.s32.totalorder %v2037, %v595
        %v2166 = vsel %vm2134, %v630, 0.0
        %v2167 = vsel %vm2135, %v630, 0.0
        %v2168 = vsel %vm2136, %v634, 0.0
        %v2169 = vsel %vm2137, %v634, 0.0
        %v2170 = vsel %vm2138, %v638, 0.0
        %v2171 = vsel %vm2139, %v638, 0.0
        %v2172 = vsel %vm2140, %v642, 0.0
        %v2173 = vsel %vm2141, %v642, 0.0
        %v2174 = vsel %vm2142, %v646, 0.0
        %v2175 = vsel %vm2143, %v646, 0.0
        %v2176 = vsel %vm2144, %v650, 0.0
        %v2177 = vsel %vm2145, %v650, 0.0
        %v2178 = vsel %vm2146, %v654, 0.0
        %v2179 = vsel %vm2147, %v654, 0.0
        %v2180 = vsel %vm2148, %v658, 0.0
        %v2181 = vsel %vm2149, %v658, 0.0
        %v2182 = vsel %vm2150, %v662, 0.0
        %v2183 = vsel %vm2151, %v662, 0.0
        %v2184 = vsel %vm2152, %v666, 0.0
        %v2185 = vsel %vm2153, %v666, 0.0
        %v2186 = vsel %vm2154, %v670, 0.0
        %v2187 = vsel %vm2155, %v670, 0.0
        %v2188 = vsel %vm2156, %v674, 0.0
        %v2189 = vsel %vm2157, %v674, 0.0
        %v2190 = vsel %vm2158, %v678, 0.0
        %v2191 = vsel %vm2159, %v678, 0.0
        %v2192 = vsel %vm2160, %v682, 0.0
        %v2193 = vsel %vm2161, %v682, 0.0
        %v2194 = vsel %vm2162, %v686, 0.0
        %v2195 = vsel %vm2163, %v686, 0.0
        %v2196 = vsel %vm2164, %v690, 0.0
        %v2197 = vsel %vm2165, %v690, 0.0
        %v2198 = vadd.f32 %v2102, %v2166
        %v2199 = vadd.f32 %v2103, %v2167
        %v2200 = vadd.f32 %v2104, %v2168
        %v2201 = vadd.f32 %v2105, %v2169
        %v2202 = vadd.f32 %v2106, %v2170
        %v2203 = vadd.f32 %v2107, %v2171
        %v2204 = vadd.f32 %v2108, %v2172
        %v2205 = vadd.f32 %v2109, %v2173
        %v2206 = vadd.f32 %v2110, %v2174
        %v2207 = vadd.f32 %v2111, %v2175
        %v2208 = vadd.f32 %v2112, %v2176
        %v2209 = vadd.f32 %v2113, %v2177
        %v2210 = vadd.f32 %v2114, %v2178
        %v2211 = vadd.f32 %v2115, %v2179
        %v2212 = vadd.f32 %v2116, %v2180
        %v2213 = vadd.f32 %v2117, %v2181
        %v2214 = vadd.f32 %v2118, %v2182
        %v2215 = vadd.f32 %v2119, %v2183
        %v2216 = vadd.f32 %v2120, %v2184
        %v2217 = vadd.f32 %v2121, %v2185
        %v2218 = vadd.f32 %v2122, %v2186
        %v2219 = vadd.f32 %v2123, %v2187
        %v2220 = vadd.f32 %v2124, %v2188
        %v2221 = vadd.f32 %v2125, %v2189
        %v2222 = vadd.f32 %v2126, %v2190
        %v2223 = vadd.f32 %v2127, %v2191
        %v2224 = vadd.f32 %v2128, %v2192
        %v2225 = vadd.f32 %v2129, %v2193
        %v2226 = vadd.f32 %v2130, %v2194
        %v2227 = vadd.f32 %v2131, %v2195
        %v2228 = vadd.f32 %v2132, %v2196
        %v2229 = vadd.f32 %v2133, %v2197
        %vm2230 = vcmp.eq.s32.totalorder %v2036, %v758
        %vm2231 = vcmp.eq.s32.totalorder %v2037, %v758
        %vm2232 = vcmp.eq.s32.totalorder %v2036, %v761
        %vm2233 = vcmp.eq.s32.totalorder %v2037, %v761
        %vm2234 = vcmp.eq.s32.totalorder %v2036, %v764
        %vm2235 = vcmp.eq.s32.totalorder %v2037, %v764
        %vm2236 = vcmp.eq.s32.totalorder %v2036, %v767
        %vm2237 = vcmp.eq.s32.totalorder %v2037, %v767
        %vm2238 = vcmp.eq.s32.totalorder %v2036, %v770
        %vm2239 = vcmp.eq.s32.totalorder %v2037, %v770
        %vm2240 = vcmp.eq.s32.totalorder %v2036, %v773
        %vm2241 = vcmp.eq.s32.totalorder %v2037, %v773
        %vm2242 = vcmp.eq.s32.totalorder %v2036, %v776
        %vm2243 = vcmp.eq.s32.totalorder %v2037, %v776
        %vm2244 = vcmp.eq.s32.totalorder %v2036, %v779
        %vm2245 = vcmp.eq.s32.totalorder %v2037, %v779
        %vm2246 = vcmp.eq.s32.totalorder %v2036, %v782
        %vm2247 = vcmp.eq.s32.totalorder %v2037, %v782
        %vm2248 = vcmp.eq.s32.totalorder %v2036, %v785
        %vm2249 = vcmp.eq.s32.totalorder %v2037, %v785
        %vm2250 = vcmp.eq.s32.totalorder %v2036, %v788
        %vm2251 = vcmp.eq.s32.totalorder %v2037, %v788
        %vm2252 = vcmp.eq.s32.totalorder %v2036, %v791
        %vm2253 = vcmp.eq.s32.totalorder %v2037, %v791
        %vm2254 = vcmp.eq.s32.totalorder %v2036, %v794
        %vm2255 = vcmp.eq.s32.totalorder %v2037, %v794
        %vm2256 = vcmp.eq.s32.totalorder %v2036, %v797
        %vm2257 = vcmp.eq.s32.totalorder %v2037, %v797
        %vm2258 = vcmp.eq.s32.totalorder %v2036, %v800
        %vm2259 = vcmp.eq.s32.totalorder %v2037, %v800
        %vm2260 = vcmp.eq.s32.totalorder %v2036, %v803
        %vm2261 = vcmp.eq.s32.totalorder %v2037, %v803
        %v2262 = vsel %vm2230, %v838, 0.0
        %v2263 = vsel %vm2231, %v838, 0.0
        %v2264 = vsel %vm2232, %v842, 0.0
        %v2265 = vsel %vm2233, %v842, 0.0
        %v2266 = vsel %vm2234, %v846, 0.0
        %v2267 = vsel %vm2235, %v846, 0.0
        %v2268 = vsel %vm2236, %v850, 0.0
        %v2269 = vsel %vm2237, %v850, 0.0
        %v2270 = vsel %vm2238, %v854, 0.0
        %v2271 = vsel %vm2239, %v854, 0.0
        %v2272 = vsel %vm2240, %v858, 0.0
        %v2273 = vsel %vm2241, %v858, 0.0
        %v2274 = vsel %vm2242, %v862, 0.0
        %v2275 = vsel %vm2243, %v862, 0.0
        %v2276 = vsel %vm2244, %v866, 0.0
        %v2277 = vsel %vm2245, %v866, 0.0
        %v2278 = vsel %vm2246, %v870, 0.0
        %v2279 = vsel %vm2247, %v870, 0.0
        %v2280 = vsel %vm2248, %v874, 0.0
        %v2281 = vsel %vm2249, %v874, 0.0
        %v2282 = vsel %vm2250, %v878, 0.0
        %v2283 = vsel %vm2251, %v878, 0.0
        %v2284 = vsel %vm2252, %v882, 0.0
        %v2285 = vsel %vm2253, %v882, 0.0
        %v2286 = vsel %vm2254, %v886, 0.0
        %v2287 = vsel %vm2255, %v886, 0.0
        %v2288 = vsel %vm2256, %v890, 0.0
        %v2289 = vsel %vm2257, %v890, 0.0
        %v2290 = vsel %vm2258, %v894, 0.0
        %v2291 = vsel %vm2259, %v894, 0.0
        %v2292 = vsel %vm2260, %v898, 0.0
        %v2293 = vsel %vm2261, %v898, 0.0
        %v2294 = vadd.f32 %v2198, %v2262
        %v2295 = vadd.f32 %v2199, %v2263
        %v2296 = vadd.f32 %v2200, %v2264
        %v2297 = vadd.f32 %v2201, %v2265
        %v2298 = vadd.f32 %v2202, %v2266
        %v2299 = vadd.f32 %v2203, %v2267
        %v2300 = vadd.f32 %v2204, %v2268
        %v2301 = vadd.f32 %v2205, %v2269
        %v2302 = vadd.f32 %v2206, %v2270
        %v2303 = vadd.f32 %v2207, %v2271
        %v2304 = vadd.f32 %v2208, %v2272
        %v2305 = vadd.f32 %v2209, %v2273
        %v2306 = vadd.f32 %v2210, %v2274
        %v2307 = vadd.f32 %v2211, %v2275
        %v2308 = vadd.f32 %v2212, %v2276
        %v2309 = vadd.f32 %v2213, %v2277
        %v2310 = vadd.f32 %v2214, %v2278
        %v2311 = vadd.f32 %v2215, %v2279
        %v2312 = vadd.f32 %v2216, %v2280
        %v2313 = vadd.f32 %v2217, %v2281
        %v2314 = vadd.f32 %v2218, %v2282
        %v2315 = vadd.f32 %v2219, %v2283
        %v2316 = vadd.f32 %v2220, %v2284
        %v2317 = vadd.f32 %v2221, %v2285
        %v2318 = vadd.f32 %v2222, %v2286
        %v2319 = vadd.f32 %v2223, %v2287
        %v2320 = vadd.f32 %v2224, %v2288
        %v2321 = vadd.f32 %v2225, %v2289
        %v2322 = vadd.f32 %v2226, %v2290
        %v2323 = vadd.f32 %v2227, %v2291
        %v2324 = vadd.f32 %v2228, %v2292
        %v2325 = vadd.f32 %v2229, %v2293
        %vm2326 = vcmp.eq.s32.totalorder %v2036, %v966
        %vm2327 = vcmp.eq.s32.totalorder %v2037, %v966
        %vm2328 = vcmp.eq.s32.totalorder %v2036, %v969
        %vm2329 = vcmp.eq.s32.totalorder %v2037, %v969
        %vm2330 = vcmp.eq.s32.totalorder %v2036, %v972
        %vm2331 = vcmp.eq.s32.totalorder %v2037, %v972
        %vm2332 = vcmp.eq.s32.totalorder %v2036, %v975
        %vm2333 = vcmp.eq.s32.totalorder %v2037, %v975
        %vm2334 = vcmp.eq.s32.totalorder %v2036, %v978
        %vm2335 = vcmp.eq.s32.totalorder %v2037, %v978
        %vm2336 = vcmp.eq.s32.totalorder %v2036, %v981
        %vm2337 = vcmp.eq.s32.totalorder %v2037, %v981
        %vm2338 = vcmp.eq.s32.totalorder %v2036, %v984
        %vm2339 = vcmp.eq.s32.totalorder %v2037, %v984
        %vm2340 = vcmp.eq.s32.totalorder %v2036, %v987
        %vm2341 = vcmp.eq.s32.totalorder %v2037, %v987
        %vm2342 = vcmp.eq.s32.totalorder %v2036, %v990
        %vm2343 = vcmp.eq.s32.totalorder %v2037, %v990
        %vm2344 = vcmp.eq.s32.totalorder %v2036, %v993
        %vm2345 = vcmp.eq.s32.totalorder %v2037, %v993
        %vm2346 = vcmp.eq.s32.totalorder %v2036, %v996
        %vm2347 = vcmp.eq.s32.totalorder %v2037, %v996
        %vm2348 = vcmp.eq.s32.totalorder %v2036, %v999
        %vm2349 = vcmp.eq.s32.totalorder %v2037, %v999
        %vm2350 = vcmp.eq.s32.totalorder %v2036, %v1002
        %vm2351 = vcmp.eq.s32.totalorder %v2037, %v1002
        %vm2352 = vcmp.eq.s32.totalorder %v2036, %v1005
        %vm2353 = vcmp.eq.s32.totalorder %v2037, %v1005
        %vm2354 = vcmp.eq.s32.totalorder %v2036, %v1008
        %vm2355 = vcmp.eq.s32.totalorder %v2037, %v1008
        %vm2356 = vcmp.eq.s32.totalorder %v2036, %v1011
        %vm2357 = vcmp.eq.s32.totalorder %v2037, %v1011
        %v2358 = vsel %vm2326, %v1046, 0.0
        %v2359 = vsel %vm2327, %v1046, 0.0
        %v2360 = vsel %vm2328, %v1050, 0.0
        %v2361 = vsel %vm2329, %v1050, 0.0
        %v2362 = vsel %vm2330, %v1054, 0.0
        %v2363 = vsel %vm2331, %v1054, 0.0
        %v2364 = vsel %vm2332, %v1058, 0.0
        %v2365 = vsel %vm2333, %v1058, 0.0
        %v2366 = vsel %vm2334, %v1062, 0.0
        %v2367 = vsel %vm2335, %v1062, 0.0
        %v2368 = vsel %vm2336, %v1066, 0.0
        %v2369 = vsel %vm2337, %v1066, 0.0
        %v2370 = vsel %vm2338, %v1070, 0.0
        %v2371 = vsel %vm2339, %v1070, 0.0
        %v2372 = vsel %vm2340, %v1074, 0.0
        %v2373 = vsel %vm2341, %v1074, 0.0
        %v2374 = vsel %vm2342, %v1078, 0.0
        %v2375 = vsel %vm2343, %v1078, 0.0
        %v2376 = vsel %vm2344, %v1082, 0.0
        %v2377 = vsel %vm2345, %v1082, 0.0
        %v2378 = vsel %vm2346, %v1086, 0.0
        %v2379 = vsel %vm2347, %v1086, 0.0
        %v2380 = vsel %vm2348, %v1090, 0.0
        %v2381 = vsel %vm2349, %v1090, 0.0
        %v2382 = vsel %vm2350, %v1094, 0.0
        %v2383 = vsel %vm2351, %v1094, 0.0
        %v2384 = vsel %vm2352, %v1098, 0.0
        %v2385 = vsel %vm2353, %v1098, 0.0
        %v2386 = vsel %vm2354, %v1102, 0.0
        %v2387 = vsel %vm2355, %v1102, 0.0
        %v2388 = vsel %vm2356, %v1106, 0.0
        %v2389 = vsel %vm2357, %v1106, 0.0
        %v2390 = vadd.f32 %v2294, %v2358
        %v2391 = vadd.f32 %v2295, %v2359
        %v2392 = vadd.f32 %v2296, %v2360
        %v2393 = vadd.f32 %v2297, %v2361
        %v2394 = vadd.f32 %v2298, %v2362
        %v2395 = vadd.f32 %v2299, %v2363
        %v2396 = vadd.f32 %v2300, %v2364
        %v2397 = vadd.f32 %v2301, %v2365
        %v2398 = vadd.f32 %v2302, %v2366
        %v2399 = vadd.f32 %v2303, %v2367
        %v2400 = vadd.f32 %v2304, %v2368
        %v2401 = vadd.f32 %v2305, %v2369
        %v2402 = vadd.f32 %v2306, %v2370
        %v2403 = vadd.f32 %v2307, %v2371
        %v2404 = vadd.f32 %v2308, %v2372
        %v2405 = vadd.f32 %v2309, %v2373
        %v2406 = vadd.f32 %v2310, %v2374
        %v2407 = vadd.f32 %v2311, %v2375
        %v2408 = vadd.f32 %v2312, %v2376
        %v2409 = vadd.f32 %v2313, %v2377
        %v2410 = vadd.f32 %v2314, %v2378
        %v2411 = vadd.f32 %v2315, %v2379
        %v2412 = vadd.f32 %v2316, %v2380
        %v2413 = vadd.f32 %v2317, %v2381
        %v2414 = vadd.f32 %v2318, %v2382
        %v2415 = vadd.f32 %v2319, %v2383
        %v2416 = vadd.f32 %v2320, %v2384
        %v2417 = vadd.f32 %v2321, %v2385
        %v2418 = vadd.f32 %v2322, %v2386
        %v2419 = vadd.f32 %v2323, %v2387
        %v2420 = vadd.f32 %v2324, %v2388
        %v2421 = vadd.f32 %v2325, %v2389
        %vm2422 = vcmp.eq.s32.totalorder %v2036, %v1174
        %vm2423 = vcmp.eq.s32.totalorder %v2037, %v1174
        %vm2424 = vcmp.eq.s32.totalorder %v2036, %v1177
        %vm2425 = vcmp.eq.s32.totalorder %v2037, %v1177
        %vm2426 = vcmp.eq.s32.totalorder %v2036, %v1180
        %vm2427 = vcmp.eq.s32.totalorder %v2037, %v1180
        %vm2428 = vcmp.eq.s32.totalorder %v2036, %v1183
        %vm2429 = vcmp.eq.s32.totalorder %v2037, %v1183
        %vm2430 = vcmp.eq.s32.totalorder %v2036, %v1186
        %vm2431 = vcmp.eq.s32.totalorder %v2037, %v1186
        %vm2432 = vcmp.eq.s32.totalorder %v2036, %v1189
        %vm2433 = vcmp.eq.s32.totalorder %v2037, %v1189
        %vm2434 = vcmp.eq.s32.totalorder %v2036, %v1192
        %vm2435 = vcmp.eq.s32.totalorder %v2037, %v1192
        %vm2436 = vcmp.eq.s32.totalorder %v2036, %v1195
        %vm2437 = vcmp.eq.s32.totalorder %v2037, %v1195
        %vm2438 = vcmp.eq.s32.totalorder %v2036, %v1198
        %vm2439 = vcmp.eq.s32.totalorder %v2037, %v1198
        %vm2440 = vcmp.eq.s32.totalorder %v2036, %v1201
        %vm2441 = vcmp.eq.s32.totalorder %v2037, %v1201
        %vm2442 = vcmp.eq.s32.totalorder %v2036, %v1204
        %vm2443 = vcmp.eq.s32.totalorder %v2037, %v1204
        %vm2444 = vcmp.eq.s32.totalorder %v2036, %v1207
        %vm2445 = vcmp.eq.s32.totalorder %v2037, %v1207
        %vm2446 = vcmp.eq.s32.totalorder %v2036, %v1210
        %vm2447 = vcmp.eq.s32.totalorder %v2037, %v1210
        %vm2448 = vcmp.eq.s32.totalorder %v2036, %v1213
        %vm2449 = vcmp.eq.s32.totalorder %v2037, %v1213
        %vm2450 = vcmp.eq.s32.totalorder %v2036, %v1216
        %vm2451 = vcmp.eq.s32.totalorder %v2037, %v1216
        %vm2452 = vcmp.eq.s32.totalorder %v2036, %v1219
        %vm2453 = vcmp.eq.s32.totalorder %v2037, %v1219
        %v2454 = vsel %vm2422, %v1254, 0.0
        %v2455 = vsel %vm2423, %v1254, 0.0
        %v2456 = vsel %vm2424, %v1258, 0.0
        %v2457 = vsel %vm2425, %v1258, 0.0
        %v2458 = vsel %vm2426, %v1262, 0.0
        %v2459 = vsel %vm2427, %v1262, 0.0
        %v2460 = vsel %vm2428, %v1266, 0.0
        %v2461 = vsel %vm2429, %v1266, 0.0
        %v2462 = vsel %vm2430, %v1270, 0.0
        %v2463 = vsel %vm2431, %v1270, 0.0
        %v2464 = vsel %vm2432, %v1274, 0.0
        %v2465 = vsel %vm2433, %v1274, 0.0
        %v2466 = vsel %vm2434, %v1278, 0.0
        %v2467 = vsel %vm2435, %v1278, 0.0
        %v2468 = vsel %vm2436, %v1282, 0.0
        %v2469 = vsel %vm2437, %v1282, 0.0
        %v2470 = vsel %vm2438, %v1286, 0.0
        %v2471 = vsel %vm2439, %v1286, 0.0
        %v2472 = vsel %vm2440, %v1290, 0.0
        %v2473 = vsel %vm2441, %v1290, 0.0
        %v2474 = vsel %vm2442, %v1294, 0.0
        %v2475 = vsel %vm2443, %v1294, 0.0
        %v2476 = vsel %vm2444, %v1298, 0.0
        %v2477 = vsel %vm2445, %v1298, 0.0
        %v2478 = vsel %vm2446, %v1302, 0.0
        %v2479 = vsel %vm2447, %v1302, 0.0
        %v2480 = vsel %vm2448, %v1306, 0.0
        %v2481 = vsel %vm2449, %v1306, 0.0
        %v2482 = vsel %vm2450, %v1310, 0.0
        %v2483 = vsel %vm2451, %v1310, 0.0
        %v2484 = vsel %vm2452, %v1314, 0.0
        %v2485 = vsel %vm2453, %v1314, 0.0
        %v2486 = vadd.f32 %v2390, %v2454
        %v2487 = vadd.f32 %v2391, %v2455
        %v2488 = vadd.f32 %v2392, %v2456
        %v2489 = vadd.f32 %v2393, %v2457
        %v2490 = vadd.f32 %v2394, %v2458
        %v2491 = vadd.f32 %v2395, %v2459
        %v2492 = vadd.f32 %v2396, %v2460
        %v2493 = vadd.f32 %v2397, %v2461
        %v2494 = vadd.f32 %v2398, %v2462
        %v2495 = vadd.f32 %v2399, %v2463
        %v2496 = vadd.f32 %v2400, %v2464
        %v2497 = vadd.f32 %v2401, %v2465
        %v2498 = vadd.f32 %v2402, %v2466
        %v2499 = vadd.f32 %v2403, %v2467
        %v2500 = vadd.f32 %v2404, %v2468
        %v2501 = vadd.f32 %v2405, %v2469
        %v2502 = vadd.f32 %v2406, %v2470
        %v2503 = vadd.f32 %v2407, %v2471
        %v2504 = vadd.f32 %v2408, %v2472
        %v2505 = vadd.f32 %v2409, %v2473
        %v2506 = vadd.f32 %v2410, %v2474
        %v2507 = vadd.f32 %v2411, %v2475
        %v2508 = vadd.f32 %v2412, %v2476
        %v2509 = vadd.f32 %v2413, %v2477
        %v2510 = vadd.f32 %v2414, %v2478
        %v2511 = vadd.f32 %v2415, %v2479
        %v2512 = vadd.f32 %v2416, %v2480
        %v2513 = vadd.f32 %v2417, %v2481
        %v2514 = vadd.f32 %v2418, %v2482
        %v2515 = vadd.f32 %v2419, %v2483
        %v2516 = vadd.f32 %v2420, %v2484
        %v2517 = vadd.f32 %v2421, %v2485
        %vm2518 = vcmp.eq.s32.totalorder %v2036, %v1382
        %vm2519 = vcmp.eq.s32.totalorder %v2037, %v1382
        %vm2520 = vcmp.eq.s32.totalorder %v2036, %v1385
        %vm2521 = vcmp.eq.s32.totalorder %v2037, %v1385
        %vm2522 = vcmp.eq.s32.totalorder %v2036, %v1388
        %vm2523 = vcmp.eq.s32.totalorder %v2037, %v1388
        %vm2524 = vcmp.eq.s32.totalorder %v2036, %v1391
        %vm2525 = vcmp.eq.s32.totalorder %v2037, %v1391
        %vm2526 = vcmp.eq.s32.totalorder %v2036, %v1394
        %vm2527 = vcmp.eq.s32.totalorder %v2037, %v1394
        %vm2528 = vcmp.eq.s32.totalorder %v2036, %v1397
        %vm2529 = vcmp.eq.s32.totalorder %v2037, %v1397
        %vm2530 = vcmp.eq.s32.totalorder %v2036, %v1400
        %vm2531 = vcmp.eq.s32.totalorder %v2037, %v1400
        %vm2532 = vcmp.eq.s32.totalorder %v2036, %v1403
        %vm2533 = vcmp.eq.s32.totalorder %v2037, %v1403
        %vm2534 = vcmp.eq.s32.totalorder %v2036, %v1406
        %vm2535 = vcmp.eq.s32.totalorder %v2037, %v1406
        %vm2536 = vcmp.eq.s32.totalorder %v2036, %v1409
        %vm2537 = vcmp.eq.s32.totalorder %v2037, %v1409
        %vm2538 = vcmp.eq.s32.totalorder %v2036, %v1412
        %vm2539 = vcmp.eq.s32.totalorder %v2037, %v1412
        %vm2540 = vcmp.eq.s32.totalorder %v2036, %v1415
        %vm2541 = vcmp.eq.s32.totalorder %v2037, %v1415
        %vm2542 = vcmp.eq.s32.totalorder %v2036, %v1418
        %vm2543 = vcmp.eq.s32.totalorder %v2037, %v1418
        %vm2544 = vcmp.eq.s32.totalorder %v2036, %v1421
        %vm2545 = vcmp.eq.s32.totalorder %v2037, %v1421
        %vm2546 = vcmp.eq.s32.totalorder %v2036, %v1424
        %vm2547 = vcmp.eq.s32.totalorder %v2037, %v1424
        %vm2548 = vcmp.eq.s32.totalorder %v2036, %v1427
        %vm2549 = vcmp.eq.s32.totalorder %v2037, %v1427
        %v2550 = vsel %vm2518, %v1462, 0.0
        %v2551 = vsel %vm2519, %v1462, 0.0
        %v2552 = vsel %vm2520, %v1466, 0.0
        %v2553 = vsel %vm2521, %v1466, 0.0
        %v2554 = vsel %vm2522, %v1470, 0.0
        %v2555 = vsel %vm2523, %v1470, 0.0
        %v2556 = vsel %vm2524, %v1474, 0.0
        %v2557 = vsel %vm2525, %v1474, 0.0
        %v2558 = vsel %vm2526, %v1478, 0.0
        %v2559 = vsel %vm2527, %v1478, 0.0
        %v2560 = vsel %vm2528, %v1482, 0.0
        %v2561 = vsel %vm2529, %v1482, 0.0
        %v2562 = vsel %vm2530, %v1486, 0.0
        %v2563 = vsel %vm2531, %v1486, 0.0
        %v2564 = vsel %vm2532, %v1490, 0.0
        %v2565 = vsel %vm2533, %v1490, 0.0
        %v2566 = vsel %vm2534, %v1494, 0.0
        %v2567 = vsel %vm2535, %v1494, 0.0
        %v2568 = vsel %vm2536, %v1498, 0.0
        %v2569 = vsel %vm2537, %v1498, 0.0
        %v2570 = vsel %vm2538, %v1502, 0.0
        %v2571 = vsel %vm2539, %v1502, 0.0
        %v2572 = vsel %vm2540, %v1506, 0.0
        %v2573 = vsel %vm2541, %v1506, 0.0
        %v2574 = vsel %vm2542, %v1510, 0.0
        %v2575 = vsel %vm2543, %v1510, 0.0
        %v2576 = vsel %vm2544, %v1514, 0.0
        %v2577 = vsel %vm2545, %v1514, 0.0
        %v2578 = vsel %vm2546, %v1518, 0.0
        %v2579 = vsel %vm2547, %v1518, 0.0
        %v2580 = vsel %vm2548, %v1522, 0.0
        %v2581 = vsel %vm2549, %v1522, 0.0
        %v2582 = vadd.f32 %v2486, %v2550
        %v2583 = vadd.f32 %v2487, %v2551
        %v2584 = vadd.f32 %v2488, %v2552
        %v2585 = vadd.f32 %v2489, %v2553
        %v2586 = vadd.f32 %v2490, %v2554
        %v2587 = vadd.f32 %v2491, %v2555
        %v2588 = vadd.f32 %v2492, %v2556
        %v2589 = vadd.f32 %v2493, %v2557
        %v2590 = vadd.f32 %v2494, %v2558
        %v2591 = vadd.f32 %v2495, %v2559
        %v2592 = vadd.f32 %v2496, %v2560
        %v2593 = vadd.f32 %v2497, %v2561
        %v2594 = vadd.f32 %v2498, %v2562
        %v2595 = vadd.f32 %v2499, %v2563
        %v2596 = vadd.f32 %v2500, %v2564
        %v2597 = vadd.f32 %v2501, %v2565
        %v2598 = vadd.f32 %v2502, %v2566
        %v2599 = vadd.f32 %v2503, %v2567
        %v2600 = vadd.f32 %v2504, %v2568
        %v2601 = vadd.f32 %v2505, %v2569
        %v2602 = vadd.f32 %v2506, %v2570
        %v2603 = vadd.f32 %v2507, %v2571
        %v2604 = vadd.f32 %v2508, %v2572
        %v2605 = vadd.f32 %v2509, %v2573
        %v2606 = vadd.f32 %v2510, %v2574
        %v2607 = vadd.f32 %v2511, %v2575
        %v2608 = vadd.f32 %v2512, %v2576
        %v2609 = vadd.f32 %v2513, %v2577
        %v2610 = vadd.f32 %v2514, %v2578
        %v2611 = vadd.f32 %v2515, %v2579
        %v2612 = vadd.f32 %v2516, %v2580
        %v2613 = vadd.f32 %v2517, %v2581
        %vm2614 = vcmp.eq.s32.totalorder %v2036, %v1590
        %vm2615 = vcmp.eq.s32.totalorder %v2037, %v1590
        %vm2616 = vcmp.eq.s32.totalorder %v2036, %v1593
        %vm2617 = vcmp.eq.s32.totalorder %v2037, %v1593
        %vm2618 = vcmp.eq.s32.totalorder %v2036, %v1596
        %vm2619 = vcmp.eq.s32.totalorder %v2037, %v1596
        %vm2620 = vcmp.eq.s32.totalorder %v2036, %v1599
        %vm2621 = vcmp.eq.s32.totalorder %v2037, %v1599
        %vm2622 = vcmp.eq.s32.totalorder %v2036, %v1602
        %vm2623 = vcmp.eq.s32.totalorder %v2037, %v1602
        %vm2624 = vcmp.eq.s32.totalorder %v2036, %v1605
        %vm2625 = vcmp.eq.s32.totalorder %v2037, %v1605
        %vm2626 = vcmp.eq.s32.totalorder %v2036, %v1608
        %vm2627 = vcmp.eq.s32.totalorder %v2037, %v1608
        %vm2628 = vcmp.eq.s32.totalorder %v2036, %v1611
        %vm2629 = vcmp.eq.s32.totalorder %v2037, %v1611
        %vm2630 = vcmp.eq.s32.totalorder %v2036, %v1614
        %vm2631 = vcmp.eq.s32.totalorder %v2037, %v1614
        %vm2632 = vcmp.eq.s32.totalorder %v2036, %v1617
        %vm2633 = vcmp.eq.s32.totalorder %v2037, %v1617
        %vm2634 = vcmp.eq.s32.totalorder %v2036, %v1620
        %vm2635 = vcmp.eq.s32.totalorder %v2037, %v1620
        %vm2636 = vcmp.eq.s32.totalorder %v2036, %v1623
        %vm2637 = vcmp.eq.s32.totalorder %v2037, %v1623
        %vm2638 = vcmp.eq.s32.totalorder %v2036, %v1626
        %vm2639 = vcmp.eq.s32.totalorder %v2037, %v1626
        %vm2640 = vcmp.eq.s32.totalorder %v2036, %v1629
        %vm2641 = vcmp.eq.s32.totalorder %v2037, %v1629
        %vm2642 = vcmp.eq.s32.totalorder %v2036, %v1632
        %vm2643 = vcmp.eq.s32.totalorder %v2037, %v1632
        %vm2644 = vcmp.eq.s32.totalorder %v2036, %v1635
        %vm2645 = vcmp.eq.s32.totalorder %v2037, %v1635
        %v2646 = vsel %vm2614, %v1670, 0.0
        %v2647 = vsel %vm2615, %v1670, 0.0
        %v2648 = vsel %vm2616, %v1674, 0.0
        %v2649 = vsel %vm2617, %v1674, 0.0
        %v2650 = vsel %vm2618, %v1678, 0.0
        %v2651 = vsel %vm2619, %v1678, 0.0
        %v2652 = vsel %vm2620, %v1682, 0.0
        %v2653 = vsel %vm2621, %v1682, 0.0
        %v2654 = vsel %vm2622, %v1686, 0.0
        %v2655 = vsel %vm2623, %v1686, 0.0
        %v2656 = vsel %vm2624, %v1690, 0.0
        %v2657 = vsel %vm2625, %v1690, 0.0
        %v2658 = vsel %vm2626, %v1694, 0.0
        %v2659 = vsel %vm2627, %v1694, 0.0
        %v2660 = vsel %vm2628, %v1698, 0.0
        %v2661 = vsel %vm2629, %v1698, 0.0
        %v2662 = vsel %vm2630, %v1702, 0.0
        %v2663 = vsel %vm2631, %v1702, 0.0
        %v2664 = vsel %vm2632, %v1706, 0.0
        %v2665 = vsel %vm2633, %v1706, 0.0
        %v2666 = vsel %vm2634, %v1710, 0.0
        %v2667 = vsel %vm2635, %v1710, 0.0
        %v2668 = vsel %vm2636, %v1714, 0.0
        %v2669 = vsel %vm2637, %v1714, 0.0
        %v2670 = vsel %vm2638, %v1718, 0.0
        %v2671 = vsel %vm2639, %v1718, 0.0
        %v2672 = vsel %vm2640, %v1722, 0.0
        %v2673 = vsel %vm2641, %v1722, 0.0
        %v2674 = vsel %vm2642, %v1726, 0.0
        %v2675 = vsel %vm2643, %v1726, 0.0
        %v2676 = vsel %vm2644, %v1730, 0.0
        %v2677 = vsel %vm2645, %v1730, 0.0
        %v2678 = vadd.f32 %v2582, %v2646
        %v2679 = vadd.f32 %v2583, %v2647
        %v2680 = vadd.f32 %v2584, %v2648
        %v2681 = vadd.f32 %v2585, %v2649
        %v2682 = vadd.f32 %v2586, %v2650
        %v2683 = vadd.f32 %v2587, %v2651
        %v2684 = vadd.f32 %v2588, %v2652
        %v2685 = vadd.f32 %v2589, %v2653
        %v2686 = vadd.f32 %v2590, %v2654
        %v2687 = vadd.f32 %v2591, %v2655
        %v2688 = vadd.f32 %v2592, %v2656
        %v2689 = vadd.f32 %v2593, %v2657
        %v2690 = vadd.f32 %v2594, %v2658
        %v2691 = vadd.f32 %v2595, %v2659
        %v2692 = vadd.f32 %v2596, %v2660
        %v2693 = vadd.f32 %v2597, %v2661
        %v2694 = vadd.f32 %v2598, %v2662
        %v2695 = vadd.f32 %v2599, %v2663
        %v2696 = vadd.f32 %v2600, %v2664
        %v2697 = vadd.f32 %v2601, %v2665
        %v2698 = vadd.f32 %v2602, %v2666
        %v2699 = vadd.f32 %v2603, %v2667
        %v2700 = vadd.f32 %v2604, %v2668
        %v2701 = vadd.f32 %v2605, %v2669
        %v2702 = vadd.f32 %v2606, %v2670
        %v2703 = vadd.f32 %v2607, %v2671
        %v2704 = vadd.f32 %v2608, %v2672
        %v2705 = vadd.f32 %v2609, %v2673
        %v2706 = vadd.f32 %v2610, %v2674
        %v2707 = vadd.f32 %v2611, %v2675
        %v2708 = vadd.f32 %v2612, %v2676
        %v2709 = vadd.f32 %v2613, %v2677
        %vm2710 = vcmp.eq.s32.totalorder %v2036, %v1798
        %vm2711 = vcmp.eq.s32.totalorder %v2037, %v1798
        %vm2712 = vcmp.eq.s32.totalorder %v2036, %v1801
        %vm2713 = vcmp.eq.s32.totalorder %v2037, %v1801
        %vm2714 = vcmp.eq.s32.totalorder %v2036, %v1804
        %vm2715 = vcmp.eq.s32.totalorder %v2037, %v1804
        %vm2716 = vcmp.eq.s32.totalorder %v2036, %v1807
        %vm2717 = vcmp.eq.s32.totalorder %v2037, %v1807
        %vm2718 = vcmp.eq.s32.totalorder %v2036, %v1810
        %vm2719 = vcmp.eq.s32.totalorder %v2037, %v1810
        %vm2720 = vcmp.eq.s32.totalorder %v2036, %v1813
        %vm2721 = vcmp.eq.s32.totalorder %v2037, %v1813
        %vm2722 = vcmp.eq.s32.totalorder %v2036, %v1816
        %vm2723 = vcmp.eq.s32.totalorder %v2037, %v1816
        %vm2724 = vcmp.eq.s32.totalorder %v2036, %v1819
        %vm2725 = vcmp.eq.s32.totalorder %v2037, %v1819
        %vm2726 = vcmp.eq.s32.totalorder %v2036, %v1822
        %vm2727 = vcmp.eq.s32.totalorder %v2037, %v1822
        %vm2728 = vcmp.eq.s32.totalorder %v2036, %v1825
        %vm2729 = vcmp.eq.s32.totalorder %v2037, %v1825
        %vm2730 = vcmp.eq.s32.totalorder %v2036, %v1828
        %vm2731 = vcmp.eq.s32.totalorder %v2037, %v1828
        %vm2732 = vcmp.eq.s32.totalorder %v2036, %v1831
        %vm2733 = vcmp.eq.s32.totalorder %v2037, %v1831
        %vm2734 = vcmp.eq.s32.totalorder %v2036, %v1834
        %vm2735 = vcmp.eq.s32.totalorder %v2037, %v1834
        %vm2736 = vcmp.eq.s32.totalorder %v2036, %v1837
        %vm2737 = vcmp.eq.s32.totalorder %v2037, %v1837
        %vm2738 = vcmp.eq.s32.totalorder %v2036, %v1840
        %vm2739 = vcmp.eq.s32.totalorder %v2037, %v1840
        %vm2740 = vcmp.eq.s32.totalorder %v2036, %v1843
        %vm2741 = vcmp.eq.s32.totalorder %v2037, %v1843
        %v2742 = vsel %vm2710, %v1878, 0.0
        %v2743 = vsel %vm2711, %v1878, 0.0
        %v2744 = vsel %vm2712, %v1882, 0.0
        %v2745 = vsel %vm2713, %v1882, 0.0
        %v2746 = vsel %vm2714, %v1886, 0.0
        %v2747 = vsel %vm2715, %v1886, 0.0
        %v2748 = vsel %vm2716, %v1890, 0.0
        %v2749 = vsel %vm2717, %v1890, 0.0
        %v2750 = vsel %vm2718, %v1894, 0.0
        %v2751 = vsel %vm2719, %v1894, 0.0
        %v2752 = vsel %vm2720, %v1898, 0.0
        %v2753 = vsel %vm2721, %v1898, 0.0
        %v2754 = vsel %vm2722, %v1902, 0.0
        %v2755 = vsel %vm2723, %v1902, 0.0
        %v2756 = vsel %vm2724, %v1906, 0.0
        %v2757 = vsel %vm2725, %v1906, 0.0
        %v2758 = vsel %vm2726, %v1910, 0.0
        %v2759 = vsel %vm2727, %v1910, 0.0
        %v2760 = vsel %vm2728, %v1914, 0.0
        %v2761 = vsel %vm2729, %v1914, 0.0
        %v2762 = vsel %vm2730, %v1918, 0.0
        %v2763 = vsel %vm2731, %v1918, 0.0
        %v2764 = vsel %vm2732, %v1922, 0.0
        %v2765 = vsel %vm2733, %v1922, 0.0
        %v2766 = vsel %vm2734, %v1926, 0.0
        %v2767 = vsel %vm2735, %v1926, 0.0
        %v2768 = vsel %vm2736, %v1930, 0.0
        %v2769 = vsel %vm2737, %v1930, 0.0
        %v2770 = vsel %vm2738, %v1934, 0.0
        %v2771 = vsel %vm2739, %v1934, 0.0
        %v2772 = vsel %vm2740, %v1938, 0.0
        %v2773 = vsel %vm2741, %v1938, 0.0
        %v2774 = vadd.f32 %v2678, %v2742
        %v2775 = vadd.f32 %v2679, %v2743
        %v2776 = vadd.f32 %v2680, %v2744
        %v2777 = vadd.f32 %v2681, %v2745
        %v2778 = vadd.f32 %v2682, %v2746
        %v2779 = vadd.f32 %v2683, %v2747
        %v2780 = vadd.f32 %v2684, %v2748
        %v2781 = vadd.f32 %v2685, %v2749
        %v2782 = vadd.f32 %v2686, %v2750
        %v2783 = vadd.f32 %v2687, %v2751
        %v2784 = vadd.f32 %v2688, %v2752
        %v2785 = vadd.f32 %v2689, %v2753
        %v2786 = vadd.f32 %v2690, %v2754
        %v2787 = vadd.f32 %v2691, %v2755
        %v2788 = vadd.f32 %v2692, %v2756
        %v2789 = vadd.f32 %v2693, %v2757
        %v2790 = vadd.f32 %v2694, %v2758
        %v2791 = vadd.f32 %v2695, %v2759
        %v2792 = vadd.f32 %v2696, %v2760
        %v2793 = vadd.f32 %v2697, %v2761
        %v2794 = vadd.f32 %v2698, %v2762
        %v2795 = vadd.f32 %v2699, %v2763
        %v2796 = vadd.f32 %v2700, %v2764
        %v2797 = vadd.f32 %v2701, %v2765
        %v2798 = vadd.f32 %v2702, %v2766
        %v2799 = vadd.f32 %v2703, %v2767
        %v2800 = vadd.f32 %v2704, %v2768
        %v2801 = vadd.f32 %v2705, %v2769
        %v2802 = vadd.f32 %v2706, %v2770
        %v2803 = vadd.f32 %v2707, %v2771
        %v2804 = vadd.f32 %v2708, %v2772
        %v2805 = vadd.f32 %v2709, %v2773
        %v2806 = vld [vmem:[%s3 + $0x100] sm:$0xff]
        %v2807 = vld [vmem:[%s3 + $0x108] sm:$0xff]
        %v2808 = vld [vmem:[%s3 + $0x110] sm:$0xff]
        %v2809 = vld [vmem:[%s3 + $0x118] sm:$0xff]
        %v2810 = vld [vmem:[%s3 + $0x120] sm:$0xff]
        %v2811 = vld [vmem:[%s3 + $0x128] sm:$0xff]
        %v2812 = vld [vmem:[%s3 + $0x130] sm:$0xff]
        %v2813 = vld [vmem:[%s3 + $0x138] sm:$0xff]
        %v2814 = vld [vmem:[%s3 + $0x140] sm:$0xff]
        %v2815 = vld [vmem:[%s3 + $0x148] sm:$0xff]
        %v2816 = vld [vmem:[%s3 + $0x150] sm:$0xff]
        %v2817 = vld [vmem:[%s3 + $0x158] sm:$0xff]
        %v2818 = vld [vmem:[%s3 + $0x160] sm:$0xff]
        %v2819 = vld [vmem:[%s3 + $0x168] sm:$0xff]
        %v2820 = vld [vmem:[%s3 + $0x170] sm:$0xff]
        %v2821 = vld [vmem:[%s3 + $0x178] sm:$0xff]
        %v2822 = vld [vmem:[%s3 + $0x180] sm:$0xff]
        %v2823 = vld [vmem:[%s3 + $0x188] sm:$0xff]
        %v2824 = vld [vmem:[%s3 + $0x190] sm:$0xff]
        %v2825 = vld [vmem:[%s3 + $0x198] sm:$0xff]
        %v2826 = vld [vmem:[%s3 + $0x1a0] sm:$0xff]
        %v2827 = vld [vmem:[%s3 + $0x1a8] sm:$0xff]
        %v2828 = vld [vmem:[%s3 + $0x1b0] sm:$0xff]
        %v2829 = vld [vmem:[%s3 + $0x1b8] sm:$0xff]
        %v2830 = vld [vmem:[%s3 + $0x1c0] sm:$0xff]
        %v2831 = vld [vmem:[%s3 + $0x1c8] sm:$0xff]
        %v2832 = vld [vmem:[%s3 + $0x1d0] sm:$0xff]
        %v2833 = vld [vmem:[%s3 + $0x1d8] sm:$0xff]
        %v2834 = vld [vmem:[%s3 + $0x1e0] sm:$0xff]
        %v2835 = vld [vmem:[%s3 + $0x1e8] sm:$0xff]
        %v2836 = vld [vmem:[%s3 + $0x1f0] sm:$0xff]
        %v2837 = vld [vmem:[%s3 + $0x1f8] sm:$0xff]
        %2838 = vmatprep.subr.mxu0 0.0
        %2839 = vmatpush1.msra.mxu0 %v2821
        %2840 = vmatprep.subr.mxu0 0.0
        %2841 = vmatpush1.msra.mxu0 %v2820
        %2842 = vmatprep.subr.mxu0 0.0
        %2843 = vmatpush1.msra.mxu0 %v2819
        %2844 = vmatprep.subr.mxu0 0.0
        %2845 = vmatpush1.msra.mxu0 %v2818
        %2846 = vmatprep.subr.mxu0 0.0
        %2847 = vmatpush1.msra.mxu0 %v2817
        %2848 = vmatprep.subr.mxu0 0.0
        %2849 = vmatpush1.msra.mxu0 %v2816
        %2850 = vmatprep.subr.mxu0 0.0
        %2851 = vmatpush1.msra.mxu0 %v2815
        %2852 = vmatprep.subr.mxu0 0.0
        %2853 = vmatpush1.msra.mxu0 %v2814
        %2854 = vmatprep.subr.mxu0 0.0
        %2855 = vmatpush1.msra.mxu0 %v2813
        %2856 = vmatprep.subr.mxu0 0.0
        %2857 = vmatpush1.msra.mxu0 %v2812
        %2858 = vmatprep.subr.mxu0 0.0
        %2859 = vmatpush1.msra.mxu0 %v2811
        %2860 = vmatprep.subr.mxu0 0.0
        %2861 = vmatpush1.msra.mxu0 %v2810
        %2862 = vmatprep.subr.mxu0 0.0
        %2863 = vmatpush1.msra.mxu0 %v2809
        %2864 = vmatprep.subr.mxu0 0.0
        %2865 = vmatpush1.msra.mxu0 %v2808
        %2866 = vmatprep.subr.mxu0 0.0
        %2867 = vmatpush1.msra.mxu0 %v2807
        %2868 = vmatprep.subr.mxu0 0.0
        %2869 = vmatpush1.msra.mxu0 %v2806
        %2870 = vmatprep.subr.mxu0 0.0
        %2871 = vmatpush2.msra.mxu0 %v2837
        %2872 = vmatprep.subr.mxu0 0.0
        %2873 = vmatpush2.msra.mxu0 %v2836
        %2874 = vmatprep.subr.mxu0 0.0
        %2875 = vmatpush2.msra.mxu0 %v2835
        %2876 = vmatprep.subr.mxu0 0.0
        %2877 = vmatpush2.msra.mxu0 %v2834
        %2878 = vmatprep.subr.mxu0 0.0
        %2879 = vmatpush2.msra.mxu0 %v2833
        %2880 = vmatprep.subr.mxu0 0.0
        %2881 = vmatpush2.msra.mxu0 %v2832
        %2882 = vmatprep.subr.mxu0 0.0
        %2883 = vmatpush2.msra.mxu0 %v2831
        %2884 = vmatprep.subr.mxu0 0.0
        %2885 = vmatpush2.msra.mxu0 %v2830
        %2886 = vmatprep.subr.mxu0 0.0
        %2887 = vmatpush2.msra.mxu0 %v2829
        %2888 = vmatprep.subr.mxu0 0.0
        %2889 = vmatpush2.msra.mxu0 %v2828
        %2890 = vmatprep.subr.mxu0 0.0
        %2891 = vmatpush2.msra.mxu0 %v2827
        %2892 = vmatprep.subr.mxu0 0.0
        %2893 = vmatpush2.msra.mxu0 %v2826
        %2894 = vmatprep.subr.mxu0 0.0
        %2895 = vmatpush2.msra.mxu0 %v2825
        %2896 = vmatprep.subr.mxu0 0.0
        %2897 = vmatpush2.msra.mxu0 %v2824
        %2898 = vmatprep.subr.mxu0 0.0
        %2899 = vmatpush2.msra.mxu0 %v2823
        %2900 = vmatprep.subr.mxu0 0.0
        %2901 = vmatpush2.msra.mxu0 %v2822
        %2902 = vmatprep.mubr.f32.mxu0 %v2775
        %2903 = vmatmul.mubr.f32.gmra.mxu0 %v2774
        %v2904 = vpop.f32.mrf.mxu0
        %v2905 = vadd.f32 0.0, %v2904
        %v2906 = vpop.f32.mrf.mxu0
        %2907 = vmatprep.mubr.f32.mxu0 %v2777
        %2908 = vmatmul.mubr.f32.gmra.mxu0 %v2776
        %v2909 = vpop.f32.mrf.mxu0
        %v2910 = vadd.f32 0.0, %v2909
        %v2911 = vpop.f32.mrf.mxu0
        %2912 = vmatprep.mubr.f32.mxu0 %v2779
        %2913 = vmatmul.mubr.f32.gmra.mxu0 %v2778
        %v2914 = vpop.f32.mrf.mxu0
        %v2915 = vadd.f32 0.0, %v2914
        %v2916 = vpop.f32.mrf.mxu0
        %2917 = vmatprep.mubr.f32.mxu0 %v2781
        %2918 = vmatmul.mubr.f32.gmra.mxu0 %v2780
        %v2919 = vpop.f32.mrf.mxu0
        %v2920 = vadd.f32 0.0, %v2919
        %v2921 = vpop.f32.mrf.mxu0
        %2922 = vmatprep.mubr.f32.mxu0 %v2783
        %2923 = vmatmul.mubr.f32.gmra.mxu0 %v2782
        %v2924 = vpop.f32.mrf.mxu0
        %v2925 = vadd.f32 0.0, %v2924
        %v2926 = vpop.f32.mrf.mxu0
        %2927 = vmatprep.mubr.f32.mxu0 %v2785
        %2928 = vmatmul.mubr.f32.gmra.mxu0 %v2784
        %v2929 = vpop.f32.mrf.mxu0
        %v2930 = vadd.f32 0.0, %v2929
        %v2931 = vpop.f32.mrf.mxu0
        %2932 = vmatprep.mubr.f32.mxu0 %v2787
        %2933 = vmatmul.mubr.f32.gmra.mxu0 %v2786
        %v2934 = vpop.f32.mrf.mxu0
        %v2935 = vadd.f32 0.0, %v2934
        %v2936 = vpop.f32.mrf.mxu0
        %2937 = vmatprep.mubr.f32.mxu0 %v2789
        %2938 = vmatmul.mubr.f32.gmra.mxu0 %v2788
        %v2939 = vpop.f32.mrf.mxu0
        %v2940 = vadd.f32 0.0, %v2939
        %v2941 = vpop.f32.mrf.mxu0
        %2942 = vmatprep.mubr.f32.mxu0 %v2791
        %2943 = vmatmul.mubr.f32.gmra.mxu0 %v2790
        %v2944 = vpop.f32.mrf.mxu0
        %v2945 = vadd.f32 0.0, %v2944
        %v2946 = vpop.f32.mrf.mxu0
        %2947 = vmatprep.mubr.f32.mxu0 %v2793
        %2948 = vmatmul.mubr.f32.gmra.mxu0 %v2792
        %v2949 = vpop.f32.mrf.mxu0
        %v2950 = vadd.f32 0.0, %v2949
        %v2951 = vpop.f32.mrf.mxu0
        %2952 = vmatprep.mubr.f32.mxu0 %v2795
        %2953 = vmatmul.mubr.f32.gmra.mxu0 %v2794
        %v2954 = vpop.f32.mrf.mxu0
        %v2955 = vadd.f32 0.0, %v2954
        %v2956 = vpop.f32.mrf.mxu0
        %2957 = vmatprep.mubr.f32.mxu0 %v2797
        %2958 = vmatmul.mubr.f32.gmra.mxu0 %v2796
        %v2959 = vpop.f32.mrf.mxu0
        %v2960 = vadd.f32 0.0, %v2959
        %v2961 = vpop.f32.mrf.mxu0
        %2962 = vmatprep.mubr.f32.mxu0 %v2799
        %2963 = vmatmul.mubr.f32.gmra.mxu0 %v2798
        %v2964 = vpop.f32.mrf.mxu0
        %v2965 = vadd.f32 0.0, %v2964
        %v2966 = vpop.f32.mrf.mxu0
        %2967 = vmatprep.mubr.f32.mxu0 %v2801
        %2968 = vmatmul.mubr.f32.gmra.mxu0 %v2800
        %v2969 = vpop.f32.mrf.mxu0
        %v2970 = vadd.f32 0.0, %v2969
        %v2971 = vpop.f32.mrf.mxu0
        %2972 = vmatprep.mubr.f32.mxu0 %v2803
        %2973 = vmatmul.mubr.f32.gmra.mxu0 %v2802
        %v2974 = vpop.f32.mrf.mxu0
        %v2975 = vadd.f32 0.0, %v2974
        %v2976 = vpop.f32.mrf.mxu0
        %2977 = vmatprep.mubr.f32.mxu0 %v2805
        %2978 = vmatmul.mubr.f32.gmra.mxu0 %v2804
        %v2979 = vpop.f32.mrf.mxu0
        %v2980 = vadd.f32 0.0, %v2979
        %v2981 = vpop.f32.mrf.mxu0
        %2982 = vdwg.mxu0
        %2983 = vmatprep.subr.mxu0 0.0
        %2984 = vmatpush1.msra.mxu0 %v2019
        %2985 = vmatprep.subr.mxu0 0.0
        %2986 = vmatpush1.msra.mxu0 %v2018
        %2987 = vmatprep.subr.mxu0 0.0
        %2988 = vmatpush1.msra.mxu0 %v2017
        %2989 = vmatprep.subr.mxu0 0.0
        %2990 = vmatpush1.msra.mxu0 %v2016
        %2991 = vmatprep.subr.mxu0 0.0
        %2992 = vmatpush1.msra.mxu0 %v2015
        %2993 = vmatprep.subr.mxu0 0.0
        %2994 = vmatpush1.msra.mxu0 %v2014
        %2995 = vmatprep.subr.mxu0 0.0
        %2996 = vmatpush1.msra.mxu0 %v2013
        %2997 = vmatprep.subr.mxu0 0.0
        %2998 = vmatpush1.msra.mxu0 %v2012
        %2999 = vmatprep.subr.mxu0 0.0
        %3000 = vmatpush1.msra.mxu0 %v2011
        %3001 = vmatprep.subr.mxu0 0.0
        %3002 = vmatpush1.msra.mxu0 %v2010
        %3003 = vmatprep.subr.mxu0 0.0
        %3004 = vmatpush1.msra.mxu0 %v2009
        %3005 = vmatprep.subr.mxu0 0.0
        %3006 = vmatpush1.msra.mxu0 %v2008
        %3007 = vmatprep.subr.mxu0 0.0
        %3008 = vmatpush1.msra.mxu0 %v2007
        %3009 = vmatprep.subr.mxu0 0.0
        %3010 = vmatpush1.msra.mxu0 %v2006
        %3011 = vmatprep.subr.mxu0 0.0
        %3012 = vmatpush1.msra.mxu0 %v2005
        %3013 = vmatprep.subr.mxu0 0.0
        %3014 = vmatpush1.msra.mxu0 %v2004
        %3015 = vmatprep.subr.mxu0 0.0
        %3016 = vmatpush2.msra.mxu0 %v2035
        %3017 = vmatprep.subr.mxu0 0.0
        %3018 = vmatpush2.msra.mxu0 %v2034
        %3019 = vmatprep.subr.mxu0 0.0
        %3020 = vmatpush2.msra.mxu0 %v2033
        %3021 = vmatprep.subr.mxu0 0.0
        %3022 = vmatpush2.msra.mxu0 %v2032
        %3023 = vmatprep.subr.mxu0 0.0
        %3024 = vmatpush2.msra.mxu0 %v2031
        %3025 = vmatprep.subr.mxu0 0.0
        %3026 = vmatpush2.msra.mxu0 %v2030
        %3027 = vmatprep.subr.mxu0 0.0
        %3028 = vmatpush2.msra.mxu0 %v2029
        %3029 = vmatprep.subr.mxu0 0.0
        %3030 = vmatpush2.msra.mxu0 %v2028
        %3031 = vmatprep.subr.mxu0 0.0
        %3032 = vmatpush2.msra.mxu0 %v2027
        %3033 = vmatprep.subr.mxu0 0.0
        %3034 = vmatpush2.msra.mxu0 %v2026
        %3035 = vmatprep.subr.mxu0 0.0
        %3036 = vmatpush2.msra.mxu0 %v2025
        %3037 = vmatprep.subr.mxu0 0.0
        %3038 = vmatpush2.msra.mxu0 %v2024
        %3039 = vmatprep.subr.mxu0 0.0
        %3040 = vmatpush2.msra.mxu0 %v2023
        %3041 = vmatprep.subr.mxu0 0.0
        %3042 = vmatpush2.msra.mxu0 %v2022
        %3043 = vmatprep.subr.mxu0 0.0
        %3044 = vmatpush2.msra.mxu0 %v2021
        %3045 = vmatprep.subr.mxu0 0.0
        %3046 = vmatpush2.msra.mxu0 %v2020
        %3047 = vmatprep.mubr.f32.mxu0 %v1973
        %3048 = vmatmul.mubr.f32.gmra.mxu0 %v1972
        %v3049 = vpop.f32.mrf.mxu0
        %v3050 = vadd.f32 %v2905, %v3049
        %v3051 = vpop.f32.mrf.mxu0
        %3052 = vmatprep.mubr.f32.mxu0 %v1975
        %3053 = vmatmul.mubr.f32.gmra.mxu0 %v1974
        %v3054 = vpop.f32.mrf.mxu0
        %v3055 = vadd.f32 %v2910, %v3054
        %v3056 = vpop.f32.mrf.mxu0
        %3057 = vmatprep.mubr.f32.mxu0 %v1977
        %3058 = vmatmul.mubr.f32.gmra.mxu0 %v1976
        %v3059 = vpop.f32.mrf.mxu0
        %v3060 = vadd.f32 %v2915, %v3059
        %v3061 = vpop.f32.mrf.mxu0
        %3062 = vmatprep.mubr.f32.mxu0 %v1979
        %3063 = vmatmul.mubr.f32.gmra.mxu0 %v1978
        %v3064 = vpop.f32.mrf.mxu0
        %v3065 = vadd.f32 %v2920, %v3064
        %v3066 = vpop.f32.mrf.mxu0
        %3067 = vmatprep.mubr.f32.mxu0 %v1981
        %3068 = vmatmul.mubr.f32.gmra.mxu0 %v1980
        %v3069 = vpop.f32.mrf.mxu0
        %v3070 = vadd.f32 %v2925, %v3069
        %v3071 = vpop.f32.mrf.mxu0
        %3072 = vmatprep.mubr.f32.mxu0 %v1983
        %3073 = vmatmul.mubr.f32.gmra.mxu0 %v1982
        %v3074 = vpop.f32.mrf.mxu0
        %v3075 = vadd.f32 %v2930, %v3074
        %v3076 = vpop.f32.mrf.mxu0
        %3077 = vmatprep.mubr.f32.mxu0 %v1985
        %3078 = vmatmul.mubr.f32.gmra.mxu0 %v1984
        %v3079 = vpop.f32.mrf.mxu0
        %v3080 = vadd.f32 %v2935, %v3079
        %v3081 = vpop.f32.mrf.mxu0
        %3082 = vmatprep.mubr.f32.mxu0 %v1987
        %3083 = vmatmul.mubr.f32.gmra.mxu0 %v1986
        %v3084 = vpop.f32.mrf.mxu0
        %v3085 = vadd.f32 %v2940, %v3084
        %v3086 = vpop.f32.mrf.mxu0
        %3087 = vmatprep.mubr.f32.mxu0 %v1989
        %3088 = vmatmul.mubr.f32.gmra.mxu0 %v1988
        %v3089 = vpop.f32.mrf.mxu0
        %v3090 = vadd.f32 %v2945, %v3089
        %v3091 = vpop.f32.mrf.mxu0
        %3092 = vmatprep.mubr.f32.mxu0 %v1991
        %3093 = vmatmul.mubr.f32.gmra.mxu0 %v1990
        %v3094 = vpop.f32.mrf.mxu0
        %v3095 = vadd.f32 %v2950, %v3094
        %v3096 = vpop.f32.mrf.mxu0
        %3097 = vmatprep.mubr.f32.mxu0 %v1993
        %3098 = vmatmul.mubr.f32.gmra.mxu0 %v1992
        %v3099 = vpop.f32.mrf.mxu0
        %v3100 = vadd.f32 %v2955, %v3099
        %v3101 = vpop.f32.mrf.mxu0
        %3102 = vmatprep.mubr.f32.mxu0 %v1995
        %3103 = vmatmul.mubr.f32.gmra.mxu0 %v1994
        %v3104 = vpop.f32.mrf.mxu0
        %v3105 = vadd.f32 %v2960, %v3104
        %v3106 = vpop.f32.mrf.mxu0
        %3107 = vmatprep.mubr.f32.mxu0 %v1997
        %3108 = vmatmul.mubr.f32.gmra.mxu0 %v1996
        %v3109 = vpop.f32.mrf.mxu0
        %v3110 = vadd.f32 %v2965, %v3109
        %v3111 = vpop.f32.mrf.mxu0
        %3112 = vmatprep.mubr.f32.mxu0 %v1999
        %3113 = vmatmul.mubr.f32.gmra.mxu0 %v1998
        %v3114 = vpop.f32.mrf.mxu0
        %v3115 = vadd.f32 %v2970, %v3114
        %v3116 = vpop.f32.mrf.mxu0
        %3117 = vmatprep.mubr.f32.mxu0 %v2001
        %3118 = vmatmul.mubr.f32.gmra.mxu0 %v2000
        %v3119 = vpop.f32.mrf.mxu0
        %v3120 = vadd.f32 %v2975, %v3119
        %v3121 = vpop.f32.mrf.mxu0
        %3122 = vmatprep.mubr.f32.mxu0 %v2003
        %3123 = vmatmul.mubr.f32.gmra.mxu0 %v2002
        %v3124 = vpop.f32.mrf.mxu0
        %v3125 = vadd.f32 %v2980, %v3124
        %v3126 = vpop.f32.mrf.mxu0
        %3127 = vdwg.mxu0
        %vm3128 = vcmask 64512
        %v3129 = vsel %vm3128, %v289, 0.0
        %3130 = vadd.xlane.f32.xlu0 %v3129
        %v3131 = vpop.xlane.xlu0 %3130
        %v3132 = vsel %vm3128, %v290, 0.0
        %3133 = vadd.xlane.f32.xlu0 %v3132
        %v3134 = vpop.xlane.xlu0 %3133
        %v3135 = vsel %vm3128, %v291, 0.0
        %3136 = vadd.xlane.f32.xlu0 %v3135
        %v3137 = vpop.xlane.xlu0 %3136
        %v3138 = vsel %vm3128, %v292, 0.0
        %3139 = vadd.xlane.f32.xlu0 %v3138
        %v3140 = vpop.xlane.xlu0 %3139
        %v3141 = vsel %vm3128, %v293, 0.0
        %3142 = vadd.xlane.f32.xlu0 %v3141
        %v3143 = vpop.xlane.xlu0 %3142
        %v3144 = vsel %vm3128, %v294, 0.0
        %3145 = vadd.xlane.f32.xlu0 %v3144
        %v3146 = vpop.xlane.xlu0 %3145
        %v3147 = vsel %vm3128, %v295, 0.0
        %3148 = vadd.xlane.f32.xlu0 %v3147
        %v3149 = vpop.xlane.xlu0 %3148
        %v3150 = vsel %vm3128, %v296, 0.0
        %3151 = vadd.xlane.f32.xlu0 %v3150
        %v3152 = vpop.xlane.xlu0 %3151
        %v3153 = vsel %vm3128, %v297, 0.0
        %3154 = vadd.xlane.f32.xlu0 %v3153
        %v3155 = vpop.xlane.xlu0 %3154
        %v3156 = vsel %vm3128, %v298, 0.0
        %3157 = vadd.xlane.f32.xlu0 %v3156
        %v3158 = vpop.xlane.xlu0 %3157
        %v3159 = vsel %vm3128, %v299, 0.0
        %3160 = vadd.xlane.f32.xlu0 %v3159
        %v3161 = vpop.xlane.xlu0 %3160
        %v3162 = vsel %vm3128, %v300, 0.0
        %3163 = vadd.xlane.f32.xlu0 %v3162
        %v3164 = vpop.xlane.xlu0 %3163
        %v3165 = vsel %vm3128, %v301, 0.0
        %3166 = vadd.xlane.f32.xlu0 %v3165
        %v3167 = vpop.xlane.xlu0 %3166
        %v3168 = vsel %vm3128, %v302, 0.0
        %3169 = vadd.xlane.f32.xlu0 %v3168
        %v3170 = vpop.xlane.xlu0 %3169
        %v3171 = vsel %vm3128, %v303, 0.0
        %3172 = vadd.xlane.f32.xlu0 %v3171
        %v3173 = vpop.xlane.xlu0 %3172
        %v3174 = vsel %vm3128, %v304, 0.0
        %3175 = vadd.xlane.f32.xlu0 %v3174
        %v3176 = vpop.xlane.xlu0 %3175
        %v3177 = vrcp.pop 8.0
        %v3178 = vmul.f32 %v3131, %v3177
        %v3179 = vmul.f32 %v3134, %v3177
        %v3180 = vmul.f32 %v3137, %v3177
        %v3181 = vmul.f32 %v3140, %v3177
        %v3182 = vmul.f32 %v3143, %v3177
        %v3183 = vmul.f32 %v3146, %v3177
        %v3184 = vmul.f32 %v3149, %v3177
        %v3185 = vmul.f32 %v3152, %v3177
        %v3186 = vmul.f32 %v3155, %v3177
        %v3187 = vmul.f32 %v3158, %v3177
        %v3188 = vmul.f32 %v3161, %v3177
        %v3189 = vmul.f32 %v3164, %v3177
        %v3190 = vmul.f32 %v3167, %v3177
        %v3191 = vmul.f32 %v3170, %v3177
        %v3192 = vmul.f32 %v3173, %v3177
        %v3193 = vmul.f32 %v3176, %v3177
        %v3194 = vmul.f32 %v3050, 0.125
        %v3195 = vmul.f32 %v3055, 0.125
        %v3196 = vmul.f32 %v3060, 0.125
        %v3197 = vmul.f32 %v3065, 0.125
        %v3198 = vmul.f32 %v3070, 0.125
        %v3199 = vmul.f32 %v3075, 0.125
        %v3200 = vmul.f32 %v3080, 0.125
        %v3201 = vmul.f32 %v3085, 0.125
        %v3202 = vmul.f32 %v3090, 0.125
        %v3203 = vmul.f32 %v3095, 0.125
        %v3204 = vmul.f32 %v3100, 0.125
        %v3205 = vmul.f32 %v3105, 0.125
        %v3206 = vmul.f32 %v3110, 0.125
        %v3207 = vmul.f32 %v3115, 0.125
        %v3208 = vmul.f32 %v3120, 0.125
        %v3209 = vmul.f32 %v3125, 0.125
        %v3210 = vld [vmem:[%s4] sm:$0x1]
        %v3212 = vlaneseq
        %v3213 = vshrl.u32 %v3212, 7
        %v3214 = vsub.s32 0, %v3213
        %v3215 = vrot.slane %v3210, %v3214
        %v3217 = vmul.f32 %v3178, %v3215
        %v3218 = vmul.f32 %v3179, %v3215
        %v3219 = vmul.f32 %v3180, %v3215
        %v3220 = vmul.f32 %v3181, %v3215
        %v3221 = vmul.f32 %v3182, %v3215
        %v3222 = vmul.f32 %v3183, %v3215
        %v3223 = vmul.f32 %v3184, %v3215
        %v3224 = vmul.f32 %v3185, %v3215
        %v3225 = vmul.f32 %v3186, %v3215
        %v3226 = vmul.f32 %v3187, %v3215
        %v3227 = vmul.f32 %v3188, %v3215
        %v3228 = vmul.f32 %v3189, %v3215
        %v3229 = vmul.f32 %v3190, %v3215
        %v3230 = vmul.f32 %v3191, %v3215
        %v3231 = vmul.f32 %v3192, %v3215
        %v3232 = vmul.f32 %v3193, %v3215
        %v3233 = vadd.f32 %v3194, %v3217
        %v3234 = vadd.f32 %v3195, %v3218
        %v3235 = vadd.f32 %v3196, %v3219
        %v3236 = vadd.f32 %v3197, %v3220
        %v3237 = vadd.f32 %v3198, %v3221
        %v3238 = vadd.f32 %v3199, %v3222
        %v3239 = vadd.f32 %v3200, %v3223
        %v3240 = vadd.f32 %v3201, %v3224
        %v3241 = vadd.f32 %v3202, %v3225
        %v3242 = vadd.f32 %v3203, %v3226
        %v3243 = vadd.f32 %v3204, %v3227
        %v3244 = vadd.f32 %v3205, %v3228
        %v3245 = vadd.f32 %v3206, %v3229
        %v3246 = vadd.f32 %v3207, %v3230
        %v3247 = vadd.f32 %v3208, %v3231
        %v3248 = vadd.f32 %v3209, %v3232
        %v3249 = vmax.f32 %v3233, 0.0
        %v3250 = vmax.f32 %v3234, 0.0
        %v3251 = vmax.f32 %v3235, 0.0
        %v3252 = vmax.f32 %v3236, 0.0
        %v3253 = vmax.f32 %v3237, 0.0
        %v3254 = vmax.f32 %v3238, 0.0
        %v3255 = vmax.f32 %v3239, 0.0
        %v3256 = vmax.f32 %v3240, 0.0
        %v3257 = vmax.f32 %v3241, 0.0
        %v3258 = vmax.f32 %v3242, 0.0
        %v3259 = vmax.f32 %v3243, 0.0
        %v3260 = vmax.f32 %v3244, 0.0
        %v3261 = vmax.f32 %v3245, 0.0
        %v3262 = vmax.f32 %v3246, 0.0
        %v3263 = vmax.f32 %v3247, 0.0
        %v3264 = vmax.f32 %v3248, 0.0
        %v3265 = vld [vmem:[%s238] sm:$0xff]
        %v3266 = vld [vmem:[%s238 + $0x8] sm:$0xff]
        %v3267 = vld [vmem:[%s238 + $0x10] sm:$0xff]
        %v3268 = vld [vmem:[%s238 + $0x18] sm:$0xff]
        %v3269 = vld [vmem:[%s238 + $0x20] sm:$0xff]
        %v3270 = vld [vmem:[%s238 + $0x28] sm:$0xff]
        %v3271 = vld [vmem:[%s238 + $0x30] sm:$0xff]
        %v3272 = vld [vmem:[%s238 + $0x38] sm:$0xff]
        %v3273 = vld [vmem:[%s238 + $0x40] sm:$0xff]
        %v3274 = vld [vmem:[%s238 + $0x48] sm:$0xff]
        %v3275 = vld [vmem:[%s238 + $0x50] sm:$0xff]
        %v3276 = vld [vmem:[%s238 + $0x58] sm:$0xff]
        %v3277 = vld [vmem:[%s238 + $0x60] sm:$0xff]
        %v3278 = vld [vmem:[%s238 + $0x68] sm:$0xff]
        %v3279 = vld [vmem:[%s238 + $0x70] sm:$0xff]
        %v3280 = vld [vmem:[%s238 + $0x78] sm:$0xff]
        %3281 = vset.pattern.permute.xlu0 8
        %3282 = vperm.xlu0 %3281, %v289
        %v3283 = vpop.permute.xlu0 %3282
        %3285 = vset.pattern.permute.xlu0 8
        %3286 = vperm.xlu0 %3285, %v290
        %v3287 = vpop.permute.xlu0 %3286
        %3289 = vset.pattern.permute.xlu0 8
        %3290 = vperm.xlu0 %3289, %v291
        %v3291 = vpop.permute.xlu0 %3290
        %3293 = vset.pattern.permute.xlu0 8
        %3294 = vperm.xlu0 %3293, %v292
        %v3295 = vpop.permute.xlu0 %3294
        %3297 = vset.pattern.permute.xlu0 8
        %3298 = vperm.xlu0 %3297, %v293
        %v3299 = vpop.permute.xlu0 %3298
        %3301 = vset.pattern.permute.xlu0 8
        %3302 = vperm.xlu0 %3301, %v294
        %v3303 = vpop.permute.xlu0 %3302
        %3305 = vset.pattern.permute.xlu0 8
        %3306 = vperm.xlu0 %3305, %v295
        %v3307 = vpop.permute.xlu0 %3306
        %3309 = vset.pattern.permute.xlu0 8
        %3310 = vperm.xlu0 %3309, %v296
        %v3311 = vpop.permute.xlu0 %3310
        %3313 = vset.pattern.permute.xlu0 8
        %3314 = vperm.xlu0 %3313, %v297
        %v3315 = vpop.permute.xlu0 %3314
        %3317 = vset.pattern.permute.xlu0 8
        %3318 = vperm.xlu0 %3317, %v298
        %v3319 = vpop.permute.xlu0 %3318
        %3321 = vset.pattern.permute.xlu0 8
        %3322 = vperm.xlu0 %3321, %v299
        %v3323 = vpop.permute.xlu0 %3322
        %3325 = vset.pattern.permute.xlu0 8
        %3326 = vperm.xlu0 %3325, %v300
        %v3327 = vpop.permute.xlu0 %3326
        %3329 = vset.pattern.permute.xlu0 8
        %3330 = vperm.xlu0 %3329, %v301
        %v3331 = vpop.permute.xlu0 %3330
        %3333 = vset.pattern.permute.xlu0 8
        %3334 = vperm.xlu0 %3333, %v302
        %v3335 = vpop.permute.xlu0 %3334
        %3337 = vset.pattern.permute.xlu0 8
        %3338 = vperm.xlu0 %3337, %v303
        %v3339 = vpop.permute.xlu0 %3338
        %3341 = vset.pattern.permute.xlu0 8
        %3342 = vperm.xlu0 %3341, %v304
        %v3343 = vpop.permute.xlu0 %3342
        %v3345 = vmul.f32 %v3283, %v3265
        %v3346 = vmul.f32 %v3287, %v3266
        %v3347 = vmul.f32 %v3291, %v3267
        %v3348 = vmul.f32 %v3295, %v3268
        %v3349 = vmul.f32 %v3299, %v3269
        %v3350 = vmul.f32 %v3303, %v3270
        %v3351 = vmul.f32 %v3307, %v3271
        %v3352 = vmul.f32 %v3311, %v3272
        %v3353 = vmul.f32 %v3315, %v3273
        %v3354 = vmul.f32 %v3319, %v3274
        %v3355 = vmul.f32 %v3323, %v3275
        %v3356 = vmul.f32 %v3327, %v3276
        %v3357 = vmul.f32 %v3331, %v3277
        %v3358 = vmul.f32 %v3335, %v3278
        %v3359 = vmul.f32 %v3339, %v3279
        %v3360 = vmul.f32 %v3343, %v3280
        %v3361 = vadd.f32 %v3249, %v3345
        %v3362 = vadd.f32 %v3250, %v3346
        %v3363 = vadd.f32 %v3251, %v3347
        %v3364 = vadd.f32 %v3252, %v3348
        %v3365 = vadd.f32 %v3253, %v3349
        %v3366 = vadd.f32 %v3254, %v3350
        %v3367 = vadd.f32 %v3255, %v3351
        %v3368 = vadd.f32 %v3256, %v3352
        %v3369 = vadd.f32 %v3257, %v3353
        %v3370 = vadd.f32 %v3258, %v3354
        %v3371 = vadd.f32 %v3259, %v3355
        %v3372 = vadd.f32 %v3260, %v3356
        %v3373 = vadd.f32 %v3261, %v3357
        %v3374 = vadd.f32 %v3262, %v3358
        %v3375 = vadd.f32 %v3263, %v3359
        %v3376 = vadd.f32 %v3264, %v3360
        %3377 = vst [vmem:[%s274] sm:$0xff] %v3361
        %3378 = vst [vmem:[%s274 + $0x8] sm:$0xff] %v3362
        %3379 = vst [vmem:[%s274 + $0x10] sm:$0xff] %v3363
        %3380 = vst [vmem:[%s274 + $0x18] sm:$0xff] %v3364
        %3381 = vst [vmem:[%s274 + $0x20] sm:$0xff] %v3365
        %3382 = vst [vmem:[%s274 + $0x28] sm:$0xff] %v3366
        %3383 = vst [vmem:[%s274 + $0x30] sm:$0xff] %v3367
        %3384 = vst [vmem:[%s274 + $0x38] sm:$0xff] %v3368
        %3385 = vst [vmem:[%s274 + $0x40] sm:$0xff] %v3369
        %3386 = vst [vmem:[%s274 + $0x48] sm:$0xff] %v3370
        %3387 = vst [vmem:[%s274 + $0x50] sm:$0xff] %v3371
        %3388 = vst [vmem:[%s274 + $0x58] sm:$0xff] %v3372
        %3389 = vst [vmem:[%s274 + $0x60] sm:$0xff] %v3373
        %3390 = vst [vmem:[%s274 + $0x68] sm:$0xff] %v3374
        %3391 = vst [vmem:[%s274 + $0x70] sm:$0xff] %v3375
        %3392 = vst [vmem:[%s274 + $0x78] sm:$0xff] %v3376
        %s3393 = sand.u32 %s150, 1
        %s3394 = scalar_lea.sflag [#allocation4], %s3393
        %s3395 = sand.u32 %s150, 1
        %s3396 = smul.addr %s3395, 128
        %s3397 = scalar_lea.vmem [#allocation5], %s3396
        // Predicated region
        $region45: #{tpu_custom_call.1} parent=39 // pred_check
          %p3398 = pneg %p160
        $region46: #{tpu_custom_call.1} parent=39 // pred_check_branch
          %3400 = sbr.rel (%p3398) target = $region48
        $region47: #{tpu_custom_call.1} parent=39 // pred_region
          %s3401 = smul.u32 16, %s22
          %s3403 = ssub.s32 2048, 2048
          %3404 = vsyncadd %s3394, %s3403
          %s3405 = smul.addr %s3401, 128
          %s3406 = scalar_lea.hbm %s5, %s3405
          %s3407 = sshll.u32 %s3397, 4
          %s3408 = int_to_ptr.vmem [resolvable:$true] %s3407
          %3413 = dma.vmem_to_hbm [thread:$0]  %s3408, 2048, %s3406, %s3394, 128, 128, 8
        $region48: #{tpu_custom_call.1} parent=39 // pred_fallthru
          _
      $region40: #{tpu_custom_call.1} parent=5 // pred_fallthru
        _
      %p3414 = scmp.le.s32.totalorder 2, %s17
      // Predicated region
      $region49: #{tpu_custom_call.1} parent=5 // pred_check
        %p3415 = pneg %p3414
      $region50: #{tpu_custom_call.1} parent=5 // pred_check_branch
        %3417 = sbr.rel (%p3415) target = $region52
      $region51: #{tpu_custom_call.1} parent=5 // pred_region
        %s3418 = ssub.s32 %s17, 2
        // Predicated region
        $region53: #{tpu_custom_call.1} parent=51 // pred_check
          %p3419 = pneg %p166
        $region54: #{tpu_custom_call.1} parent=51 // pred_check_branch
          %3421 = sbr.rel (%p3419) target = $region56
        $region55: #{tpu_custom_call.1} parent=51 // pred_region
          %s3422 = sand.u32 %s151, 1
          %s3423 = scalar_lea.sflag [#allocation4], %s3422
          %s3424 = sand.u32 %s151, 1
          %s3425 = smul.addr %s3424, 128
          %s3426 = scalar_lea.vmem [#allocation5], %s3425
          %3427 = dma.done %s3423, 2048
        $region56: #{tpu_custom_call.1} parent=51 // pred_fallthru
          _
      $region52: #{tpu_custom_call.1} parent=5 // pred_fallthru
        _
    $region6: #{tpu_custom_call.1} parent=1 // loop_footer
      %s21 = sadd.s32 1, %s17
    $region7: #{tpu_custom_call.1} parent=1 // loop_footer_branch
      %16 = sbr.rel target = $region3
    $region8: #{tpu_custom_call.1} parent=1 // loop_exit
      _
    %3428 = vsyncpa [#allocation3], 1
    %s3429 = scalar_lea.sflag [#allocation3], 1
    %3430 = vsyncpa %s3429, 1
    %3431 = vsyncpa [#allocation4], 1
    %s3432 = scalar_lea.sflag [#allocation4], 1
    %3433 = vsyncpa %s3432, 1

</llo_original>
